<compile_context>
chip_gen: v5e
topology: v5e:2x2
jax: 0.10.0
libtpu: 0.0.40
codegen_flags: <defaults>
</compile_context>

<pallas_src>
import functools

import jax
import jax.numpy as jnp
import numpy as np
from jax.experimental import pallas as pl
from jax.experimental.pallas import tpu as pltpu

_VMEM_LIMIT = 48 * 1024 * 1024  # explicit scoped-VMEM budget (headroom on v7x 64 MiB)


def _cparams(*sems):
    return pltpu.CompilerParams(dimension_semantics=sems,
                                vmem_limit_bytes=_VMEM_LIMIT)


def _pick_tm(M, cap=1024):
    """Row tile: multiple of 8 dividing M, <= cap, preferring >= 2 grid steps."""
    cands = [tm for tm in range(8, min(M, cap) + 1, 8) if M % tm == 0]
    if not cands:
        return M
    multi = [tm for tm in cands if M // tm >= 2]
    return max(multi) if multi else max(cands)


def _erf(x):
    # Abramowitz & Stegun 7.1.26 polynomial erf (|abs err| < 1.5e-7, f32-exact).
    a1, a2, a3 = 0.254829592, -0.284496736, 1.421413741
    a4, a5, pp = -1.453152027, 1.061405429, 0.3275911
    s = jnp.where(x >= 0.0, 1.0, -1.0)
    ax = jnp.abs(x)
    t = 1.0 / (1.0 + pp * ax)
    poly = ((((a5 * t + a4) * t + a3) * t + a2) * t + a1) * t
    return s * (1.0 - poly * jnp.exp(-ax * ax))


def _gelu(x):
    return 0.5 * x * (1.0 + _erf(x * 0.7071067811865476))


# ----------------------------- Pallas kernels ------------------------------ #

def _ln_kernel(x_ref, g_ref, b_ref, o_ref):
    x = x_ref[...].astype(jnp.float32)
    mean = jnp.mean(x, axis=-1, keepdims=True)
    xc = x - mean
    var = jnp.mean(xc * xc, axis=-1, keepdims=True)
    y = xc * jax.lax.rsqrt(var + 1e-5)
    o_ref[...] = (y * g_ref[...] + b_ref[...]).astype(o_ref.dtype)


def layernorm(x2d, gamma, beta):
    M, C = x2d.shape
    TM = _pick_tm(M)
    return pl.pallas_call(
        _ln_kernel,
        out_shape=jax.ShapeDtypeStruct((M, C), x2d.dtype),
        grid=(M // TM,),
        in_specs=[
            pl.BlockSpec((TM, C), lambda i: (i, 0)),
            pl.BlockSpec((1, C), lambda i: (0, 0)),
            pl.BlockSpec((1, C), lambda i: (0, 0)),
        ],
        out_specs=pl.BlockSpec((TM, C), lambda i: (i, 0)),
        compiler_params=_cparams("parallel"),
    )(x2d, gamma.reshape(1, C), beta.reshape(1, C))


def _ln_linear_kernel(x_ref, g_ref, b_ref, w_ref, wb_ref, o_ref):
    # o = (LN(x) @ w + wb); LN in f32, matmul in bf16 with f32 accumulation.
    x = x_ref[...].astype(jnp.float32)
    mean = jnp.mean(x, axis=-1, keepdims=True)
    xc = x - mean
    var = jnp.mean(xc * xc, axis=-1, keepdims=True)
    xn = xc * jax.lax.rsqrt(var + 1e-5) * g_ref[...] + b_ref[...]
    y = jnp.dot(xn.astype(w_ref.dtype), w_ref[...],
                preferred_element_type=jnp.float32) + wb_ref[...]
    o_ref[...] = y.astype(o_ref.dtype)


def ln_linear(x2d, gamma, beta, w, wb, out_dtype):
    M, Cin = x2d.shape
    Cout = w.shape[1]
    TM = _pick_tm(M)
    return pl.pallas_call(
        _ln_linear_kernel,
        out_shape=jax.ShapeDtypeStruct((M, Cout), out_dtype),
        grid=(M // TM,),
        in_specs=[
            pl.BlockSpec((TM, Cin), lambda i: (i, 0)),
            pl.BlockSpec((1, Cin), lambda i: (0, 0)),
            pl.BlockSpec((1, Cin), lambda i: (0, 0)),
            pl.BlockSpec((Cin, Cout), lambda i: (0, 0)),   # weight resident
            pl.BlockSpec((1, Cout), lambda i: (0, 0)),
        ],
        out_specs=pl.BlockSpec((TM, Cout), lambda i: (i, 0)),
        compiler_params=_cparams("parallel"),
    )(x2d, gamma.reshape(1, Cin), beta.reshape(1, Cin), w, wb.reshape(1, Cout))


def _proj_res_ln_fc1_kernel(xc_ref, pw_ref, pb_ref, res_ref, g_ref, b_ref,
                            fw_ref, fb_ref, y_ref, h_ref):
    # y = res + xcat @ proj_w + proj_b   (new residual, f32)
    # h = LN(y) @ fc1_w + fc1_b          (mlp hidden, bf16)
    y = jnp.dot(xc_ref[...], pw_ref[...], preferred_element_type=jnp.float32)
    y = y + pb_ref[...] + res_ref[...].astype(jnp.float32)
    y_ref[...] = y.astype(y_ref.dtype)
    mean = jnp.mean(y, axis=-1, keepdims=True)
    yc = y - mean
    var = jnp.mean(yc * yc, axis=-1, keepdims=True)
    xn = yc * jax.lax.rsqrt(var + 1e-5) * g_ref[...] + b_ref[...]
    h = jnp.dot(xn.astype(fw_ref.dtype), fw_ref[...],
                preferred_element_type=jnp.float32) + fb_ref[...]
    h_ref[...] = h.astype(h_ref.dtype)


def proj_res_ln_fc1(xcat, proj_w, proj_b, res, gamma, beta, fc1_w, fc1_b):
    M, C = xcat.shape
    Hd = fc1_w.shape[1]
    TM = _pick_tm(M)
    return pl.pallas_call(
        _proj_res_ln_fc1_kernel,
        out_shape=(jax.ShapeDtypeStruct((M, C), jnp.float32),
                   jax.ShapeDtypeStruct((M, Hd), jnp.bfloat16)),
        grid=(M // TM,),
        in_specs=[
            pl.BlockSpec((TM, C), lambda i: (i, 0)),
            pl.BlockSpec((C, C), lambda i: (0, 0)),        # proj weight resident
            pl.BlockSpec((1, C), lambda i: (0, 0)),
            pl.BlockSpec((TM, C), lambda i: (i, 0)),
            pl.BlockSpec((1, C), lambda i: (0, 0)),
            pl.BlockSpec((1, C), lambda i: (0, 0)),
            pl.BlockSpec((C, Hd), lambda i: (0, 0)),        # fc1 weight resident
            pl.BlockSpec((1, Hd), lambda i: (0, 0)),
        ],
        out_specs=[pl.BlockSpec((TM, C), lambda i: (i, 0)),
                   pl.BlockSpec((TM, Hd), lambda i: (i, 0))],
        compiler_params=_cparams("parallel"),
    )(xcat, proj_w, proj_b.reshape(1, C), res, gamma.reshape(1, C),
      beta.reshape(1, C), fc1_w, fc1_b.reshape(1, Hd))


def _gelu_fc2_res_kernel(h_ref, w_ref, b_ref, r_ref, o_ref):
    # o = res + gelu(h) @ fc2_w + fc2_b  (GELU fused in-kernel)
    g = _gelu(h_ref[...].astype(jnp.float32))
    y = jnp.dot(g.astype(w_ref.dtype), w_ref[...], preferred_element_type=jnp.float32)
    o_ref[...] = (r_ref[...] + y + b_ref[...]).astype(o_ref.dtype)


def gelu_fc2_residual(h, w, b, res):
    M, Hd = h.shape
    C = w.shape[1]
    TM = _pick_tm(M)
    return pl.pallas_call(
        _gelu_fc2_res_kernel,
        out_shape=jax.ShapeDtypeStruct((M, C), res.dtype),
        grid=(M // TM,),
        in_specs=[
            pl.BlockSpec((TM, Hd), lambda i: (i, 0)),
            pl.BlockSpec((Hd, C), lambda i: (0, 0)),        # weight resident
            pl.BlockSpec((1, C), lambda i: (0, 0)),
            pl.BlockSpec((TM, C), lambda i: (i, 0)),
        ],
        out_specs=pl.BlockSpec((TM, C), lambda i: (i, 0)),
        compiler_params=_cparams("parallel"),
    )(h, w, b.reshape(1, C), res)


def _wattn_kernel(q_ref, k_ref, v_ref, ab_ref, o_ref, *, nh):
    # Blocks: q/k/v/o (nW, N, C2) — heads packed along the lane axis (lane-dense
    # loads/stores); ab (nh, nW, N, N) rel-pos bias (+ shift mask) additive term.
    # The q scale is pre-folded into the qkv weights.
    G, N, C2 = q_ref.shape
    hd = C2 // nh
    q = q_ref[...]
    k = k_ref[...]
    v = v_ref[...]
    outs = []
    for h in range(nh):                     # static per-head loop
        lo, hi = h * hd, (h + 1) * hd
        s = jax.lax.dot_general(q[:, :, lo:hi], k[:, :, lo:hi],
                                (((2,), (2,)), ((0,), (0,))),
                                preferred_element_type=jnp.float32)   # (G, N, N)
        s = s + ab_ref[h]
        s = s - jnp.max(s, axis=-1, keepdims=True)
        p = jnp.exp(s)
        p = p * pl.reciprocal(jnp.sum(p, axis=-1, keepdims=True), approx=True)
        oh = jax.lax.dot_general(p.astype(v.dtype), v[:, :, lo:hi],
                                 (((2,), (1,)), ((0,), (0,))),
                                 preferred_element_type=jnp.float32)  # (G, N, hd)
        outs.append(oh)
    o_ref[...] = jnp.concatenate(outs, axis=-1).astype(o_ref.dtype)   # lane-dense


def window_attention(q, k, v, ab):
    # q, k, v: (B*nW, N, C2); ab: (nh, N, N)-per-window laid out as (nh, nW, N, N),
    # resident across the (parallel) per-batch grid.
    Gt, N, C2 = q.shape
    nh, nW = ab.shape[0], ab.shape[1]
    B = Gt // nW
    kernel = functools.partial(_wattn_kernel, nh=nh)
    qkv_spec = pl.BlockSpec((nW, N, C2), lambda b: (b, 0, 0))
    return pl.pallas_call(
        kernel,
        out_shape=jax.ShapeDtypeStruct((Gt, N, C2), q.dtype),
        grid=(B,),
        in_specs=[qkv_spec, qkv_spec, qkv_spec,
                  pl.BlockSpec((nh, nW, N, N), lambda b: (0, 0, 0, 0))],
        out_specs=qkv_spec,
        compiler_params=_cparams("parallel"),
    )(q, k, v, ab)


# ------------------------------ JAX glue ----------------------------------- #

def window_partition(x, ws):
    B, H, W, C = x.shape
    x = x.reshape(B, H // ws, ws, W // ws, ws, C)
    return x.transpose(0, 1, 3, 2, 4, 5).reshape(-1, ws, ws, C)


def window_reverse(windows, ws, H, W):
    B = windows.shape[0] // (H * W // ws // ws)
    x = windows.reshape(B, H // ws, W // ws, ws, ws, -1)
    return x.transpose(0, 1, 3, 2, 4, 5).reshape(B, H, W, -1)


def relative_position_index(ws):
    coords = np.stack(np.meshgrid(np.arange(ws), np.arange(ws), indexing="ij"))
    coords_flat = coords.reshape(2, -1)
    rel = coords_flat[:, :, None] - coords_flat[:, None, :]
    rel = rel.transpose(1, 2, 0).astype(np.int64)
    rel[:, :, 0] += ws - 1
    rel[:, :, 1] += ws - 1
    rel[:, :, 0] *= 2 * ws - 1
    return rel.sum(-1)  # (N, N)


def compute_shift_mask(H, W, ws, ss):
    img_mask = np.zeros((1, H, W, 1), np.float32)
    slices = (slice(0, -ws), slice(-ws, -ss), slice(-ss, None))
    cnt = 0
    for hs in slices:
        for wsl in slices:
            img_mask[:, hs, wsl, :] = cnt
            cnt += 1
    mw = img_mask.reshape(1, H // ws, ws, W // ws, ws, 1)
    mw = mw.transpose(0, 1, 3, 2, 4, 5).reshape(-1, ws * ws)
    attn_mask = mw[:, None, :] - mw[:, :, None]
    return np.where(attn_mask != 0, -100.0, 0.0).astype(np.float32)  # (nW, N, N)


def attn_branch(qkv_b, ws, ab, H, W):
    # qkv_b: (3, B, H, W, C2) bf16; ab: (nh, nW, N, N) f32
    C2 = qkv_b.shape[-1]
    N = ws * ws

    def to_windows(t):
        return window_partition(t, ws).reshape(-1, N, C2)   # (B*nW, N, C2)

    o = window_attention(to_windows(qkv_b[0]), to_windows(qkv_b[1]),
                         to_windows(qkv_b[2]), ab)           # (B*nW, N, C2) bf16
    return window_reverse(o.reshape(-1, ws, ws, C2), ws, H, W)


def block_forward(x2d, p, B, H, W, alternate, ws, ss):
    M, C = x2d.shape
    C2 = C // 2
    L = H * W

    # norm1 + qkv (with pre-folded q scale) fused; output bf16 to halve HBM traffic
    qkv = ln_linear(x2d, p["norm1_g"], p["norm1_b"], p["qkv_w"], p["qkv_b"],
                    jnp.bfloat16)                             # (M, 3C)
    qkv = qkv.reshape(B, L, 3, C).transpose(2, 0, 1, 3).reshape(3, B, H, W, C)

    half_lo, half_hi = qkv[..., :C2], qkv[..., C2:]
    qkv1, qkv2 = (half_lo, half_hi) if alternate == 0 else (half_hi, half_lo)
    if ss > 0:
        qkv2 = jnp.roll(qkv2, shift=(-ss, -ss), axis=(2, 3))

    x1 = attn_branch(qkv1, ws, p["ab1"], H, W)                # (B, H, W, C2) bf16
    x2 = attn_branch(qkv2, ws, p["ab2"], H, W)
    if ss > 0:
        x2 = jnp.roll(x2, shift=(ss, ss), axis=(1, 2))

    if alternate == 0:
        xcat = jnp.concatenate([x1.reshape(B, L, C2), x2.reshape(B, L, C2)], axis=2)
    else:
        xcat = jnp.concatenate([x2.reshape(B, L, C2), x1.reshape(B, L, C2)], axis=2)

    # proj + residual + norm2 + fc1 fused (one read of the residual stream);
    # GELU + fc2 + residual fused in a second kernel.
    y, h = proj_res_ln_fc1(xcat.reshape(M, C), p["proj_w"], p["proj_b"], x2d,
                           p["norm2_g"], p["norm2_b"], p["fc1_w"], p["fc1_b"])
    return gelu_fc2_residual(h, p["fc2_w"], p["fc2_b"], y)


def model_forward(x_nchw, params, *, window_size, shift_size):
    B, C, H, W = x_nchw.shape
    x2d = x_nchw.reshape(B, C, H * W).transpose(0, 2, 1).reshape(B * H * W, C)
    for i, p in enumerate(params["blocks"]):
        alternate = 0 if i % 2 == 0 else 1
        x2d = block_forward(x2d, p, B, H, W, alternate, window_size, shift_size)
    x2d = layernorm(x2d, params["norm_g"], params["norm_b"])
    return x2d.reshape(B, H * W, C).transpose(0, 2, 1).reshape(B, C, H, W)


# --------------------------- parameter init -------------------------------- #

def init_params(key, *, dim, depth, num_heads, window_size, shift_size,
                mlp_ratio, H, W):
    hidden = int(dim * mlp_ratio)
    nh2 = num_heads // 2
    ws = window_size
    N = ws * ws
    nW = (H // ws) * (W // ws)
    n_rel = (2 * ws - 1) * (2 * ws - 1)
    rel_idx = relative_position_index(ws).reshape(-1)
    scale = float(dim // num_heads) ** (-0.5)   # head_dim = (dim/2)/(nh/2) = dim/nh
    shift_mask = compute_shift_mask(H, W, ws, shift_size) if shift_size > 0 else None

    blocks = []
    for _ in range(depth):
        keys = jax.random.split(key, 7)
        key = keys[0]
        rpb0 = 0.02 * jax.random.normal(keys[5], (n_rel, nh2), jnp.float32)
        rpb1 = 0.02 * jax.random.normal(keys[6], (n_rel, nh2), jnp.float32)
        bias0 = rpb0[rel_idx].reshape(N, N, nh2).transpose(2, 0, 1)   # (nh2, N, N)
        bias1 = rpb1[rel_idx].reshape(N, N, nh2).transpose(2, 0, 1)
        # Hoisted to init: tile bias to the kernel's (nh, nW, N, N) layout and
        # fold the shift mask for the shifted branch (parameter-only work).
        ab1 = jnp.tile(bias0[:, None], (1, nW, 1, 1))
        if shift_size > 0:
            ab2 = bias1[:, None, :, :] + jnp.asarray(shift_mask)[None, :, :, :]
        else:
            ab2 = jnp.tile(bias1[:, None], (1, nW, 1, 1))

        qkv_w = 0.02 * jax.random.normal(keys[1], (dim, 3 * dim), jnp.float32)
        qkv_b = jnp.zeros((3 * dim,), jnp.float32)
        # Fold the 1/sqrt(head_dim) q scale into the q slice of the projection.
        qkv_w = qkv_w.at[:, :dim].multiply(scale)
        qkv_b = qkv_b.at[:dim].multiply(scale)

        p = {
            "norm1_g": jnp.ones((dim,), jnp.float32),
            "norm1_b": jnp.zeros((dim,), jnp.float32),
            "qkv_w": qkv_w.astype(jnp.bfloat16),
            "qkv_b": qkv_b,
            "proj_w": (0.02 * jax.random.normal(keys[2], (dim, dim),
                                                jnp.float32)).astype(jnp.bfloat16),
            "proj_b": jnp.zeros((dim,), jnp.float32),
            "norm2_g": jnp.ones((dim,), jnp.float32),
            "norm2_b": jnp.zeros((dim,), jnp.float32),
            "fc1_w": (0.02 * jax.random.normal(keys[3], (dim, hidden),
                                               jnp.float32)).astype(jnp.bfloat16),
            "fc1_b": jnp.zeros((hidden,), jnp.float32),
            "fc2_w": (0.02 * jax.random.normal(keys[4], (hidden, dim),
                                               jnp.float32)).astype(jnp.bfloat16),
            "fc2_b": jnp.zeros((dim,), jnp.float32),
            "ab1": ab1.astype(jnp.float32),
            "ab2": ab2.astype(jnp.float32),
        }
        blocks.append(p)
    return {
        "blocks": blocks,
        "norm_g": jnp.ones((dim,), jnp.float32),
        "norm_b": jnp.zeros((dim,), jnp.float32),
    }


# --------------------------------- main ------------------------------------ #

if __name__ == "__main__":
    # Small config consistent with the module: embed_dim=32, depths=[2],
    # num_heads=[4], window_size=4, shift_size=2, input (B=2, C=32, H=W=8).
    B, C, H, W = 2, 32, 8, 8
    depth, num_heads, window_size, mlp_ratio = 2, 4, 4, 4.0
    shift_size = window_size // 2

    key = jax.random.PRNGKey(0)
    kx, kp = jax.random.split(key)
    x = jax.random.normal(kx, (B, C, H, W), jnp.float32)
    params = init_params(kp, dim=C, depth=depth, num_heads=num_heads,
                         window_size=window_size, shift_size=shift_size,
                         mlp_ratio=mlp_ratio, H=H, W=W)

    fwd = jax.jit(functools.partial(model_forward, window_size=window_size,
                                    shift_size=shift_size))
    out = fwd(x, params)
    jax.block_until_ready(out)
    assert out.shape == (B, C, H, W)
    assert bool(jnp.all(jnp.isfinite(out)))
    print("KERNEL_OK")
</pallas_src>

<mosaic_0001>
module attributes {stable_mosaic.version = 11 : i64} {
  func.func @_ln_linear_kernel(%arg0: i32, %arg1: memref<64x32xf32, #tpu.memory_space<vmem>>, %arg2: memref<1x32xf32, #tpu.memory_space<vmem>>, %arg3: memref<1x32xf32, #tpu.memory_space<vmem>>, %arg4: memref<32x96xbf16, #tpu.memory_space<vmem>>, %arg5: memref<1x96xf32, #tpu.memory_space<vmem>>, %arg6: memref<64x96xbf16, #tpu.memory_space<vmem>>) attributes {dimension_semantics = [#tpu.dimension_semantics<parallel>], iteration_bounds = array<i64: 2>, scalar_prefetch = 0 : i64, scratch_operands = 0 : i64, tpu.core_type = #tpu.core_type<tc>, window_params = [{transform_indices = @transform_0, window_bounds = array<i64: 64, 32>}, {pipeline_mode = #tpu.pipeline_mode<synchronous>, transform_indices = @transform_1, window_bounds = array<i64: 1, 32>}, {pipeline_mode = #tpu.pipeline_mode<synchronous>, transform_indices = @transform_2, window_bounds = array<i64: 1, 32>}, {pipeline_mode = #tpu.pipeline_mode<synchronous>, transform_indices = @transform_3, window_bounds = array<i64: 32, 96>}, {pipeline_mode = #tpu.pipeline_mode<synchronous>, transform_indices = @transform_4, window_bounds = array<i64: 1, 96>}, {transform_indices = @transform_5, window_bounds = array<i64: 64, 96>}]} {
    %c0 = arith.constant 0 : index
    %c0_0 = arith.constant 0 : index
    %0 = vector.load %arg1[%c0, %c0_0] : memref<64x32xf32, #tpu.memory_space<vmem>>, vector<64x32xf32>
    %cst = arith.constant dense<0.000000e+00> : vector<64xf32>
    %1 = vector.multi_reduction <add>, %0, %cst [1] : vector<64x32xf32> to vector<64xf32>
    %2 = vector.shape_cast %1 : vector<64xf32> to vector<64x1xf32>
    %cst_1 = arith.constant 3.200000e+01 : f32
    %3 = vector.broadcast %cst_1 : f32 to vector<64x1xf32>
    %4 = arith.divf %2, %3 : vector<64x1xf32>
    %5 = vector.broadcast %4 : vector<64x1xf32> to vector<64x32xf32>
    %6 = arith.subf %0, %5 : vector<64x32xf32>
    %7 = arith.mulf %6, %6 : vector<64x32xf32>
    %cst_2 = arith.constant dense<0.000000e+00> : vector<64xf32>
    %8 = vector.multi_reduction <add>, %7, %cst_2 [1] : vector<64x32xf32> to vector<64xf32>
    %9 = vector.shape_cast %8 : vector<64xf32> to vector<64x1xf32>
    %cst_3 = arith.constant 3.200000e+01 : f32
    %10 = vector.broadcast %cst_3 : f32 to vector<64x1xf32>
    %11 = arith.divf %9, %10 : vector<64x1xf32>
    %cst_4 = arith.constant 9.99999974E-6 : f32
    %12 = vector.broadcast %cst_4 : f32 to vector<64x1xf32>
    %13 = arith.addf %11, %12 : vector<64x1xf32>
    %14 = math.rsqrt %13 : vector<64x1xf32>
    %15 = vector.broadcast %14 : vector<64x1xf32> to vector<64x32xf32>
    %16 = arith.mulf %6, %15 : vector<64x32xf32>
    %c0_5 = arith.constant 0 : index
    %c0_6 = arith.constant 0 : index
    %17 = vector.load %arg2[%c0_5, %c0_6] : memref<1x32xf32, #tpu.memory_space<vmem>>, vector<1x32xf32>
    %18 = vector.broadcast %17 : vector<1x32xf32> to vector<64x32xf32>
    %19 = arith.mulf %16, %18 : vector<64x32xf32>
    %c0_7 = arith.constant 0 : index
    %c0_8 = arith.constant 0 : index
    %20 = vector.load %arg3[%c0_7, %c0_8] : memref<1x32xf32, #tpu.memory_space<vmem>>, vector<1x32xf32>
    %21 = vector.broadcast %20 : vector<1x32xf32> to vector<64x32xf32>
    %22 = arith.addf %19, %21 : vector<64x32xf32>
    %23 = arith.truncf %22 : vector<64x32xf32> to vector<64x32xbf16>
    %c0_9 = arith.constant 0 : index
    %c0_10 = arith.constant 0 : index
    %24 = vector.load %arg4[%c0_9, %c0_10] : memref<32x96xbf16, #tpu.memory_space<vmem>>, vector<32x96xbf16>
    %cst_11 = arith.constant dense<0.000000e+00> : vector<64x96xf32>
    %25 = tpu.matmul %23, %24, %cst_11 {dimension_numbers = #tpu.dot_dimension_numbers<[1], [0], [0], [1], [0, 0, 1, 1], [], []>} : vector<64x32xbf16>, vector<32x96xbf16>, vector<64x96xf32> -> vector<64x96xf32>
    %c0_12 = arith.constant 0 : index
    %c0_13 = arith.constant 0 : index
    %26 = vector.load %arg5[%c0_12, %c0_13] : memref<1x96xf32, #tpu.memory_space<vmem>>, vector<1x96xf32>
    %27 = vector.broadcast %26 : vector<1x96xf32> to vector<64x96xf32>
    %28 = arith.addf %25, %27 : vector<64x96xf32>
    %29 = arith.truncf %28 : vector<64x96xf32> to vector<64x96xbf16>
    %c0_14 = arith.constant 0 : index
    %c0_15 = arith.constant 0 : index
    %30 = vector.load %arg6[%c0_14, %c0_15] : memref<64x96xbf16, #tpu.memory_space<vmem>>, vector<64x96xbf16>
    tpu.vector_store %arg6[%c0_14, %c0_15], %29 {strides = array<i32>} : memref<64x96xbf16, #tpu.memory_space<vmem>>, vector<64x96xbf16>,
    return
  }
  func.func @transform_0(%arg0: i32) -> (i32, i32) {
    %c0_i32 = arith.constant 0 : i32
    %c0_i32_0 = arith.constant 0 : i32
    return %arg0, %c0_i32 : i32, i32
  }
  func.func @transform_1(%arg0: i32) -> (i32, i32) {
    %c0_i32 = arith.constant 0 : i32
    %c0_i32_0 = arith.constant 0 : i32
    %c0_i32_1 = arith.constant 0 : i32
    return %c0_i32, %c0_i32_0 : i32, i32
  }
  func.func @transform_2(%arg0: i32) -> (i32, i32) {
    %c0_i32 = arith.constant 0 : i32
    %c0_i32_0 = arith.constant 0 : i32
    %c0_i32_1 = arith.constant 0 : i32
    return %c0_i32, %c0_i32_0 : i32, i32
  }
  func.func @transform_3(%arg0: i32) -> (i32, i32) {
    %c0_i32 = arith.constant 0 : i32
    %c0_i32_0 = arith.constant 0 : i32
    %c0_i32_1 = arith.constant 0 : i32
    return %c0_i32, %c0_i32_0 : i32, i32
  }
  func.func @transform_4(%arg0: i32) -> (i32, i32) {
    %c0_i32 = arith.constant 0 : i32
    %c0_i32_0 = arith.constant 0 : i32
    %c0_i32_1 = arith.constant 0 : i32
    return %c0_i32, %c0_i32_0 : i32, i32
  }
  func.func @transform_5(%arg0: i32) -> (i32, i32) {
    %c0_i32 = arith.constant 0 : i32
    %c0_i32_0 = arith.constant 0 : i32
    return %arg0, %c0_i32 : i32, i32
  }
}

module attributes {stable_mosaic.version = 11 : i64} {
  func.func @_wattn_kernel(%arg0: i32, %arg1: memref<4x16x16xbf16, #tpu.memory_space<vmem>>, %arg2: memref<4x16x16xbf16, #tpu.memory_space<vmem>>, %arg3: memref<4x16x16xbf16, #tpu.memory_space<vmem>>, %arg4: memref<2x4x16x16xf32, #tpu.memory_space<vmem>>, %arg5: memref<4x16x16xbf16, #tpu.memory_space<vmem>>) attributes {dimension_semantics = [#tpu.dimension_semantics<parallel>], iteration_bounds = array<i64: 2>, scalar_prefetch = 0 : i64, scratch_operands = 0 : i64, tpu.core_type = #tpu.core_type<tc>, window_params = [{transform_indices = @transform_0, window_bounds = array<i64: 4, 16, 16>}, {transform_indices = @transform_1, window_bounds = array<i64: 4, 16, 16>}, {transform_indices = @transform_2, window_bounds = array<i64: 4, 16, 16>}, {pipeline_mode = #tpu.pipeline_mode<synchronous>, transform_indices = @transform_3, window_bounds = array<i64: 2, 4, 16, 16>}, {transform_indices = @transform_4, window_bounds = array<i64: 4, 16, 16>}]} {
    %c0 = arith.constant 0 : index
    %c0_0 = arith.constant 0 : index
    %c0_1 = arith.constant 0 : index
    %0 = vector.load %arg1[%c0, %c0_0, %c0_1] : memref<4x16x16xbf16, #tpu.memory_space<vmem>>, vector<4x16x16xbf16>
    %c0_2 = arith.constant 0 : index
    %c0_3 = arith.constant 0 : index
    %c0_4 = arith.constant 0 : index
    %1 = vector.load %arg2[%c0_2, %c0_3, %c0_4] : memref<4x16x16xbf16, #tpu.memory_space<vmem>>, vector<4x16x16xbf16>
    %c0_5 = arith.constant 0 : index
    %c0_6 = arith.constant 0 : index
    %c0_7 = arith.constant 0 : index
    %2 = vector.load %arg3[%c0_5, %c0_6, %c0_7] : memref<4x16x16xbf16, #tpu.memory_space<vmem>>, vector<4x16x16xbf16>
    %3 = vector.extract_strided_slice %0 {offsets = [0, 0, 0], sizes = [4, 16, 8], strides = [1, 1, 1]} : vector<4x16x16xbf16> to vector<4x16x8xbf16>
    %4 = vector.extract_strided_slice %1 {offsets = [0, 0, 0], sizes = [4, 16, 8], strides = [1, 1, 1]} : vector<4x16x16xbf16> to vector<4x16x8xbf16>
    %cst = arith.constant dense<0.000000e+00> : vector<4x16x16xf32>
    %5 = tpu.matmul %3, %4, %cst {dimension_numbers = #tpu.dot_dimension_numbers<[2], [2], [1], [1], [0, 0, 0, 1, 1, 1], [0], [0]>} : vector<4x16x8xbf16>, vector<4x16x8xbf16>, vector<4x16x16xf32> -> vector<4x16x16xf32>
    %c0_8 = arith.constant 0 : index
    %c0_9 = arith.constant 0 : index
    %c0_10 = arith.constant 0 : index
    %c0_11 = arith.constant 0 : index
    %6 = vector.load %arg4[%c0_8, %c0_9, %c0_10, %c0_11] : memref<2x4x16x16xf32, #tpu.memory_space<vmem>>, vector<1x4x16x16xf32>
    %7 = vector.shape_cast %6 : vector<1x4x16x16xf32> to vector<4x16x16xf32>
    %8 = arith.addf %5, %7 : vector<4x16x16xf32>
    %cst_12 = arith.constant dense<0xFF800000> : vector<4x16xf32>
    %9 = vector.multi_reduction <maximumf>, %8, %cst_12 [2] : vector<4x16x16xf32> to vector<4x16xf32>
    %10 = vector.shape_cast %9 : vector<4x16xf32> to vector<4x16x1xf32>
    %11 = vector.broadcast %10 : vector<4x16x1xf32> to vector<4x16x16xf32>
    %12 = arith.subf %8, %11 : vector<4x16x16xf32>
    %13 = math.exp %12 : vector<4x16x16xf32>
    %cst_13 = arith.constant dense<0.000000e+00> : vector<4x16xf32>
    %14 = vector.multi_reduction <add>, %13, %cst_13 [2] : vector<4x16x16xf32> to vector<4x16xf32>
    %15 = vector.shape_cast %14 : vector<4x16xf32> to vector<4x16x1xf32>
    %16 = tpu.reciprocal %15 {approx = true} : vector<4x16x1xf32> -> vector<4x16x1xf32>
    %17 = vector.broadcast %16 : vector<4x16x1xf32> to vector<4x16x16xf32>
    %18 = arith.mulf %13, %17 : vector<4x16x16xf32>
    %19 = arith.truncf %18 : vector<4x16x16xf32> to vector<4x16x16xbf16>
    %20 = vector.extract_strided_slice %2 {offsets = [0, 0, 0], sizes = [4, 16, 8], strides = [1, 1, 1]} : vector<4x16x16xbf16> to vector<4x16x8xbf16>
    %cst_14 = arith.constant dense<0.000000e+00> : vector<4x16x8xf32>
    %21 = tpu.matmul %19, %20, %cst_14 {dimension_numbers = #tpu.dot_dimension_numbers<[2], [1], [1], [2], [0, 0, 0, 1, 1, 2], [0], [0]>} : vector<4x16x16xbf16>, vector<4x16x8xbf16>, vector<4x16x8xf32> -> vector<4x16x8xf32>
    %22 = vector.extract_strided_slice %0 {offsets = [0, 0, 8], sizes = [4, 16, 8], strides = [1, 1, 1]} : vector<4x16x16xbf16> to vector<4x16x8xbf16>
    %23 = vector.extract_strided_slice %1 {offsets = [0, 0, 8], sizes = [4, 16, 8], strides = [1, 1, 1]} : vector<4x16x16xbf16> to vector<4x16x8xbf16>
    %cst_15 = arith.constant dense<0.000000e+00> : vector<4x16x16xf32>
    %24 = tpu.matmul %22, %23, %cst_15 {dimension_numbers = #tpu.dot_dimension_numbers<[2], [2], [1], [1], [0, 0, 0, 1, 1, 1], [0], [0]>} : vector<4x16x8xbf16>, vector<4x16x8xbf16>, vector<4x16x16xf32> -> vector<4x16x16xf32>
    %c1 = arith.constant 1 : index
    %c0_16 = arith.constant 0 : index
    %c0_17 = arith.constant 0 : index
    %c0_18 = arith.constant 0 : index
    %25 = vector.load %arg4[%c1, %c0_16, %c0_17, %c0_18] : memref<2x4x16x16xf32, #tpu.memory_space<vmem>>, vector<1x4x16x16xf32>
    %26 = vector.shape_cast %25 : vector<1x4x16x16xf32> to vector<4x16x16xf32>
    %27 = arith.addf %24, %26 : vector<4x16x16xf32>
    %cst_19 = arith.constant dense<0xFF800000> : vector<4x16xf32>
    %28 = vector.multi_reduction <maximumf>, %27, %cst_19 [2] : vector<4x16x16xf32> to vector<4x16xf32>
    %29 = vector.shape_cast %28 : vector<4x16xf32> to vector<4x16x1xf32>
    %30 = vector.broadcast %29 : vector<4x16x1xf32> to vector<4x16x16xf32>
    %31 = arith.subf %27, %30 : vector<4x16x16xf32>
    %32 = math.exp %31 : vector<4x16x16xf32>
    %cst_20 = arith.constant dense<0.000000e+00> : vector<4x16xf32>
    %33 = vector.multi_reduction <add>, %32, %cst_20 [2] : vector<4x16x16xf32> to vector<4x16xf32>
    %34 = vector.shape_cast %33 : vector<4x16xf32> to vector<4x16x1xf32>
    %35 = tpu.reciprocal %34 {approx = true} : vector<4x16x1xf32> -> vector<4x16x1xf32>
    %36 = vector.broadcast %35 : vector<4x16x1xf32> to vector<4x16x16xf32>
    %37 = arith.mulf %32, %36 : vector<4x16x16xf32>
    %38 = arith.truncf %37 : vector<4x16x16xf32> to vector<4x16x16xbf16>
    %39 = vector.extract_strided_slice %2 {offsets = [0, 0, 8], sizes = [4, 16, 8], strides = [1, 1, 1]} : vector<4x16x16xbf16> to vector<4x16x8xbf16>
    %cst_21 = arith.constant dense<0.000000e+00> : vector<4x16x8xf32>
    %40 = tpu.matmul %38, %39, %cst_21 {dimension_numbers = #tpu.dot_dimension_numbers<[2], [1], [1], [2], [0, 0, 0, 1, 1, 2], [0], [0]>} : vector<4x16x16xbf16>, vector<4x16x8xbf16>, vector<4x16x8xf32> -> vector<4x16x8xf32>
    %41 = tpu.concatenate %21, %40 in 2 : vector<4x16x8xf32>, vector<4x16x8xf32> -> vector<4x16x16xf32>
    %42 = arith.truncf %41 : vector<4x16x16xf32> to vector<4x16x16xbf16>
    %c0_22 = arith.constant 0 : index
    %c0_23 = arith.constant 0 : index
    %c0_24 = arith.constant 0 : index
    %43 = vector.load %arg5[%c0_22, %c0_23, %c0_24] : memref<4x16x16xbf16, #tpu.memory_space<vmem>>, vector<4x16x16xbf16>
    tpu.vector_store %arg5[%c0_22, %c0_23, %c0_24], %42 {strides = array<i32>} : memref<4x16x16xbf16, #tpu.memory_space<vmem>>, vector<4x16x16xbf16>,
    return
  }
  func.func @transform_0(%arg0: i32) -> (i32, i32, i32) {
    %c0_i32 = arith.constant 0 : i32
    %c0_i32_0 = arith.constant 0 : i32
    %c0_i32_1 = arith.constant 0 : i32
    return %arg0, %c0_i32, %c0_i32_0 : i32, i32, i32
  }
  func.func @transform_1(%arg0: i32) -> (i32, i32, i32) {
    %c0_i32 = arith.constant 0 : i32
    %c0_i32_0 = arith.constant 0 : i32
    %c0_i32_1 = arith.constant 0 : i32
    return %arg0, %c0_i32, %c0_i32_0 : i32, i32, i32
  }
  func.func @transform_2(%arg0: i32) -> (i32, i32, i32) {
    %c0_i32 = arith.constant 0 : i32
    %c0_i32_0 = arith.constant 0 : i32
    %c0_i32_1 = arith.constant 0 : i32
    return %arg0, %c0_i32, %c0_i32_0 : i32, i32, i32
  }
  func.func @transform_3(%arg0: i32) -> (i32, i32, i32, i32) {
    %c0_i32 = arith.constant 0 : i32
    %c0_i32_0 = arith.constant 0 : i32
    %c0_i32_1 = arith.constant 0 : i32
    %c0_i32_2 = arith.constant 0 : i32
    %c0_i32_3 = arith.constant 0 : i32
    return %c0_i32, %c0_i32_0, %c0_i32_1, %c0_i32_2 : i32, i32, i32, i32
  }
  func.func @transform_4(%arg0: i32) -> (i32, i32, i32) {
    %c0_i32 = arith.constant 0 : i32
    %c0_i32_0 = arith.constant 0 : i32
    %c0_i32_1 = arith.constant 0 : i32
    return %arg0, %c0_i32, %c0_i32_0 : i32, i32, i32
  }
}

module attributes {stable_mosaic.version = 11 : i64} {
  func.func @_proj_res_ln_fc1_kernel(%arg0: i32, %arg1: memref<64x32xbf16, #tpu.memory_space<vmem>>, %arg2: memref<32x32xbf16, #tpu.memory_space<vmem>>, %arg3: memref<1x32xf32, #tpu.memory_space<vmem>>, %arg4: memref<64x32xf32, #tpu.memory_space<vmem>>, %arg5: memref<1x32xf32, #tpu.memory_space<vmem>>, %arg6: memref<1x32xf32, #tpu.memory_space<vmem>>, %arg7: memref<32x128xbf16, #tpu.memory_space<vmem>>, %arg8: memref<1x128xf32, #tpu.memory_space<vmem>>, %arg9: memref<64x32xf32, #tpu.memory_space<vmem>>, %arg10: memref<64x128xbf16, #tpu.memory_space<vmem>>) attributes {dimension_semantics = [#tpu.dimension_semantics<parallel>], iteration_bounds = array<i64: 2>, scalar_prefetch = 0 : i64, scratch_operands = 0 : i64, tpu.core_type = #tpu.core_type<tc>, window_params = [{transform_indices = @transform_0, window_bounds = array<i64: 64, 32>}, {pipeline_mode = #tpu.pipeline_mode<synchronous>, transform_indices = @transform_1, window_bounds = array<i64: 32, 32>}, {pipeline_mode = #tpu.pipeline_mode<synchronous>, transform_indices = @transform_2, window_bounds = array<i64: 1, 32>}, {transform_indices = @transform_3, window_bounds = array<i64: 64, 32>}, {pipeline_mode = #tpu.pipeline_mode<synchronous>, transform_indices = @transform_4, window_bounds = array<i64: 1, 32>}, {pipeline_mode = #tpu.pipeline_mode<synchronous>, transform_indices = @transform_5, window_bounds = array<i64: 1, 32>}, {pipeline_mode = #tpu.pipeline_mode<synchronous>, transform_indices = @transform_6, window_bounds = array<i64: 32, 128>}, {pipeline_mode = #tpu.pipeline_mode<synchronous>, transform_indices = @transform_7, window_bounds = array<i64: 1, 128>}, {transform_indices = @transform_8, window_bounds = array<i64: 64, 32>}, {transform_indices = @transform_9, window_bounds = array<i64: 64, 128>}]} {
    %c0 = arith.constant 0 : index
    %c0_0 = arith.constant 0 : index
    %0 = vector.load %arg1[%c0, %c0_0] : memref<64x32xbf16, #tpu.memory_space<vmem>>, vector<64x32xbf16>
    %c0_1 = arith.constant 0 : index
    %c0_2 = arith.constant 0 : index
    %1 = vector.load %arg2[%c0_1, %c0_2] : memref<32x32xbf16, #tpu.memory_space<vmem>>, vector<32x32xbf16>
    %cst = arith.constant dense<0.000000e+00> : vector<64x32xf32>
    %2 = tpu.matmul %0, %1, %cst {dimension_numbers = #tpu.dot_dimension_numbers<[1], [0], [0], [1], [0, 0, 1, 1], [], []>} : vector<64x32xbf16>, vector<32x32xbf16>, vector<64x32xf32> -> vector<64x32xf32>
    %c0_3 = arith.constant 0 : index
    %c0_4 = arith.constant 0 : index
    %3 = vector.load %arg3[%c0_3, %c0_4] : memref<1x32xf32, #tpu.memory_space<vmem>>, vector<1x32xf32>
    %4 = vector.broadcast %3 : vector<1x32xf32> to vector<64x32xf32>
    %5 = arith.addf %2, %4 : vector<64x32xf32>
    %c0_5 = arith.constant 0 : index
    %c0_6 = arith.constant 0 : index
    %6 = vector.load %arg4[%c0_5, %c0_6] : memref<64x32xf32, #tpu.memory_space<vmem>>, vector<64x32xf32>
    %7 = arith.addf %5, %6 : vector<64x32xf32>
    %c0_7 = arith.constant 0 : index
    %c0_8 = arith.constant 0 : index
    %8 = vector.load %arg9[%c0_7, %c0_8] : memref<64x32xf32, #tpu.memory_space<vmem>>, vector<64x32xf32>
    tpu.vector_store %arg9[%c0_7, %c0_8], %7 {strides = array<i32>} : memref<64x32xf32, #tpu.memory_space<vmem>>, vector<64x32xf32>,
    %cst_9 = arith.constant dense<0.000000e+00> : vector<64xf32>
    %9 = vector.multi_reduction <add>, %7, %cst_9 [1] : vector<64x32xf32> to vector<64xf32>
    %10 = vector.shape_cast %9 : vector<64xf32> to vector<64x1xf32>
    %cst_10 = arith.constant 3.200000e+01 : f32
    %11 = vector.broadcast %cst_10 : f32 to vector<64x1xf32>
    %12 = arith.divf %10, %11 : vector<64x1xf32>
    %13 = vector.broadcast %12 : vector<64x1xf32> to vector<64x32xf32>
    %14 = arith.subf %7, %13 : vector<64x32xf32>
    %15 = arith.mulf %14, %14 : vector<64x32xf32>
    %cst_11 = arith.constant dense<0.000000e+00> : vector<64xf32>
    %16 = vector.multi_reduction <add>, %15, %cst_11 [1] : vector<64x32xf32> to vector<64xf32>
    %17 = vector.shape_cast %16 : vector<64xf32> to vector<64x1xf32>
    %cst_12 = arith.constant 3.200000e+01 : f32
    %18 = vector.broadcast %cst_12 : f32 to vector<64x1xf32>
    %19 = arith.divf %17, %18 : vector<64x1xf32>
    %cst_13 = arith.constant 9.99999974E-6 : f32
    %20 = vector.broadcast %cst_13 : f32 to vector<64x1xf32>
    %21 = arith.addf %19, %20 : vector<64x1xf32>
    %22 = math.rsqrt %21 : vector<64x1xf32>
    %23 = vector.broadcast %22 : vector<64x1xf32> to vector<64x32xf32>
    %24 = arith.mulf %14, %23 : vector<64x32xf32>
    %c0_14 = arith.constant 0 : index
    %c0_15 = arith.constant 0 : index
    %25 = vector.load %arg5[%c0_14, %c0_15] : memref<1x32xf32, #tpu.memory_space<vmem>>, vector<1x32xf32>
    %26 = vector.broadcast %25 : vector<1x32xf32> to vector<64x32xf32>
    %27 = arith.mulf %24, %26 : vector<64x32xf32>
    %c0_16 = arith.constant 0 : index
    %c0_17 = arith.constant 0 : index
    %28 = vector.load %arg6[%c0_16, %c0_17] : memref<1x32xf32, #tpu.memory_space<vmem>>, vector<1x32xf32>
    %29 = vector.broadcast %28 : vector<1x32xf32> to vector<64x32xf32>
    %30 = arith.addf %27, %29 : vector<64x32xf32>
    %31 = arith.truncf %30 : vector<64x32xf32> to vector<64x32xbf16>
    %c0_18 = arith.constant 0 : index
    %c0_19 = arith.constant 0 : index
    %32 = vector.load %arg7[%c0_18, %c0_19] : memref<32x128xbf16, #tpu.memory_space<vmem>>, vector<32x128xbf16>
    %cst_20 = arith.constant dense<0.000000e+00> : vector<64x128xf32>
    %33 = tpu.matmul %31, %32, %cst_20 {dimension_numbers = #tpu.dot_dimension_numbers<[1], [0], [0], [1], [0, 0, 1, 1], [], []>} : vector<64x32xbf16>, vector<32x128xbf16>, vector<64x128xf32> -> vector<64x128xf32>
    %c0_21 = arith.constant 0 : index
    %c0_22 = arith.constant 0 : index
    %34 = vector.load %arg8[%c0_21, %c0_22] : memref<1x128xf32, #tpu.memory_space<vmem>>, vector<1x128xf32>
    %35 = vector.broadcast %34 : vector<1x128xf32> to vector<64x128xf32>
    %36 = arith.addf %33, %35 : vector<64x128xf32>
    %37 = arith.truncf %36 : vector<64x128xf32> to vector<64x128xbf16>
    %c0_23 = arith.constant 0 : index
    %c0_24 = arith.constant 0 : index
    %38 = vector.load %arg10[%c0_23, %c0_24] : memref<64x128xbf16, #tpu.memory_space<vmem>>, vector<64x128xbf16>
    tpu.vector_store %arg10[%c0_23, %c0_24], %37 {strides = array<i32>} : memref<64x128xbf16, #tpu.memory_space<vmem>>, vector<64x128xbf16>,
    return
  }
  func.func @transform_0(%arg0: i32) -> (i32, i32) {
    %c0_i32 = arith.constant 0 : i32
    %c0_i32_0 = arith.constant 0 : i32
    return %arg0, %c0_i32 : i32, i32
  }
  func.func @transform_1(%arg0: i32) -> (i32, i32) {
    %c0_i32 = arith.constant 0 : i32
    %c0_i32_0 = arith.constant 0 : i32
    %c0_i32_1 = arith.constant 0 : i32
    return %c0_i32, %c0_i32_0 : i32, i32
  }
  func.func @transform_2(%arg0: i32) -> (i32, i32) {
    %c0_i32 = arith.constant 0 : i32
    %c0_i32_0 = arith.constant 0 : i32
    %c0_i32_1 = arith.constant 0 : i32
    return %c0_i32, %c0_i32_0 : i32, i32
  }
  func.func @transform_3(%arg0: i32) -> (i32, i32) {
    %c0_i32 = arith.constant 0 : i32
    %c0_i32_0 = arith.constant 0 : i32
    return %arg0, %c0_i32 : i32, i32
  }
  func.func @transform_4(%arg0: i32) -> (i32, i32) {
    %c0_i32 = arith.constant 0 : i32
    %c0_i32_0 = arith.constant 0 : i32
    %c0_i32_1 = arith.constant 0 : i32
    return %c0_i32, %c0_i32_0 : i32, i32
  }
  func.func @transform_5(%arg0: i32) -> (i32, i32) {
    %c0_i32 = arith.constant 0 : i32
    %c0_i32_0 = arith.constant 0 : i32
    %c0_i32_1 = arith.constant 0 : i32
    return %c0_i32, %c0_i32_0 : i32, i32
  }
  func.func @transform_6(%arg0: i32) -> (i32, i32) {
    %c0_i32 = arith.constant 0 : i32
    %c0_i32_0 = arith.constant 0 : i32
    %c0_i32_1 = arith.constant 0 : i32
    return %c0_i32, %c0_i32_0 : i32, i32
  }
  func.func @transform_7(%arg0: i32) -> (i32, i32) {
    %c0_i32 = arith.constant 0 : i32
    %c0_i32_0 = arith.constant 0 : i32
    %c0_i32_1 = arith.constant 0 : i32
    return %c0_i32, %c0_i32_0 : i32, i32
  }
  func.func @transform_8(%arg0: i32) -> (i32, i32) {
    %c0_i32 = arith.constant 0 : i32
    %c0_i32_0 = arith.constant 0 : i32
    return %arg0, %c0_i32 : i32, i32
  }
  func.func @transform_9(%arg0: i32) -> (i32, i32) {
    %c0_i32 = arith.constant 0 : i32
    %c0_i32_0 = arith.constant 0 : i32
    return %arg0, %c0_i32 : i32, i32
  }
}

module attributes {stable_mosaic.version = 11 : i64} {
  func.func @_gelu_fc2_res_kernel(%arg0: i32, %arg1: memref<64x128xbf16, #tpu.memory_space<vmem>>, %arg2: memref<128x32xbf16, #tpu.memory_space<vmem>>, %arg3: memref<1x32xf32, #tpu.memory_space<vmem>>, %arg4: memref<64x32xf32, #tpu.memory_space<vmem>>, %arg5: memref<64x32xf32, #tpu.memory_space<vmem>>) attributes {dimension_semantics = [#tpu.dimension_semantics<parallel>], iteration_bounds = array<i64: 2>, scalar_prefetch = 0 : i64, scratch_operands = 0 : i64, tpu.core_type = #tpu.core_type<tc>, window_params = [{transform_indices = @transform_0, window_bounds = array<i64: 64, 128>}, {pipeline_mode = #tpu.pipeline_mode<synchronous>, transform_indices = @transform_1, window_bounds = array<i64: 128, 32>}, {pipeline_mode = #tpu.pipeline_mode<synchronous>, transform_indices = @transform_2, window_bounds = array<i64: 1, 32>}, {transform_indices = @transform_3, window_bounds = array<i64: 64, 32>}, {transform_indices = @transform_4, window_bounds = array<i64: 64, 32>}]} {
    %c0 = arith.constant 0 : index
    %c0_0 = arith.constant 0 : index
    %0 = vector.load %arg1[%c0, %c0_0] : memref<64x128xbf16, #tpu.memory_space<vmem>>, vector<64x128xbf16>
    %1 = arith.extf %0 : vector<64x128xbf16> to vector<64x128xf32>
    %cst = arith.constant 5.000000e-01 : f32
    %2 = vector.broadcast %cst : f32 to vector<64x128xf32>
    %3 = arith.mulf %2, %1 : vector<64x128xf32>
    %cst_1 = arith.constant 0.707106769 : f32
    %4 = vector.broadcast %cst_1 : f32 to vector<64x128xf32>
    %5 = arith.mulf %1, %4 : vector<64x128xf32>
    %cst_2 = arith.constant 0.000000e+00 : f32
    %6 = vector.broadcast %cst_2 : f32 to vector<64x128xf32>
    %7 = arith.cmpf oge, %5, %6 : vector<64x128xf32>
    %cst_3 = arith.constant 1.000000e+00 : f32
    %cst_4 = arith.constant -1.000000e+00 : f32
    %8 = vector.broadcast %cst_3 : f32 to vector<64x128xf32>
    %9 = vector.broadcast %cst_4 : f32 to vector<64x128xf32>
    %10 = arith.select %7, %8, %9 : vector<64x128xi1>, vector<64x128xf32>
    %11 = math.absf %5 : vector<64x128xf32>
    %cst_5 = arith.constant 0.327591091 : f32
    %12 = vector.broadcast %cst_5 : f32 to vector<64x128xf32>
    %13 = arith.mulf %12, %11 : vector<64x128xf32>
    %cst_6 = arith.constant 1.000000e+00 : f32
    %14 = vector.broadcast %cst_6 : f32 to vector<64x128xf32>
    %15 = arith.addf %14, %13 : vector<64x128xf32>
    %cst_7 = arith.constant 1.000000e+00 : f32
    %16 = vector.broadcast %cst_7 : f32 to vector<64x128xf32>
    %17 = arith.divf %16, %15 : vector<64x128xf32>
    %cst_8 = arith.constant 1.06140542 : f32
    %18 = vector.broadcast %cst_8 : f32 to vector<64x128xf32>
    %19 = arith.mulf %18, %17 : vector<64x128xf32>
    %cst_9 = arith.constant -1.45315206 : f32
    %20 = vector.broadcast %cst_9 : f32 to vector<64x128xf32>
    %21 = arith.addf %19, %20 : vector<64x128xf32>
    %22 = arith.mulf %21, %17 : vector<64x128xf32>
    %cst_10 = arith.constant 1.42141378 : f32
    %23 = vector.broadcast %cst_10 : f32 to vector<64x128xf32>
    %24 = arith.addf %22, %23 : vector<64x128xf32>
    %25 = arith.mulf %24, %17 : vector<64x128xf32>
    %cst_11 = arith.constant -0.284496725 : f32
    %26 = vector.broadcast %cst_11 : f32 to vector<64x128xf32>
    %27 = arith.addf %25, %26 : vector<64x128xf32>
    %28 = arith.mulf %27, %17 : vector<64x128xf32>
    %cst_12 = arith.constant 0.254829586 : f32
    %29 = vector.broadcast %cst_12 : f32 to vector<64x128xf32>
    %30 = arith.addf %28, %29 : vector<64x128xf32>
    %31 = arith.mulf %30, %17 : vector<64x128xf32>
    %cst_13 = arith.constant 0.000000e+00 : f32
    %32 = vector.broadcast %cst_13 : f32 to vector<64x128xf32>
    %33 = arith.subf %32, %11 : vector<64x128xf32>
    %34 = arith.mulf %33, %11 : vector<64x128xf32>
    %35 = math.exp %34 : vector<64x128xf32>
    %36 = arith.mulf %31, %35 : vector<64x128xf32>
    %cst_14 = arith.constant 1.000000e+00 : f32
    %37 = vector.broadcast %cst_14 : f32 to vector<64x128xf32>
    %38 = arith.subf %37, %36 : vector<64x128xf32>
    %39 = arith.mulf %10, %38 : vector<64x128xf32>
    %cst_15 = arith.constant 1.000000e+00 : f32
    %40 = vector.broadcast %cst_15 : f32 to vector<64x128xf32>
    %41 = arith.addf %40, %39 : vector<64x128xf32>
    %42 = arith.mulf %3, %41 : vector<64x128xf32>
    %43 = arith.truncf %42 : vector<64x128xf32> to vector<64x128xbf16>
    %c0_16 = arith.constant 0 : index
    %c0_17 = arith.constant 0 : index
    %44 = vector.load %arg2[%c0_16, %c0_17] : memref<128x32xbf16, #tpu.memory_space<vmem>>, vector<128x32xbf16>
    %cst_18 = arith.constant dense<0.000000e+00> : vector<64x32xf32>
    %45 = tpu.matmul %43, %44, %cst_18 {dimension_numbers = #tpu.dot_dimension_numbers<[1], [0], [0], [1], [0, 0, 1, 1], [], []>} : vector<64x128xbf16>, vector<128x32xbf16>, vector<64x32xf32> -> vector<64x32xf32>
    %c0_19 = arith.constant 0 : index
    %c0_20 = arith.constant 0 : index
    %46 = vector.load %arg4[%c0_19, %c0_20] : memref<64x32xf32, #tpu.memory_space<vmem>>, vector<64x32xf32>
    %47 = arith.addf %46, %45 : vector<64x32xf32>
    %c0_21 = arith.constant 0 : index
    %c0_22 = arith.constant 0 : index
    %48 = vector.load %arg3[%c0_21, %c0_22] : memref<1x32xf32, #tpu.memory_space<vmem>>, vector<1x32xf32>
    %49 = vector.broadcast %48 : vector<1x32xf32> to vector<64x32xf32>
    %50 = arith.addf %47, %49 : vector<64x32xf32>
    %c0_23 = arith.constant 0 : index
    %c0_24 = arith.constant 0 : index
    %51 = vector.load %arg5[%c0_23, %c0_24] : memref<64x32xf32, #tpu.memory_space<vmem>>, vector<64x32xf32>
    tpu.vector_store %arg5[%c0_23, %c0_24], %50 {strides = array<i32>} : memref<64x32xf32, #tpu.memory_space<vmem>>, vector<64x32xf32>,
    return
  }
  func.func @transform_0(%arg0: i32) -> (i32, i32) {
    %c0_i32 = arith.constant 0 : i32
    %c0_i32_0 = arith.constant 0 : i32
    return %arg0, %c0_i32 : i32, i32
  }
  func.func @transform_1(%arg0: i32) -> (i32, i32) {
    %c0_i32 = arith.constant 0 : i32
    %c0_i32_0 = arith.constant 0 : i32
    %c0_i32_1 = arith.constant 0 : i32
    return %c0_i32, %c0_i32_0 : i32, i32
  }
  func.func @transform_2(%arg0: i32) -> (i32, i32) {
    %c0_i32 = arith.constant 0 : i32
    %c0_i32_0 = arith.constant 0 : i32
    %c0_i32_1 = arith.constant 0 : i32
    return %c0_i32, %c0_i32_0 : i32, i32
  }
  func.func @transform_3(%arg0: i32) -> (i32, i32) {
    %c0_i32 = arith.constant 0 : i32
    %c0_i32_0 = arith.constant 0 : i32
    return %arg0, %c0_i32 : i32, i32
  }
  func.func @transform_4(%arg0: i32) -> (i32, i32) {
    %c0_i32 = arith.constant 0 : i32
    %c0_i32_0 = arith.constant 0 : i32
    return %arg0, %c0_i32 : i32, i32
  }
}

module attributes {stable_mosaic.version = 11 : i64} {
  func.func @_ln_linear_kernel(%arg0: i32, %arg1: memref<64x32xf32, #tpu.memory_space<vmem>>, %arg2: memref<1x32xf32, #tpu.memory_space<vmem>>, %arg3: memref<1x32xf32, #tpu.memory_space<vmem>>, %arg4: memref<32x96xbf16, #tpu.memory_space<vmem>>, %arg5: memref<1x96xf32, #tpu.memory_space<vmem>>, %arg6: memref<64x96xbf16, #tpu.memory_space<vmem>>) attributes {dimension_semantics = [#tpu.dimension_semantics<parallel>], iteration_bounds = array<i64: 2>, scalar_prefetch = 0 : i64, scratch_operands = 0 : i64, tpu.core_type = #tpu.core_type<tc>, window_params = [{transform_indices = @transform_0, window_bounds = array<i64: 64, 32>}, {pipeline_mode = #tpu.pipeline_mode<synchronous>, transform_indices = @transform_1, window_bounds = array<i64: 1, 32>}, {pipeline_mode = #tpu.pipeline_mode<synchronous>, transform_indices = @transform_2, window_bounds = array<i64: 1, 32>}, {pipeline_mode = #tpu.pipeline_mode<synchronous>, transform_indices = @transform_3, window_bounds = array<i64: 32, 96>}, {pipeline_mode = #tpu.pipeline_mode<synchronous>, transform_indices = @transform_4, window_bounds = array<i64: 1, 96>}, {transform_indices = @transform_5, window_bounds = array<i64: 64, 96>}]} {
    %c0 = arith.constant 0 : index
    %c0_0 = arith.constant 0 : index
    %0 = vector.load %arg1[%c0, %c0_0] : memref<64x32xf32, #tpu.memory_space<vmem>>, vector<64x32xf32>
    %cst = arith.constant dense<0.000000e+00> : vector<64xf32>
    %1 = vector.multi_reduction <add>, %0, %cst [1] : vector<64x32xf32> to vector<64xf32>
    %2 = vector.shape_cast %1 : vector<64xf32> to vector<64x1xf32>
    %cst_1 = arith.constant 3.200000e+01 : f32
    %3 = vector.broadcast %cst_1 : f32 to vector<64x1xf32>
    %4 = arith.divf %2, %3 : vector<64x1xf32>
    %5 = vector.broadcast %4 : vector<64x1xf32> to vector<64x32xf32>
    %6 = arith.subf %0, %5 : vector<64x32xf32>
    %7 = arith.mulf %6, %6 : vector<64x32xf32>
    %cst_2 = arith.constant dense<0.000000e+00> : vector<64xf32>
    %8 = vector.multi_reduction <add>, %7, %cst_2 [1] : vector<64x32xf32> to vector<64xf32>
    %9 = vector.shape_cast %8 : vector<64xf32> to vector<64x1xf32>
    %cst_3 = arith.constant 3.200000e+01 : f32
    %10 = vector.broadcast %cst_3 : f32 to vector<64x1xf32>
    %11 = arith.divf %9, %10 : vector<64x1xf32>
    %cst_4 = arith.constant 9.99999974E-6 : f32
    %12 = vector.broadcast %cst_4 : f32 to vector<64x1xf32>
    %13 = arith.addf %11, %12 : vector<64x1xf32>
    %14 = math.rsqrt %13 : vector<64x1xf32>
    %15 = vector.broadcast %14 : vector<64x1xf32> to vector<64x32xf32>
    %16 = arith.mulf %6, %15 : vector<64x32xf32>
    %c0_5 = arith.constant 0 : index
    %c0_6 = arith.constant 0 : index
    %17 = vector.load %arg2[%c0_5, %c0_6] : memref<1x32xf32, #tpu.memory_space<vmem>>, vector<1x32xf32>
    %18 = vector.broadcast %17 : vector<1x32xf32> to vector<64x32xf32>
    %19 = arith.mulf %16, %18 : vector<64x32xf32>
    %c0_7 = arith.constant 0 : index
    %c0_8 = arith.constant 0 : index
    %20 = vector.load %arg3[%c0_7, %c0_8] : memref<1x32xf32, #tpu.memory_space<vmem>>, vector<1x32xf32>
    %21 = vector.broadcast %20 : vector<1x32xf32> to vector<64x32xf32>
    %22 = arith.addf %19, %21 : vector<64x32xf32>
    %23 = arith.truncf %22 : vector<64x32xf32> to vector<64x32xbf16>
    %c0_9 = arith.constant 0 : index
    %c0_10 = arith.constant 0 : index
    %24 = vector.load %arg4[%c0_9, %c0_10] : memref<32x96xbf16, #tpu.memory_space<vmem>>, vector<32x96xbf16>
    %cst_11 = arith.constant dense<0.000000e+00> : vector<64x96xf32>
    %25 = tpu.matmul %23, %24, %cst_11 {dimension_numbers = #tpu.dot_dimension_numbers<[1], [0], [0], [1], [0, 0, 1, 1], [], []>} : vector<64x32xbf16>, vector<32x96xbf16>, vector<64x96xf32> -> vector<64x96xf32>
    %c0_12 = arith.constant 0 : index
    %c0_13 = arith.constant 0 : index
    %26 = vector.load %arg5[%c0_12, %c0_13] : memref<1x96xf32, #tpu.memory_space<vmem>>, vector<1x96xf32>
    %27 = vector.broadcast %26 : vector<1x96xf32> to vector<64x96xf32>
    %28 = arith.addf %25, %27 : vector<64x96xf32>
    %29 = arith.truncf %28 : vector<64x96xf32> to vector<64x96xbf16>
    %c0_14 = arith.constant 0 : index
    %c0_15 = arith.constant 0 : index
    %30 = vector.load %arg6[%c0_14, %c0_15] : memref<64x96xbf16, #tpu.memory_space<vmem>>, vector<64x96xbf16>
    tpu.vector_store %arg6[%c0_14, %c0_15], %29 {strides = array<i32>} : memref<64x96xbf16, #tpu.memory_space<vmem>>, vector<64x96xbf16>,
    return
  }
  func.func @transform_0(%arg0: i32) -> (i32, i32) {
    %c0_i32 = arith.constant 0 : i32
    %c0_i32_0 = arith.constant 0 : i32
    return %arg0, %c0_i32 : i32, i32
  }
  func.func @transform_1(%arg0: i32) -> (i32, i32) {
    %c0_i32 = arith.constant 0 : i32
    %c0_i32_0 = arith.constant 0 : i32
    %c0_i32_1 = arith.constant 0 : i32
    return %c0_i32, %c0_i32_0 : i32, i32
  }
  func.func @transform_2(%arg0: i32) -> (i32, i32) {
    %c0_i32 = arith.constant 0 : i32
    %c0_i32_0 = arith.constant 0 : i32
    %c0_i32_1 = arith.constant 0 : i32
    return %c0_i32, %c0_i32_0 : i32, i32
  }
  func.func @transform_3(%arg0: i32) -> (i32, i32) {
    %c0_i32 = arith.constant 0 : i32
    %c0_i32_0 = arith.constant 0 : i32
    %c0_i32_1 = arith.constant 0 : i32
    return %c0_i32, %c0_i32_0 : i32, i32
  }
  func.func @transform_4(%arg0: i32) -> (i32, i32) {
    %c0_i32 = arith.constant 0 : i32
    %c0_i32_0 = arith.constant 0 : i32
    %c0_i32_1 = arith.constant 0 : i32
    return %c0_i32, %c0_i32_0 : i32, i32
  }
  func.func @transform_5(%arg0: i32) -> (i32, i32) {
    %c0_i32 = arith.constant 0 : i32
    %c0_i32_0 = arith.constant 0 : i32
    return %arg0, %c0_i32 : i32, i32
  }
}

module attributes {stable_mosaic.version = 11 : i64} {
  func.func @_ln_kernel(%arg0: i32, %arg1: memref<64x32xf32, #tpu.memory_space<vmem>>, %arg2: memref<1x32xf32, #tpu.memory_space<vmem>>, %arg3: memref<1x32xf32, #tpu.memory_space<vmem>>, %arg4: memref<64x32xf32, #tpu.memory_space<vmem>>) attributes {dimension_semantics = [#tpu.dimension_semantics<parallel>], iteration_bounds = array<i64: 2>, scalar_prefetch = 0 : i64, scratch_operands = 0 : i64, tpu.core_type = #tpu.core_type<tc>, window_params = [{transform_indices = @transform_0, window_bounds = array<i64: 64, 32>}, {pipeline_mode = #tpu.pipeline_mode<synchronous>, transform_indices = @transform_1, window_bounds = array<i64: 1, 32>}, {pipeline_mode = #tpu.pipeline_mode<synchronous>, transform_indices = @transform_2, window_bounds = array<i64: 1, 32>}, {transform_indices = @transform_3, window_bounds = array<i64: 64, 32>}]} {
    %c0 = arith.constant 0 : index
    %c0_0 = arith.constant 0 : index
    %0 = vector.load %arg1[%c0, %c0_0] : memref<64x32xf32, #tpu.memory_space<vmem>>, vector<64x32xf32>
    %cst = arith.constant dense<0.000000e+00> : vector<64xf32>
    %1 = vector.multi_reduction <add>, %0, %cst [1] : vector<64x32xf32> to vector<64xf32>
    %2 = vector.shape_cast %1 : vector<64xf32> to vector<64x1xf32>
    %cst_1 = arith.constant 3.200000e+01 : f32
    %3 = vector.broadcast %cst_1 : f32 to vector<64x1xf32>
    %4 = arith.divf %2, %3 : vector<64x1xf32>
    %5 = vector.broadcast %4 : vector<64x1xf32> to vector<64x32xf32>
    %6 = arith.subf %0, %5 : vector<64x32xf32>
    %7 = arith.mulf %6, %6 : vector<64x32xf32>
    %cst_2 = arith.constant dense<0.000000e+00> : vector<64xf32>
    %8 = vector.multi_reduction <add>, %7, %cst_2 [1] : vector<64x32xf32> to vector<64xf32>
    %9 = vector.shape_cast %8 : vector<64xf32> to vector<64x1xf32>
    %cst_3 = arith.constant 3.200000e+01 : f32
    %10 = vector.broadcast %cst_3 : f32 to vector<64x1xf32>
    %11 = arith.divf %9, %10 : vector<64x1xf32>
    %cst_4 = arith.constant 9.99999974E-6 : f32
    %12 = vector.broadcast %cst_4 : f32 to vector<64x1xf32>
    %13 = arith.addf %11, %12 : vector<64x1xf32>
    %14 = math.rsqrt %13 : vector<64x1xf32>
    %15 = vector.broadcast %14 : vector<64x1xf32> to vector<64x32xf32>
    %16 = arith.mulf %6, %15 : vector<64x32xf32>
    %c0_5 = arith.constant 0 : index
    %c0_6 = arith.constant 0 : index
    %17 = vector.load %arg2[%c0_5, %c0_6] : memref<1x32xf32, #tpu.memory_space<vmem>>, vector<1x32xf32>
    %18 = vector.broadcast %17 : vector<1x32xf32> to vector<64x32xf32>
    %19 = arith.mulf %16, %18 : vector<64x32xf32>
    %c0_7 = arith.constant 0 : index
    %c0_8 = arith.constant 0 : index
    %20 = vector.load %arg3[%c0_7, %c0_8] : memref<1x32xf32, #tpu.memory_space<vmem>>, vector<1x32xf32>
    %21 = vector.broadcast %20 : vector<1x32xf32> to vector<64x32xf32>
    %22 = arith.addf %19, %21 : vector<64x32xf32>
    %c0_9 = arith.constant 0 : index
    %c0_10 = arith.constant 0 : index
    %23 = vector.load %arg4[%c0_9, %c0_10] : memref<64x32xf32, #tpu.memory_space<vmem>>, vector<64x32xf32>
    tpu.vector_store %arg4[%c0_9, %c0_10], %22 {strides = array<i32>} : memref<64x32xf32, #tpu.memory_space<vmem>>, vector<64x32xf32>,
    return
  }
  func.func @transform_0(%arg0: i32) -> (i32, i32) {
    %c0_i32 = arith.constant 0 : i32
    %c0_i32_0 = arith.constant 0 : i32
    return %arg0, %c0_i32 : i32, i32
  }
  func.func @transform_1(%arg0: i32) -> (i32, i32) {
    %c0_i32 = arith.constant 0 : i32
    %c0_i32_0 = arith.constant 0 : i32
    %c0_i32_1 = arith.constant 0 : i32
    return %c0_i32, %c0_i32_0 : i32, i32
  }
  func.func @transform_2(%arg0: i32) -> (i32, i32) {
    %c0_i32 = arith.constant 0 : i32
    %c0_i32_0 = arith.constant 0 : i32
    %c0_i32_1 = arith.constant 0 : i32
    return %c0_i32, %c0_i32_0 : i32, i32
  }
  func.func @transform_3(%arg0: i32) -> (i32, i32) {
    %c0_i32 = arith.constant 0 : i32
    %c0_i32_0 = arith.constant 0 : i32
    return %arg0, %c0_i32 : i32, i32
  }
}

</mosaic_0001>

<llo_original>
// kernel: model_forward.11
$region0: #{model_forward.11}
  #allocation0 [shape = 'u32[]', space=smem, size = 0x4, offset = 0x4, fixed_abs, tag = 'smem constant byte address 0x4 - core index']
  #allocation1 [shape = 'u32[72,128]{1,0:T(1,128)}', space=vmem, size = 0x9000, scoped, tag = 'internal scratch']
  %s0 = inlined_call_operand.hbm [shape: f32[128,32], index: 0, kind: input, shape index: {}]
  %s1 = inlined_call_operand.vmem [shape: f32[1,32], index: 1, kind: input, shape index: {}]
  %s2 = inlined_call_operand.vmem [shape: f32[1,32], index: 2, kind: input, shape index: {}]
  %s3 = inlined_call_operand.vmem [shape: bf16[32,96], index: 3, kind: input, shape index: {}]
  %s4 = inlined_call_operand.vmem [shape: f32[1,96], index: 4, kind: input, shape index: {}]
  %s5 = inlined_call_operand.vmem [shape: bf16[128,96], index: 5, kind: output, shape index: {}]
  %s6 = sld [smem:[#allocation0]]
  $region57: #{model_forward.11} parent=0
    _
  %s8 = ssub.s32 1, %s6
  %s9 = scalar_select 0, %s8, %s6
  $region1: #{model_forward.11} parent=0
    #allocation2 [shape = 'u8[65536]{0}', space=vmem, size = 0x10000, scoped, tag = 'input window, operand 0']
    #allocation3 [shape = 's32[2]{0}', space=sflag, size = 0x8, scoped, tag = 'scoped memory for model_forward.11']
    %10 = vsyncpa [#allocation3], 0
    %s11 = scalar_lea.sflag [#allocation3], 1
    %12 = vsyncpa %s11, 0
    loop: start=0, step=1, limit=4
    $region2: #{model_forward.11} parent=1 // loop_pre_header
      _
    $region3: #{model_forward.11} parent=1 // loop_header
      %s14 = sphi 0, %s18
      %p15 = scmp.ge.s32.totalorder %s14, 4
      %s24 = sphi 0, %s26
      %s27 = sphi 0, %s24
      %s28 = sphi 0, %s27
      %s44 = sphi 0, %s28
      %s48 = sphi 0, %s48
      %s50 = sphi 0, %s48
      %s51 = sphi 0, %s50
      %s65 = sphi 0, %s51
      %s69 = sphi 0, %s69
      %s71 = sphi 0, %s69
      %s72 = sphi 0, %s71
      %s86 = sphi 0, %s72
      %s90 = sphi 0, %s90
      %s92 = sphi 0, %s90
      %s93 = sphi 0, %s92
      %s107 = sphi 0, %s93
      %s111 = sphi 0, %s111
      %s113 = sphi 0, %s111
      %s114 = sphi 0, %s113
      %s128 = sphi 0, %s114
      %s134 = sphi 0, %s136
      %s137 = sphi 0, %s134
      %s138 = sphi 0, %s137
      %s154 = sphi 0, %s138
    $region4: #{model_forward.11} parent=1 // loop_header_branch
      %17 = sbr.rel (%p15) target = $region8
    $region5: #{model_forward.11} parent=1 // loop_body
      %s19 = ssub.s32 %s14, 1
      %s20 = ssub.s32 %s14, 2
      %s21 = sadd.s32 %s14, 1
      %s22 = ssub.s32 %s14, %s21
      %p23 = scmp.eq.s32.totalorder %s22, 0
      %s25 = sadd.s32 %s24, 1
      %s26 = scalar_select %p23, %s24, %s25
      %p29 = pneg %p23
      %p30 = scmp.eq.s32.totalorder %s14, 1
      %p31 = por %p29, %p30
      %p32 = scmp.ne.s32.totalorder %s24, %s27
      %p33 = scmp.eq.s32.totalorder %s14, 0
      %p34 = por %p32, %p33
      %p35 = scmp.ne.s32.totalorder %s24, %s27
      %p36 = scmp.eq.s32.totalorder %s19, 1
      %p37 = por %p35, %p36
      %p38 = scmp.ne.s32.totalorder %s27, %s28
      %p39 = scmp.eq.s32.totalorder %s19, 0
      %p40 = por %p38, %p39
      %p41 = scmp.ne.s32.totalorder %s27, %s28
      %p42 = scmp.eq.s32.totalorder %s20, 1
      %p43 = por %p41, %p42
      %p45 = scmp.ne.s32.totalorder %s28, %s44
      %p46 = scmp.eq.s32.totalorder %s20, 0
      %p47 = por %p45, %p46
      %s49 = sadd.s32 %s48, 1
      %p52 = scmp.eq.s32.totalorder %s14, 1
      %p53 = scmp.ne.s32.totalorder %s48, %s50
      %p54 = scmp.eq.s32.totalorder %s14, 0
      %p55 = por %p53, %p54
      %p56 = scmp.ne.s32.totalorder %s48, %s50
      %p57 = scmp.eq.s32.totalorder %s19, 1
      %p58 = por %p56, %p57
      %p59 = scmp.ne.s32.totalorder %s50, %s51
      %p60 = scmp.eq.s32.totalorder %s19, 0
      %p61 = por %p59, %p60
      %p62 = scmp.ne.s32.totalorder %s50, %s51
      %p63 = scmp.eq.s32.totalorder %s20, 1
      %p64 = por %p62, %p63
      %p66 = scmp.ne.s32.totalorder %s51, %s65
      %p67 = scmp.eq.s32.totalorder %s20, 0
      %p68 = por %p66, %p67
      %s70 = sadd.s32 %s69, 1
      %p73 = scmp.eq.s32.totalorder %s14, 1
      %p74 = scmp.ne.s32.totalorder %s69, %s71
      %p75 = scmp.eq.s32.totalorder %s14, 0
      %p76 = por %p74, %p75
      %p77 = scmp.ne.s32.totalorder %s69, %s71
      %p78 = scmp.eq.s32.totalorder %s19, 1
      %p79 = por %p77, %p78
      %p80 = scmp.ne.s32.totalorder %s71, %s72
      %p81 = scmp.eq.s32.totalorder %s19, 0
      %p82 = por %p80, %p81
      %p83 = scmp.ne.s32.totalorder %s71, %s72
      %p84 = scmp.eq.s32.totalorder %s20, 1
      %p85 = por %p83, %p84
      %p87 = scmp.ne.s32.totalorder %s72, %s86
      %p88 = scmp.eq.s32.totalorder %s20, 0
      %p89 = por %p87, %p88
      %s91 = sadd.s32 %s90, 1
      %p94 = scmp.eq.s32.totalorder %s14, 1
      %p95 = scmp.ne.s32.totalorder %s90, %s92
      %p96 = scmp.eq.s32.totalorder %s14, 0
      %p97 = por %p95, %p96
      %p98 = scmp.ne.s32.totalorder %s90, %s92
      %p99 = scmp.eq.s32.totalorder %s19, 1
      %p100 = por %p98, %p99
      %p101 = scmp.ne.s32.totalorder %s92, %s93
      %p102 = scmp.eq.s32.totalorder %s19, 0
      %p103 = por %p101, %p102
      %p104 = scmp.ne.s32.totalorder %s92, %s93
      %p105 = scmp.eq.s32.totalorder %s20, 1
      %p106 = por %p104, %p105
      %p108 = scmp.ne.s32.totalorder %s93, %s107
      %p109 = scmp.eq.s32.totalorder %s20, 0
      %p110 = por %p108, %p109
      %s112 = sadd.s32 %s111, 1
      %p115 = scmp.eq.s32.totalorder %s14, 1
      %p116 = scmp.ne.s32.totalorder %s111, %s113
      %p117 = scmp.eq.s32.totalorder %s14, 0
      %p118 = por %p116, %p117
      %p119 = scmp.ne.s32.totalorder %s111, %s113
      %p120 = scmp.eq.s32.totalorder %s19, 1
      %p121 = por %p119, %p120
      %p122 = scmp.ne.s32.totalorder %s113, %s114
      %p123 = scmp.eq.s32.totalorder %s19, 0
      %p124 = por %p122, %p123
      %p125 = scmp.ne.s32.totalorder %s113, %s114
      %p126 = scmp.eq.s32.totalorder %s20, 1
      %p127 = por %p125, %p126
      %p129 = scmp.ne.s32.totalorder %s114, %s128
      %p130 = scmp.eq.s32.totalorder %s20, 0
      %p131 = por %p129, %p130
      %s132 = ssub.s32 %s14, %s21
      %p133 = scmp.eq.s32.totalorder %s132, 0
      %s135 = sadd.s32 %s134, 1
      %s136 = scalar_select %p133, %s134, %s135
      %p139 = pneg %p133
      %p140 = scmp.eq.s32.totalorder %s14, 1
      %p141 = por %p139, %p140
      %p142 = scmp.ne.s32.totalorder %s134, %s137
      %p143 = scmp.eq.s32.totalorder %s14, 0
      %p144 = por %p142, %p143
      %p145 = scmp.ne.s32.totalorder %s134, %s137
      %p146 = scmp.eq.s32.totalorder %s19, 1
      %p147 = por %p145, %p146
      %p148 = scmp.ne.s32.totalorder %s137, %s138
      %p149 = scmp.eq.s32.totalorder %s19, 0
      %p150 = por %p148, %p149
      %p151 = scmp.ne.s32.totalorder %s137, %s138
      %p152 = scmp.eq.s32.totalorder %s20, 1
      %p153 = por %p151, %p152
      %p155 = scmp.ne.s32.totalorder %s138, %s154
      %p156 = scmp.eq.s32.totalorder %s20, 0
      %p157 = por %p155, %p156
      %p158 = scmp.le.s32.totalorder 1, %s14
      %p159 = scmp.lt.s32.totalorder %s14, 3
      %p160 = pnand %p158, %p159
      %p161 = pneg %p160
      // Predicated region
      $region9: #{model_forward.11} parent=5 // pred_check
        _
      $region10: #{model_forward.11} parent=5 // pred_check_branch
        %163 = sbr.rel (%p160) target = $region12
      $region11: #{model_forward.11} parent=5 // pred_region
        %s164 = ssub.s32 %s14, 1
        // Predicated region
        $region13: #{model_forward.11} parent=11 // pred_check
          %p165 = pneg %p61
        $region14: #{model_forward.11} parent=11 // pred_check_branch
          %167 = sbr.rel (%p165) target = $region16
        $region15: #{model_forward.11} parent=11 // pred_region
          _
        $region16: #{model_forward.11} parent=11 // pred_fallthru
          _
        // Predicated region
        $region17: #{model_forward.11} parent=11 // pred_check
          %p168 = pneg %p82
        $region18: #{model_forward.11} parent=11 // pred_check_branch
          %170 = sbr.rel (%p168) target = $region20
        $region19: #{model_forward.11} parent=11 // pred_region
          _
        $region20: #{model_forward.11} parent=11 // pred_fallthru
          _
        // Predicated region
        $region21: #{model_forward.11} parent=11 // pred_check
          %p171 = pneg %p103
        $region22: #{model_forward.11} parent=11 // pred_check_branch
          %173 = sbr.rel (%p171) target = $region24
        $region23: #{model_forward.11} parent=11 // pred_region
          _
        $region24: #{model_forward.11} parent=11 // pred_fallthru
          _
        // Predicated region
        $region25: #{model_forward.11} parent=11 // pred_check
          %p174 = pneg %p124
        $region26: #{model_forward.11} parent=11 // pred_check_branch
          %176 = sbr.rel (%p174) target = $region28
        $region27: #{model_forward.11} parent=11 // pred_region
          _
        $region28: #{model_forward.11} parent=11 // pred_fallthru
          _
      $region12: #{model_forward.11} parent=5 // pred_fallthru
        _
      %p177 = scmp.lt.s32.totalorder %s14, 2
      // Predicated region
      $region29: #{model_forward.11} parent=5 // pred_check
        %p178 = pneg %p177
      $region30: #{model_forward.11} parent=5 // pred_check_branch
        %180 = sbr.rel (%p178) target = $region32
      $region31: #{model_forward.11} parent=5 // pred_region
        // Predicated region
        $region33: #{model_forward.11} parent=31 // pred_check
          %p181 = pneg %p34
        $region34: #{model_forward.11} parent=31 // pred_check_branch
          %183 = sbr.rel (%p181) target = $region36
        $region35: #{model_forward.11} parent=31 // pred_region
          %s184 = sand.u32 %s24, 1
          %s185 = scalar_lea.sflag [#allocation3], %s184
          %s186 = sand.u32 %s24, 1
          %s187 = smul.addr %s186, 64
          %s188 = scalar_lea.vmem [#allocation2], %s187
          %s189 = smul.u32 8, %s14
          %191 = vsyncadd %s185, 0
          %s192 = smul.addr %s189, 8
          %s193 = scalar_lea.hbm %s0, %s192
          %s194 = sshll.u32 %s193, 4
          %s195 = int_to_ptr.hbm [resolvable:$true] %s194
          %s196 = sshll.u32 %s188, 4
          %s197 = int_to_ptr.vmem [resolvable:$true] %s196
          %202 = dma.hbm_to_vmem [thread:$0]  %s195, 1024, %s197, %s185, 128, 128, 8
        $region36: #{model_forward.11} parent=31 // pred_fallthru
          _
      $region32: #{model_forward.11} parent=5 // pred_fallthru
        _
      %p203 = scmp.le.s32.totalorder 1, %s14
      %p204 = scmp.lt.s32.totalorder %s14, 3
      %p205 = pnand %p203, %p204
      %p206 = pneg %p205
      // Predicated region
      $region37: #{model_forward.11} parent=5 // pred_check
        _
      $region38: #{model_forward.11} parent=5 // pred_check_branch
        %208 = sbr.rel (%p205) target = $region40
      $region39: #{model_forward.11} parent=5 // pred_region
        %s209 = ssub.s32 %s14, 1
        %s210 = sand.u32 %s27, 1
        %s211 = scalar_lea.sflag [#allocation3], %s210
        %s212 = sand.u32 %s27, 1
        %s213 = smul.addr %s212, 64
        %s214 = scalar_lea.vmem [#allocation2], %s213
        // Predicated region
        $region41: #{model_forward.11} parent=39 // pred_check
          %p215 = pneg %p40
        $region42: #{model_forward.11} parent=39 // pred_check_branch
          %217 = sbr.rel (%p215) target = $region44
        $region43: #{model_forward.11} parent=39 // pred_region
          %219 = dma.done %s211, 1024
        $region44: #{model_forward.11} parent=39 // pred_fallthru
          _
        %s220 = sand.u32 %s27, 1
        %s221 = scalar_lea.sflag [#allocation3], %s220
        %s222 = sand.u32 %s27, 1
        %s223 = smul.addr %s222, 64
        %s224 = scalar_lea.vmem [#allocation2], %s223
        %p225 = pneg %p40
        %p226 = pneg %p37
        %p227 = pneg %p61
        %p228 = pneg %p58
        %p229 = pneg %p82
        %p230 = pneg %p79
        %p231 = pneg %p103
        %p232 = pneg %p100
        %p233 = pneg %p124
        %p234 = pneg %p121
        %p235 = pneg %p150
        %p236 = pneg %p147
        %s237 = smul.u32 8, %s19
        %p238 = scmp.lt.s32.totalorder %s237, 15
        %s239 = scalar_select %p238, %s237, 15
        %s240 = smul.addr %s239, 4
        %s241 = scalar_lea.vmem %s5, %s240
        %s242 = smul.u32 8, %s19
        %s243 = smul.u32 8, %s19
        %p244 = scmp.lt.s32.totalorder %s243, 15
        %s245 = scalar_select %p244, %s243, 15
        %s246 = smul.addr %s245, 4
        %s247 = scalar_lea.vmem %s5, %s246
        %s248 = smul.u32 8, %s19
        %v250 = vld [vmem:[%s214] sm:$0xff]
        %v251 = vld [vmem:[%s214 + $0x8] sm:$0xff]
        %v252 = vld [vmem:[%s214 + $0x10] sm:$0xff]
        %v253 = vld [vmem:[%s214 + $0x18] sm:$0xff]
        %v254 = vld [vmem:[%s214 + $0x20] sm:$0xff]
        %v255 = vld [vmem:[%s214 + $0x28] sm:$0xff]
        %v256 = vld [vmem:[%s214 + $0x30] sm:$0xff]
        %v257 = vld [vmem:[%s214 + $0x38] sm:$0xff]
        %vm258 = vcmask 261120
        %v259 = vsel %vm258, %v250, 0.0
        %260 = vadd.xlane.f32.xlu0 %v259
        %v261 = vpop.xlane.xlu0 %260
        %v262 = vsel %vm258, %v251, 0.0
        %263 = vadd.xlane.f32.xlu0 %v262
        %v264 = vpop.xlane.xlu0 %263
        %v265 = vsel %vm258, %v252, 0.0
        %266 = vadd.xlane.f32.xlu0 %v265
        %v267 = vpop.xlane.xlu0 %266
        %v268 = vsel %vm258, %v253, 0.0
        %269 = vadd.xlane.f32.xlu0 %v268
        %v270 = vpop.xlane.xlu0 %269
        %v271 = vsel %vm258, %v254, 0.0
        %272 = vadd.xlane.f32.xlu0 %v271
        %v273 = vpop.xlane.xlu0 %272
        %v274 = vsel %vm258, %v255, 0.0
        %275 = vadd.xlane.f32.xlu0 %v274
        %v276 = vpop.xlane.xlu0 %275
        %v277 = vsel %vm258, %v256, 0.0
        %278 = vadd.xlane.f32.xlu0 %v277
        %v279 = vpop.xlane.xlu0 %278
        %v280 = vsel %vm258, %v257, 0.0
        %281 = vadd.xlane.f32.xlu0 %v280
        %v282 = vpop.xlane.xlu0 %281
        %v283 = vrcp.pop 32.0
        %v284 = vmul.f32 32.0, %v283
        %v285 = vsub.f32 1.0, %v284
        %v286 = vmul.f32 %v283, %v285
        %v287 = vadd.f32 %v283, %v286
        %vm288 = vweird.f32 %v283
        %v289 = vsel %vm288, %v283, %v287
        %v290 = vmul.f32 %v261, %v289
        %v291 = vmul.f32 %v264, %v289
        %v292 = vmul.f32 %v267, %v289
        %v293 = vmul.f32 %v270, %v289
        %v294 = vmul.f32 %v273, %v289
        %v295 = vmul.f32 %v276, %v289
        %v296 = vmul.f32 %v279, %v289
        %v297 = vmul.f32 %v282, %v289
        %v298 = vsub.f32 %v250, %v290
        %v299 = vsub.f32 %v251, %v291
        %v300 = vsub.f32 %v252, %v292
        %v301 = vsub.f32 %v253, %v293
        %v302 = vsub.f32 %v254, %v294
        %v303 = vsub.f32 %v255, %v295
        %v304 = vsub.f32 %v256, %v296
        %v305 = vsub.f32 %v257, %v297
        %v306 = vmul.f32 %v298, %v298
        %v307 = vmul.f32 %v299, %v299
        %v308 = vmul.f32 %v300, %v300
        %v309 = vmul.f32 %v301, %v301
        %v310 = vmul.f32 %v302, %v302
        %v311 = vmul.f32 %v303, %v303
        %v312 = vmul.f32 %v304, %v304
        %v313 = vmul.f32 %v305, %v305
        %v314 = vsel %vm258, %v306, 0.0
        %315 = vadd.xlane.f32.xlu0 %v314
        %v316 = vpop.xlane.xlu0 %315
        %v317 = vsel %vm258, %v307, 0.0
        %318 = vadd.xlane.f32.xlu0 %v317
        %v319 = vpop.xlane.xlu0 %318
        %v320 = vsel %vm258, %v308, 0.0
        %321 = vadd.xlane.f32.xlu0 %v320
        %v322 = vpop.xlane.xlu0 %321
        %v323 = vsel %vm258, %v309, 0.0
        %324 = vadd.xlane.f32.xlu0 %v323
        %v325 = vpop.xlane.xlu0 %324
        %v326 = vsel %vm258, %v310, 0.0
        %327 = vadd.xlane.f32.xlu0 %v326
        %v328 = vpop.xlane.xlu0 %327
        %v329 = vsel %vm258, %v311, 0.0
        %330 = vadd.xlane.f32.xlu0 %v329
        %v331 = vpop.xlane.xlu0 %330
        %v332 = vsel %vm258, %v312, 0.0
        %333 = vadd.xlane.f32.xlu0 %v332
        %v334 = vpop.xlane.xlu0 %333
        %v335 = vsel %vm258, %v313, 0.0
        %336 = vadd.xlane.f32.xlu0 %v335
        %v337 = vpop.xlane.xlu0 %336
        %v338 = vmul.f32 %v316, %v289
        %v339 = vmul.f32 %v319, %v289
        %v340 = vmul.f32 %v322, %v289
        %v341 = vmul.f32 %v325, %v289
        %v342 = vmul.f32 %v328, %v289
        %v343 = vmul.f32 %v331, %v289
        %v344 = vmul.f32 %v334, %v289
        %v345 = vmul.f32 %v337, %v289
        %v346 = vadd.f32 %v338, 1e-05
        %v347 = vadd.f32 %v339, 1e-05
        %v348 = vadd.f32 %v340, 1e-05
        %v349 = vadd.f32 %v341, 1e-05
        %v350 = vadd.f32 %v342, 1e-05
        %v351 = vadd.f32 %v343, 1e-05
        %v352 = vadd.f32 %v344, 1e-05
        %v353 = vadd.f32 %v345, 1e-05
        %v354 = vrsqrt.pop %v346
        %v355 = vmul.f32 %v354, %v346
        %v356 = vmul.f32 %v355, %v354
        %v357 = vmul.f32 0.5, %v356
        %v358 = vsub.f32 1.5, %v357
        %v359 = vmul.f32 %v354, %v358
        %vm360 = vweird.f32 %v346
        %vm361 = vweird.f32 %v354
        %vm362 = vmor %vm360, %vm361
        %v363 = vsel %vm362, %v354, %v359
        %v364 = vrsqrt.pop %v347
        %v365 = vmul.f32 %v364, %v347
        %v366 = vmul.f32 %v365, %v364
        %v367 = vmul.f32 0.5, %v366
        %v368 = vsub.f32 1.5, %v367
        %v369 = vmul.f32 %v364, %v368
        %vm370 = vweird.f32 %v347
        %vm371 = vweird.f32 %v364
        %vm372 = vmor %vm370, %vm371
        %v373 = vsel %vm372, %v364, %v369
        %v374 = vrsqrt.pop %v348
        %v375 = vmul.f32 %v374, %v348
        %v376 = vmul.f32 %v375, %v374
        %v377 = vmul.f32 0.5, %v376
        %v378 = vsub.f32 1.5, %v377
        %v379 = vmul.f32 %v374, %v378
        %vm380 = vweird.f32 %v348
        %vm381 = vweird.f32 %v374
        %vm382 = vmor %vm380, %vm381
        %v383 = vsel %vm382, %v374, %v379
        %v384 = vrsqrt.pop %v349
        %v385 = vmul.f32 %v384, %v349
        %v386 = vmul.f32 %v385, %v384
        %v387 = vmul.f32 0.5, %v386
        %v388 = vsub.f32 1.5, %v387
        %v389 = vmul.f32 %v384, %v388
        %vm390 = vweird.f32 %v349
        %vm391 = vweird.f32 %v384
        %vm392 = vmor %vm390, %vm391
        %v393 = vsel %vm392, %v384, %v389
        %v394 = vrsqrt.pop %v350
        %v395 = vmul.f32 %v394, %v350
        %v396 = vmul.f32 %v395, %v394
        %v397 = vmul.f32 0.5, %v396
        %v398 = vsub.f32 1.5, %v397
        %v399 = vmul.f32 %v394, %v398
        %vm400 = vweird.f32 %v350
        %vm401 = vweird.f32 %v394
        %vm402 = vmor %vm400, %vm401
        %v403 = vsel %vm402, %v394, %v399
        %v404 = vrsqrt.pop %v351
        %v405 = vmul.f32 %v404, %v351
        %v406 = vmul.f32 %v405, %v404
        %v407 = vmul.f32 0.5, %v406
        %v408 = vsub.f32 1.5, %v407
        %v409 = vmul.f32 %v404, %v408
        %vm410 = vweird.f32 %v351
        %vm411 = vweird.f32 %v404
        %vm412 = vmor %vm410, %vm411
        %v413 = vsel %vm412, %v404, %v409
        %v414 = vrsqrt.pop %v352
        %v415 = vmul.f32 %v414, %v352
        %v416 = vmul.f32 %v415, %v414
        %v417 = vmul.f32 0.5, %v416
        %v418 = vsub.f32 1.5, %v417
        %v419 = vmul.f32 %v414, %v418
        %vm420 = vweird.f32 %v352
        %vm421 = vweird.f32 %v414
        %vm422 = vmor %vm420, %vm421
        %v423 = vsel %vm422, %v414, %v419
        %v424 = vrsqrt.pop %v353
        %v425 = vmul.f32 %v424, %v353
        %v426 = vmul.f32 %v425, %v424
        %v427 = vmul.f32 0.5, %v426
        %v428 = vsub.f32 1.5, %v427
        %v429 = vmul.f32 %v424, %v428
        %vm430 = vweird.f32 %v353
        %vm431 = vweird.f32 %v424
        %vm432 = vmor %vm430, %vm431
        %v433 = vsel %vm432, %v424, %v429
        %v434 = vmul.f32 %v298, %v363
        %v435 = vmul.f32 %v299, %v373
        %v436 = vmul.f32 %v300, %v383
        %v437 = vmul.f32 %v301, %v393
        %v438 = vmul.f32 %v302, %v403
        %v439 = vmul.f32 %v303, %v413
        %v440 = vmul.f32 %v304, %v423
        %v441 = vmul.f32 %v305, %v433
        %v442 = vld [vmem:[%s1] sm:$0x1]
        %v444 = vperm.slane %v442, 0
        %v446 = vmul.f32 %v434, %v444
        %v447 = vmul.f32 %v435, %v444
        %v448 = vmul.f32 %v436, %v444
        %v449 = vmul.f32 %v437, %v444
        %v450 = vmul.f32 %v438, %v444
        %v451 = vmul.f32 %v439, %v444
        %v452 = vmul.f32 %v440, %v444
        %v453 = vmul.f32 %v441, %v444
        %v454 = vld [vmem:[%s2] sm:$0x1]
        %v456 = vperm.slane %v454, 0
        %v458 = vadd.f32 %v446, %v456
        %v459 = vadd.f32 %v447, %v456
        %v460 = vadd.f32 %v448, %v456
        %v461 = vadd.f32 %v449, %v456
        %v462 = vadd.f32 %v450, %v456
        %v463 = vadd.f32 %v451, %v456
        %v464 = vadd.f32 %v452, %v456
        %v465 = vadd.f32 %v453, %v456
        %v466 = vpack.c.bf16 %v459, %v458
        %v467 = vpack.c.bf16 %v461, %v460
        %v468 = vpack.c.bf16 %v463, %v462
        %v469 = vpack.c.bf16 %v465, %v464
        %v470 = vld [vmem:[%s3] sm:$0xf]
        %v471 = vld [vmem:[%s3 + $0x4] sm:$0xf]
        %v472 = vld [vmem:[%s3 + $0x8] sm:$0xf]
        %v473 = vld [vmem:[%s3 + $0xc] sm:$0xf]
        %v474 = vld [vmem:[%s4] sm:$0x1]
        %v476 = vperm.slane %v474, 0
        %v482 = vunpack.c.l.b16 %v470
        %v483 = vunpack.c.l.b16 %v471
        %v484 = vunpack.c.l.b16 %v472
        %v485 = vunpack.c.l.b16 %v473
        %v486 = vpack.c.b16 %v483, %v482
        %v487 = vpack.c.b16 %v485, %v484
        %v491 = vsel %vm258, %v466, 0
        %v494 = vsel %vm258, %v467, 0
        %v497 = vsel %vm258, %v468, 0
        %v500 = vsel %vm258, %v469, 0
        %502 = vmatpush.bf16.msra.mxu0 0
        %503 = vmatpush.bf16.msra.mxu0 0
        %504 = vmatpush.bf16.msra.mxu0 0
        %505 = vmatpush.bf16.msra.mxu0 0
        %506 = vmatpush.bf16.msra.mxu0 0
        %507 = vmatpush.bf16.msra.mxu0 0
        %508 = vmatpush.bf16.msra.mxu0 %v487
        %509 = vmatpush.bf16.msra.mxu0 %v486
        %510 = vmatmul.bf16.gmra.mxu0 %v491
        %v511 = vpop.f32.mrf.mxu0
        %v512 = vadd.f32 %v476, %v511
        %v513 = vpop.f32.mrf.mxu0
        %v514 = vadd.f32 %v476, %v513
        %515 = vmatmul.bf16.gmra.mxu0 %v494
        %v516 = vpop.f32.mrf.mxu0
        %v517 = vadd.f32 %v476, %v516
        %v518 = vpop.f32.mrf.mxu0
        %v519 = vadd.f32 %v476, %v518
        %520 = vmatmul.bf16.gmra.mxu0 %v497
        %v521 = vpop.f32.mrf.mxu0
        %v522 = vadd.f32 %v476, %v521
        %v523 = vpop.f32.mrf.mxu0
        %v524 = vadd.f32 %v476, %v523
        %525 = vmatmul.bf16.gmra.mxu0 %v500
        %v526 = vpop.f32.mrf.mxu0
        %v527 = vadd.f32 %v476, %v526
        %v528 = vpop.f32.mrf.mxu0
        %v529 = vadd.f32 %v476, %v528
        %530 = vdwg.mxu0
        %v531 = vpack.c.bf16 %v512, %v512
        %v532 = vpack.c.bf16 %v514, %v514
        %v533 = vpack.c.bf16 %v517, %v517
        %v534 = vpack.c.bf16 %v519, %v519
        %v535 = vpack.c.bf16 %v522, %v522
        %v536 = vpack.c.bf16 %v524, %v524
        %v537 = vpack.c.bf16 %v527, %v527
        %v538 = vpack.c.bf16 %v529, %v529
        %vm539 = vcmask 781312
        %540 = vst.msk [vmem:[%s247] sm:$0xf] %vm539, %v531
        %541 = vst.msk [vmem:[%s247 + $0x4] sm:$0xf] %vm539, %v532
        %542 = vst.msk [vmem:[%s247 + $0x8] sm:$0xf] %vm539, %v533
        %543 = vst.msk [vmem:[%s247 + $0xc] sm:$0xf] %vm539, %v534
        %544 = vst.msk [vmem:[%s247 + $0x10] sm:$0xf] %vm539, %v535
        %545 = vst.msk [vmem:[%s247 + $0x14] sm:$0xf] %vm539, %v536
        %546 = vst.msk [vmem:[%s247 + $0x18] sm:$0xf] %vm539, %v537
        %547 = vst.msk [vmem:[%s247 + $0x1c] sm:$0xf] %vm539, %v538
        %s548 = smul.u32 8, %s19
        %p549 = scmp.lt.s32.totalorder %s548, 15
        %s550 = scalar_select %p549, %s548, 15
        %s551 = smul.addr %s550, 4
        %s552 = scalar_lea.vmem %s5, %s551
        // Predicated region
        $region45: #{model_forward.11} parent=39 // pred_check
          %p553 = pneg %p147
        $region46: #{model_forward.11} parent=39 // pred_check_branch
          %555 = sbr.rel (%p553) target = $region48
        $region47: #{model_forward.11} parent=39 // pred_region
          %s556 = smul.u32 8, %s19
        $region48: #{model_forward.11} parent=39 // pred_fallthru
          _
      $region40: #{model_forward.11} parent=5 // pred_fallthru
        _
      %p557 = scmp.le.s32.totalorder 2, %s14
      // Predicated region
      $region49: #{model_forward.11} parent=5 // pred_check
        %p558 = pneg %p557
      $region50: #{model_forward.11} parent=5 // pred_check_branch
        %560 = sbr.rel (%p558) target = $region52
      $region51: #{model_forward.11} parent=5 // pred_region
        %s561 = ssub.s32 %s14, 2
        // Predicated region
        $region53: #{model_forward.11} parent=51 // pred_check
          %p562 = pneg %p153
        $region54: #{model_forward.11} parent=51 // pred_check_branch
          %564 = sbr.rel (%p562) target = $region56
        $region55: #{model_forward.11} parent=51 // pred_region
          %s565 = smul.u32 8, %s20
          %p566 = scmp.lt.s32.totalorder %s565, 15
          %s567 = scalar_select %p566, %s565, 15
          %s568 = smul.addr %s567, 4
          %s569 = scalar_lea.vmem %s5, %s568
        $region56: #{model_forward.11} parent=51 // pred_fallthru
          _
      $region52: #{model_forward.11} parent=5 // pred_fallthru
        _
    $region6: #{model_forward.11} parent=1 // loop_footer
      %s18 = sadd.s32 1, %s14
    $region7: #{model_forward.11} parent=1 // loop_footer_branch
      %13 = sbr.rel target = $region3
    $region8: #{model_forward.11} parent=1 // loop_exit
      _
    %570 = vsyncpa [#allocation3], 1
    %s571 = scalar_lea.sflag [#allocation3], 1
    %572 = vsyncpa %s571, 1

// kernel: model_forward.13
$region0: #{model_forward.13}
  #allocation0 [shape = 'u32[]', space=smem, size = 0x4, offset = 0x4, fixed_abs, tag = 'smem constant byte address 0x4 - core index']
  #allocation1 [shape = 'u32[72,128]{1,0:T(1,128)}', space=vmem, size = 0x9000, scoped, tag = 'internal scratch']
  %s0 = inlined_call_operand.vmem [shape: bf16[8,16,16], index: 0, kind: input, shape index: {}]
  %s1 = inlined_call_operand.vmem [shape: bf16[8,16,16], index: 1, kind: input, shape index: {}]
  %s2 = inlined_call_operand.vmem [shape: bf16[8,16,16], index: 2, kind: input, shape index: {}]
  %s3 = inlined_call_operand.vmem [shape: f32[2,4,16,16], index: 3, kind: input, shape index: {}]
  %s4 = inlined_call_operand.vmem [shape: bf16[8,16,16], index: 4, kind: output, shape index: {}]
  %s5 = sld [smem:[#allocation0]]
  $region49: #{model_forward.13} parent=0
    _
  %s7 = ssub.s32 1, %s5
  %s8 = scalar_select 0, %s7, %s5
  loop: start=0, step=1, limit=4
  $region2: #{model_forward.13} parent=0 // loop_pre_header
    _
  $region3: #{model_forward.13} parent=0 // loop_header
    %s10 = sphi 0, %s14
    %p11 = scmp.ge.s32.totalorder %s10, 4
    %s20 = sphi 0, %s22
    %s23 = sphi 0, %s20
    %s24 = sphi 0, %s23
    %s40 = sphi 0, %s24
    %s46 = sphi 0, %s48
    %s49 = sphi 0, %s46
    %s50 = sphi 0, %s49
    %s66 = sphi 0, %s50
    %s72 = sphi 0, %s74
    %s75 = sphi 0, %s72
    %s76 = sphi 0, %s75
    %s92 = sphi 0, %s76
    %s96 = sphi 0, %s96
    %s98 = sphi 0, %s96
    %s99 = sphi 0, %s98
    %s113 = sphi 0, %s99
    %s119 = sphi 0, %s121
    %s122 = sphi 0, %s119
    %s123 = sphi 0, %s122
    %s139 = sphi 0, %s123
  $region4: #{model_forward.13} parent=0 // loop_header_branch
    %13 = sbr.rel (%p11) target = $region8
  $region5: #{model_forward.13} parent=0 // loop_body
    %s15 = ssub.s32 %s10, 1
    %s16 = ssub.s32 %s10, 2
    %s17 = sadd.s32 %s10, 1
    %s18 = ssub.s32 %s10, %s17
    %p19 = scmp.eq.s32.totalorder %s18, 0
    %s21 = sadd.s32 %s20, 1
    %s22 = scalar_select %p19, %s20, %s21
    %p25 = pneg %p19
    %p26 = scmp.eq.s32.totalorder %s10, 1
    %p27 = por %p25, %p26
    %p28 = scmp.ne.s32.totalorder %s20, %s23
    %p29 = scmp.eq.s32.totalorder %s10, 0
    %p30 = por %p28, %p29
    %p31 = scmp.ne.s32.totalorder %s20, %s23
    %p32 = scmp.eq.s32.totalorder %s15, 1
    %p33 = por %p31, %p32
    %p34 = scmp.ne.s32.totalorder %s23, %s24
    %p35 = scmp.eq.s32.totalorder %s15, 0
    %p36 = por %p34, %p35
    %p37 = scmp.ne.s32.totalorder %s23, %s24
    %p38 = scmp.eq.s32.totalorder %s16, 1
    %p39 = por %p37, %p38
    %p41 = scmp.ne.s32.totalorder %s24, %s40
    %p42 = scmp.eq.s32.totalorder %s16, 0
    %p43 = por %p41, %p42
    %s44 = ssub.s32 %s10, %s17
    %p45 = scmp.eq.s32.totalorder %s44, 0
    %s47 = sadd.s32 %s46, 1
    %s48 = scalar_select %p45, %s46, %s47
    %p51 = pneg %p45
    %p52 = scmp.eq.s32.totalorder %s10, 1
    %p53 = por %p51, %p52
    %p54 = scmp.ne.s32.totalorder %s46, %s49
    %p55 = scmp.eq.s32.totalorder %s10, 0
    %p56 = por %p54, %p55
    %p57 = scmp.ne.s32.totalorder %s46, %s49
    %p58 = scmp.eq.s32.totalorder %s15, 1
    %p59 = por %p57, %p58
    %p60 = scmp.ne.s32.totalorder %s49, %s50
    %p61 = scmp.eq.s32.totalorder %s15, 0
    %p62 = por %p60, %p61
    %p63 = scmp.ne.s32.totalorder %s49, %s50
    %p64 = scmp.eq.s32.totalorder %s16, 1
    %p65 = por %p63, %p64
    %p67 = scmp.ne.s32.totalorder %s50, %s66
    %p68 = scmp.eq.s32.totalorder %s16, 0
    %p69 = por %p67, %p68
    %s70 = ssub.s32 %s10, %s17
    %p71 = scmp.eq.s32.totalorder %s70, 0
    %s73 = sadd.s32 %s72, 1
    %s74 = scalar_select %p71, %s72, %s73
    %p77 = pneg %p71
    %p78 = scmp.eq.s32.totalorder %s10, 1
    %p79 = por %p77, %p78
    %p80 = scmp.ne.s32.totalorder %s72, %s75
    %p81 = scmp.eq.s32.totalorder %s10, 0
    %p82 = por %p80, %p81
    %p83 = scmp.ne.s32.totalorder %s72, %s75
    %p84 = scmp.eq.s32.totalorder %s15, 1
    %p85 = por %p83, %p84
    %p86 = scmp.ne.s32.totalorder %s75, %s76
    %p87 = scmp.eq.s32.totalorder %s15, 0
    %p88 = por %p86, %p87
    %p89 = scmp.ne.s32.totalorder %s75, %s76
    %p90 = scmp.eq.s32.totalorder %s16, 1
    %p91 = por %p89, %p90
    %p93 = scmp.ne.s32.totalorder %s76, %s92
    %p94 = scmp.eq.s32.totalorder %s16, 0
    %p95 = por %p93, %p94
    %s97 = sadd.s32 %s96, 1
    %p100 = scmp.eq.s32.totalorder %s10, 1
    %p101 = scmp.ne.s32.totalorder %s96, %s98
    %p102 = scmp.eq.s32.totalorder %s10, 0
    %p103 = por %p101, %p102
    %p104 = scmp.ne.s32.totalorder %s96, %s98
    %p105 = scmp.eq.s32.totalorder %s15, 1
    %p106 = por %p104, %p105
    %p107 = scmp.ne.s32.totalorder %s98, %s99
    %p108 = scmp.eq.s32.totalorder %s15, 0
    %p109 = por %p107, %p108
    %p110 = scmp.ne.s32.totalorder %s98, %s99
    %p111 = scmp.eq.s32.totalorder %s16, 1
    %p112 = por %p110, %p111
    %p114 = scmp.ne.s32.totalorder %s99, %s113
    %p115 = scmp.eq.s32.totalorder %s16, 0
    %p116 = por %p114, %p115
    %s117 = ssub.s32 %s10, %s17
    %p118 = scmp.eq.s32.totalorder %s117, 0
    %s120 = sadd.s32 %s119, 1
    %s121 = scalar_select %p118, %s119, %s120
    %p124 = pneg %p118
    %p125 = scmp.eq.s32.totalorder %s10, 1
    %p126 = por %p124, %p125
    %p127 = scmp.ne.s32.totalorder %s119, %s122
    %p128 = scmp.eq.s32.totalorder %s10, 0
    %p129 = por %p127, %p128
    %p130 = scmp.ne.s32.totalorder %s119, %s122
    %p131 = scmp.eq.s32.totalorder %s15, 1
    %p132 = por %p130, %p131
    %p133 = scmp.ne.s32.totalorder %s122, %s123
    %p134 = scmp.eq.s32.totalorder %s15, 0
    %p135 = por %p133, %p134
    %p136 = scmp.ne.s32.totalorder %s122, %s123
    %p137 = scmp.eq.s32.totalorder %s16, 1
    %p138 = por %p136, %p137
    %p140 = scmp.ne.s32.totalorder %s123, %s139
    %p141 = scmp.eq.s32.totalorder %s16, 0
    %p142 = por %p140, %p141
    %p143 = scmp.le.s32.totalorder 1, %s10
    %p144 = scmp.lt.s32.totalorder %s10, 3
    %p145 = pnand %p143, %p144
    %p146 = pneg %p145
    // Predicated region
    $region9: #{model_forward.13} parent=5 // pred_check
      _
    $region10: #{model_forward.13} parent=5 // pred_check_branch
      %148 = sbr.rel (%p145) target = $region12
    $region11: #{model_forward.13} parent=5 // pred_region
      %s149 = ssub.s32 %s10, 1
      // Predicated region
      $region13: #{model_forward.13} parent=11 // pred_check
        %p150 = pneg %p109
      $region14: #{model_forward.13} parent=11 // pred_check_branch
        %152 = sbr.rel (%p150) target = $region16
      $region15: #{model_forward.13} parent=11 // pred_region
        _
      $region16: #{model_forward.13} parent=11 // pred_fallthru
        _
    $region12: #{model_forward.13} parent=5 // pred_fallthru
      _
    %p153 = scmp.lt.s32.totalorder %s10, 2
    // Predicated region
    $region17: #{model_forward.13} parent=5 // pred_check
      %p154 = pneg %p153
    $region18: #{model_forward.13} parent=5 // pred_check_branch
      %156 = sbr.rel (%p154) target = $region20
    $region19: #{model_forward.13} parent=5 // pred_region
      // Predicated region
      $region21: #{model_forward.13} parent=19 // pred_check
        %p157 = pneg %p30
      $region22: #{model_forward.13} parent=19 // pred_check_branch
        %159 = sbr.rel (%p157) target = $region24
      $region23: #{model_forward.13} parent=19 // pred_region
        %s160 = smul.u32 4, %s10
        %p161 = scmp.lt.s32.totalorder %s160, 7
        %s162 = scalar_select %p161, %s160, 7
        %s163 = smul.addr %s162, 2
        %s164 = smul.addr %s163, 4
        %s165 = scalar_lea.vmem %s0, %s164
        %s166 = smul.u32 4, %s10
      $region24: #{model_forward.13} parent=19 // pred_fallthru
        _
      // Predicated region
      $region25: #{model_forward.13} parent=19 // pred_check
        %p167 = pneg %p56
      $region26: #{model_forward.13} parent=19 // pred_check_branch
        %169 = sbr.rel (%p167) target = $region28
      $region27: #{model_forward.13} parent=19 // pred_region
        %s170 = smul.u32 4, %s10
        %p171 = scmp.lt.s32.totalorder %s170, 7
        %s172 = scalar_select %p171, %s170, 7
        %s173 = smul.addr %s172, 2
        %s174 = smul.addr %s173, 4
        %s175 = scalar_lea.vmem %s1, %s174
        %s176 = smul.u32 4, %s10
      $region28: #{model_forward.13} parent=19 // pred_fallthru
        _
      // Predicated region
      $region29: #{model_forward.13} parent=19 // pred_check
        %p177 = pneg %p82
      $region30: #{model_forward.13} parent=19 // pred_check_branch
        %179 = sbr.rel (%p177) target = $region32
      $region31: #{model_forward.13} parent=19 // pred_region
        %s180 = smul.u32 4, %s10
        %p181 = scmp.lt.s32.totalorder %s180, 7
        %s182 = scalar_select %p181, %s180, 7
        %s183 = smul.addr %s182, 2
        %s184 = smul.addr %s183, 4
        %s185 = scalar_lea.vmem %s2, %s184
        %s186 = smul.u32 4, %s10
      $region32: #{model_forward.13} parent=19 // pred_fallthru
        _
    $region20: #{model_forward.13} parent=5 // pred_fallthru
      _
    %p187 = scmp.le.s32.totalorder 1, %s10
    %p188 = scmp.lt.s32.totalorder %s10, 3
    %p189 = pnand %p187, %p188
    %p190 = pneg %p189
    // Predicated region
    $region33: #{model_forward.13} parent=5 // pred_check
      _
    $region34: #{model_forward.13} parent=5 // pred_check_branch
      %192 = sbr.rel (%p189) target = $region36
    $region35: #{model_forward.13} parent=5 // pred_region
      %s193 = ssub.s32 %s10, 1
      %s194 = smul.u32 4, %s15
      %p195 = scmp.lt.s32.totalorder %s194, 7
      %s196 = scalar_select %p195, %s194, 7
      %s197 = smul.addr %s196, 2
      %s198 = smul.addr %s197, 4
      %s199 = scalar_lea.vmem %s0, %s198
      %p200 = pneg %p36
      %p201 = pneg %p33
      %s202 = smul.u32 4, %s15
      %p203 = scmp.lt.s32.totalorder %s202, 7
      %s204 = scalar_select %p203, %s202, 7
      %s205 = smul.addr %s204, 2
      %s206 = smul.addr %s205, 4
      %s207 = scalar_lea.vmem %s1, %s206
      %p208 = pneg %p62
      %p209 = pneg %p59
      %s210 = smul.u32 4, %s15
      %p211 = scmp.lt.s32.totalorder %s210, 7
      %s212 = scalar_select %p211, %s210, 7
      %s213 = smul.addr %s212, 2
      %s214 = smul.addr %s213, 4
      %s215 = scalar_lea.vmem %s2, %s214
      %p216 = pneg %p88
      %p217 = pneg %p85
      %p218 = pneg %p109
      %p219 = pneg %p106
      %p220 = pneg %p135
      %p221 = pneg %p132
      %s222 = smul.u32 4, %s15
      %p223 = scmp.lt.s32.totalorder %s222, 7
      %s224 = scalar_select %p223, %s222, 7
      %s225 = smul.addr %s224, 2
      %s226 = smul.addr %s225, 4
      %s227 = scalar_lea.vmem %s4, %s226
      %s228 = smul.u32 4, %s15
      %p229 = scmp.lt.s32.totalorder %s228, 7
      %s230 = scalar_select %p229, %s228, 7
      %s231 = smul.addr %s230, 2
      %s232 = smul.addr %s231, 4
      %s233 = scalar_lea.vmem %s0, %s232
      %s234 = smul.u32 4, %s15
      %s235 = smul.u32 4, %s15
      %p236 = scmp.lt.s32.totalorder %s235, 7
      %s237 = scalar_select %p236, %s235, 7
      %s238 = smul.addr %s237, 2
      %s239 = smul.addr %s238, 4
      %s240 = scalar_lea.vmem %s1, %s239
      %s241 = smul.u32 4, %s15
      %s242 = smul.u32 4, %s15
      %p243 = scmp.lt.s32.totalorder %s242, 7
      %s244 = scalar_select %p243, %s242, 7
      %s245 = smul.addr %s244, 2
      %s246 = smul.addr %s245, 4
      %s247 = scalar_lea.vmem %s2, %s246
      %s248 = smul.u32 4, %s15
      %s249 = smul.u32 4, %s15
      %p250 = scmp.lt.s32.totalorder %s249, 7
      %s251 = scalar_select %p250, %s249, 7
      %s252 = smul.addr %s251, 2
      %s253 = smul.addr %s252, 4
      %s254 = scalar_lea.vmem %s4, %s253
      %s255 = smul.u32 4, %s15
      %v257 = vld [vmem:[%s233] sm:$0xf]
      %v258 = vld [vmem:[%s233 + $0x4] sm:$0xf]
      %v259 = vld [vmem:[%s233 + $0x8] sm:$0xf]
      %v260 = vld [vmem:[%s233 + $0xc] sm:$0xf]
      %v261 = vld [vmem:[%s233 + $0x10] sm:$0xf]
      %v262 = vld [vmem:[%s233 + $0x14] sm:$0xf]
      %v263 = vld [vmem:[%s233 + $0x18] sm:$0xf]
      %v264 = vld [vmem:[%s233 + $0x1c] sm:$0xf]
      %v265 = vld [vmem:[%s240] sm:$0xf]
      %v266 = vld [vmem:[%s240 + $0x4] sm:$0xf]
      %v267 = vld [vmem:[%s240 + $0x8] sm:$0xf]
      %v268 = vld [vmem:[%s240 + $0xc] sm:$0xf]
      %v269 = vld [vmem:[%s240 + $0x10] sm:$0xf]
      %v270 = vld [vmem:[%s240 + $0x14] sm:$0xf]
      %v271 = vld [vmem:[%s240 + $0x18] sm:$0xf]
      %v272 = vld [vmem:[%s240 + $0x1c] sm:$0xf]
      %v273 = vld [vmem:[%s247] sm:$0xf]
      %v274 = vld [vmem:[%s247 + $0x4] sm:$0xf]
      %v275 = vld [vmem:[%s247 + $0x8] sm:$0xf]
      %v276 = vld [vmem:[%s247 + $0xc] sm:$0xf]
      %v277 = vld [vmem:[%s247 + $0x10] sm:$0xf]
      %v278 = vld [vmem:[%s247 + $0x14] sm:$0xf]
      %v279 = vld [vmem:[%s247 + $0x18] sm:$0xf]
      %v280 = vld [vmem:[%s247 + $0x1c] sm:$0xf]
      %v281 = vld [vmem:[%s3] sm:$0xff]
      %v282 = vld [vmem:[%s3 + $0x8] sm:$0xff]
      %v283 = vld [vmem:[%s3 + $0x10] sm:$0xff]
      %v284 = vld [vmem:[%s3 + $0x18] sm:$0xff]
      %v285 = vld [vmem:[%s3 + $0x20] sm:$0xff]
      %v286 = vld [vmem:[%s3 + $0x28] sm:$0xff]
      %v287 = vld [vmem:[%s3 + $0x30] sm:$0xff]
      %v288 = vld [vmem:[%s3 + $0x38] sm:$0xff]
      %v291 = vunpack.c.l.b16 %v257
      %v292 = vunpack.c.l.b16 %v258
      %v293 = vpack.c.b16 %v292, %v291
      %v296 = vunpack.c.l.b16 %v265
      %v297 = vunpack.c.l.b16 %v266
      %v298 = vpack.c.b16 %v297, %v296
      %vm299 = vcmask 64512
      %v301 = vsel %vm299, %v293, 0
      %v304 = vsel %vm299, %v298, 0
      %306 = vmatpush.bf16.xpose.msra.mxu0 0
      %307 = vmatpush.bf16.xpose.msra.mxu0 0
      %308 = vmatpush.bf16.xpose.msra.mxu0 0
      %309 = vmatpush.bf16.xpose.msra.mxu0 0
      %310 = vmatpush.bf16.xpose.msra.mxu0 0
      %311 = vmatpush.bf16.xpose.msra.mxu0 0
      %312 = vmatpush.bf16.xpose.msra.mxu0 0
      %313 = vmatpush.bf16.xpose.msra.mxu0 %v304
      %314 = vmatmul.bf16.gmra.mxu0 %v301
      %v315 = vpop.f32.mrf.mxu0
      %v316 = vadd.f32 %v281, %v315
      %v317 = vpop.f32.mrf.mxu0
      %v318 = vadd.f32 %v282, %v317
      %319 = vdwg.mxu0
      %v322 = vunpack.c.l.b16 %v259
      %v323 = vunpack.c.l.b16 %v260
      %v324 = vpack.c.b16 %v323, %v322
      %v327 = vunpack.c.l.b16 %v267
      %v328 = vunpack.c.l.b16 %v268
      %v329 = vpack.c.b16 %v328, %v327
      %v331 = vsel %vm299, %v324, 0
      %v334 = vsel %vm299, %v329, 0
      %336 = vmatpush.bf16.xpose.msra.mxu0 0
      %337 = vmatpush.bf16.xpose.msra.mxu0 0
      %338 = vmatpush.bf16.xpose.msra.mxu0 0
      %339 = vmatpush.bf16.xpose.msra.mxu0 0
      %340 = vmatpush.bf16.xpose.msra.mxu0 0
      %341 = vmatpush.bf16.xpose.msra.mxu0 0
      %342 = vmatpush.bf16.xpose.msra.mxu0 0
      %343 = vmatpush.bf16.xpose.msra.mxu0 %v334
      %344 = vmatmul.bf16.gmra.mxu0 %v331
      %v345 = vpop.f32.mrf.mxu0
      %v346 = vadd.f32 %v283, %v345
      %v347 = vpop.f32.mrf.mxu0
      %v348 = vadd.f32 %v284, %v347
      %349 = vdwg.mxu0
      %v352 = vunpack.c.l.b16 %v261
      %v353 = vunpack.c.l.b16 %v262
      %v354 = vpack.c.b16 %v353, %v352
      %v357 = vunpack.c.l.b16 %v269
      %v358 = vunpack.c.l.b16 %v270
      %v359 = vpack.c.b16 %v358, %v357
      %v361 = vsel %vm299, %v354, 0
      %v364 = vsel %vm299, %v359, 0
      %366 = vmatpush.bf16.xpose.msra.mxu0 0
      %367 = vmatpush.bf16.xpose.msra.mxu0 0
      %368 = vmatpush.bf16.xpose.msra.mxu0 0
      %369 = vmatpush.bf16.xpose.msra.mxu0 0
      %370 = vmatpush.bf16.xpose.msra.mxu0 0
      %371 = vmatpush.bf16.xpose.msra.mxu0 0
      %372 = vmatpush.bf16.xpose.msra.mxu0 0
      %373 = vmatpush.bf16.xpose.msra.mxu0 %v364
      %374 = vmatmul.bf16.gmra.mxu0 %v361
      %v375 = vpop.f32.mrf.mxu0
      %v376 = vadd.f32 %v285, %v375
      %v377 = vpop.f32.mrf.mxu0
      %v378 = vadd.f32 %v286, %v377
      %379 = vdwg.mxu0
      %v382 = vunpack.c.l.b16 %v263
      %v383 = vunpack.c.l.b16 %v264
      %v384 = vpack.c.b16 %v383, %v382
      %v387 = vunpack.c.l.b16 %v271
      %v388 = vunpack.c.l.b16 %v272
      %v389 = vpack.c.b16 %v388, %v387
      %v391 = vsel %vm299, %v384, 0
      %v394 = vsel %vm299, %v389, 0
      %396 = vmatpush.bf16.xpose.msra.mxu0 0
      %397 = vmatpush.bf16.xpose.msra.mxu0 0
      %398 = vmatpush.bf16.xpose.msra.mxu0 0
      %399 = vmatpush.bf16.xpose.msra.mxu0 0
      %400 = vmatpush.bf16.xpose.msra.mxu0 0
      %401 = vmatpush.bf16.xpose.msra.mxu0 0
      %402 = vmatpush.bf16.xpose.msra.mxu0 0
      %403 = vmatpush.bf16.xpose.msra.mxu0 %v394
      %404 = vmatmul.bf16.gmra.mxu0 %v391
      %v405 = vpop.f32.mrf.mxu0
      %v406 = vadd.f32 %v287, %v405
      %v407 = vpop.f32.mrf.mxu0
      %v408 = vadd.f32 %v288, %v407
      %409 = vdwg.mxu0
      %vm410 = vcmask 130048
      %v411 = vsel %vm410, %v316, -inf
      %412 = vmax.xlane.f32.xlu0 %v411
      %v413 = vpop.xlane.xlu0 %412
      %v414 = vsel %vm410, %v318, -inf
      %415 = vmax.xlane.f32.xlu0 %v414
      %v416 = vpop.xlane.xlu0 %415
      %v417 = vsel %vm410, %v346, -inf
      %418 = vmax.xlane.f32.xlu0 %v417
      %v419 = vpop.xlane.xlu0 %418
      %v420 = vsel %vm410, %v348, -inf
      %421 = vmax.xlane.f32.xlu0 %v420
      %v422 = vpop.xlane.xlu0 %421
      %v423 = vsel %vm410, %v376, -inf
      %424 = vmax.xlane.f32.xlu0 %v423
      %v425 = vpop.xlane.xlu0 %424
      %v426 = vsel %vm410, %v378, -inf
      %427 = vmax.xlane.f32.xlu0 %v426
      %v428 = vpop.xlane.xlu0 %427
      %v429 = vsel %vm410, %v406, -inf
      %430 = vmax.xlane.f32.xlu0 %v429
      %v431 = vpop.xlane.xlu0 %430
      %v432 = vsel %vm410, %v408, -inf
      %433 = vmax.xlane.f32.xlu0 %v432
      %v434 = vpop.xlane.xlu0 %433
      %v435 = vsub.f32 %v316, %v413
      %v436 = vsub.f32 %v318, %v416
      %v437 = vsub.f32 %v346, %v419
      %v438 = vsub.f32 %v348, %v422
      %v439 = vsub.f32 %v376, %v425
      %v440 = vsub.f32 %v378, %v428
      %v441 = vsub.f32 %v406, %v431
      %v442 = vsub.f32 %v408, %v434
      %v443 = vmul.f32 %v435, 1.442695
      %v444 = vpow.pop %v443
      %v445 = vmul.f32 %v436, 1.442695
      %v446 = vpow.pop %v445
      %v447 = vmul.f32 %v437, 1.442695
      %v448 = vpow.pop %v447
      %v449 = vmul.f32 %v438, 1.442695
      %v450 = vpow.pop %v449
      %v451 = vmul.f32 %v439, 1.442695
      %v452 = vpow.pop %v451
      %v453 = vmul.f32 %v440, 1.442695
      %v454 = vpow.pop %v453
      %v455 = vmul.f32 %v441, 1.442695
      %v456 = vpow.pop %v455
      %v457 = vmul.f32 %v442, 1.442695
      %v458 = vpow.pop %v457
      %v459 = vsel %vm410, %v444, 0.0
      %460 = vadd.xlane.f32.xlu0 %v459
      %v461 = vpop.xlane.xlu0 %460
      %v462 = vsel %vm410, %v446, 0.0
      %463 = vadd.xlane.f32.xlu0 %v462
      %v464 = vpop.xlane.xlu0 %463
      %v465 = vsel %vm410, %v448, 0.0
      %466 = vadd.xlane.f32.xlu0 %v465
      %v467 = vpop.xlane.xlu0 %466
      %v468 = vsel %vm410, %v450, 0.0
      %469 = vadd.xlane.f32.xlu0 %v468
      %v470 = vpop.xlane.xlu0 %469
      %v471 = vsel %vm410, %v452, 0.0
      %472 = vadd.xlane.f32.xlu0 %v471
      %v473 = vpop.xlane.xlu0 %472
      %v474 = vsel %vm410, %v454, 0.0
      %475 = vadd.xlane.f32.xlu0 %v474
      %v476 = vpop.xlane.xlu0 %475
      %v477 = vsel %vm410, %v456, 0.0
      %478 = vadd.xlane.f32.xlu0 %v477
      %v479 = vpop.xlane.xlu0 %478
      %v480 = vsel %vm410, %v458, 0.0
      %481 = vadd.xlane.f32.xlu0 %v480
      %v482 = vpop.xlane.xlu0 %481
      %v483 = vrcp.pop %v461
      %v484 = vrcp.pop %v464
      %v485 = vrcp.pop %v467
      %v486 = vrcp.pop %v470
      %v487 = vrcp.pop %v473
      %v488 = vrcp.pop %v476
      %v489 = vrcp.pop %v479
      %v490 = vrcp.pop %v482
      %v491 = vmul.f32 %v444, %v483
      %v492 = vmul.f32 %v446, %v484
      %v493 = vmul.f32 %v448, %v485
      %v494 = vmul.f32 %v450, %v486
      %v495 = vmul.f32 %v452, %v487
      %v496 = vmul.f32 %v454, %v488
      %v497 = vmul.f32 %v456, %v489
      %v498 = vmul.f32 %v458, %v490
      %v499 = vpack.c.bf16 %v491, %v491
      %v500 = vpack.c.bf16 %v492, %v492
      %v501 = vpack.c.bf16 %v493, %v493
      %v502 = vpack.c.bf16 %v494, %v494
      %v503 = vpack.c.bf16 %v495, %v495
      %v504 = vpack.c.bf16 %v496, %v496
      %v505 = vpack.c.bf16 %v497, %v497
      %v506 = vpack.c.bf16 %v498, %v498
      %v509 = vunpack.c.l.b16 %v499
      %v510 = vunpack.c.l.b16 %v500
      %v511 = vpack.c.b16 %v510, %v509
      %v514 = vunpack.c.l.b16 %v273
      %v515 = vunpack.c.l.b16 %v274
      %v516 = vpack.c.b16 %v515, %v514
      %v519 = vsel %vm410, %v511, 0
      %521 = vmatpush.bf16.msra.mxu0 0
      %522 = vmatpush.bf16.msra.mxu0 0
      %523 = vmatpush.bf16.msra.mxu0 0
      %524 = vmatpush.bf16.msra.mxu0 0
      %525 = vmatpush.bf16.msra.mxu0 0
      %526 = vmatpush.bf16.msra.mxu0 0
      %527 = vmatpush.bf16.msra.mxu0 0
      %528 = vmatpush.bf16.msra.mxu0 %v516
      %529 = vmatmul.bf16.gmra.mxu0 %v519
      %v530 = vpop.f32.mrf.mxu0
      %v531 = vadd.f32 0.0, %v530
      %v532 = vpop.f32.mrf.mxu0
      %v533 = vadd.f32 0.0, %v532
      %534 = vdwg.mxu0
      %v537 = vunpack.c.l.b16 %v501
      %v538 = vunpack.c.l.b16 %v502
      %v539 = vpack.c.b16 %v538, %v537
      %v542 = vunpack.c.l.b16 %v275
      %v543 = vunpack.c.l.b16 %v276
      %v544 = vpack.c.b16 %v543, %v542
      %v547 = vsel %vm410, %v539, 0
      %549 = vmatpush.bf16.msra.mxu0 0
      %550 = vmatpush.bf16.msra.mxu0 0
      %551 = vmatpush.bf16.msra.mxu0 0
      %552 = vmatpush.bf16.msra.mxu0 0
      %553 = vmatpush.bf16.msra.mxu0 0
      %554 = vmatpush.bf16.msra.mxu0 0
      %555 = vmatpush.bf16.msra.mxu0 0
      %556 = vmatpush.bf16.msra.mxu0 %v544
      %557 = vmatmul.bf16.gmra.mxu0 %v547
      %v558 = vpop.f32.mrf.mxu0
      %v559 = vadd.f32 0.0, %v558
      %v560 = vpop.f32.mrf.mxu0
      %v561 = vadd.f32 0.0, %v560
      %562 = vdwg.mxu0
      %v565 = vunpack.c.l.b16 %v503
      %v566 = vunpack.c.l.b16 %v504
      %v567 = vpack.c.b16 %v566, %v565
      %v570 = vunpack.c.l.b16 %v277
      %v571 = vunpack.c.l.b16 %v278
      %v572 = vpack.c.b16 %v571, %v570
      %v575 = vsel %vm410, %v567, 0
      %577 = vmatpush.bf16.msra.mxu0 0
      %578 = vmatpush.bf16.msra.mxu0 0
      %579 = vmatpush.bf16.msra.mxu0 0
      %580 = vmatpush.bf16.msra.mxu0 0
      %581 = vmatpush.bf16.msra.mxu0 0
      %582 = vmatpush.bf16.msra.mxu0 0
      %583 = vmatpush.bf16.msra.mxu0 0
      %584 = vmatpush.bf16.msra.mxu0 %v572
      %585 = vmatmul.bf16.gmra.mxu0 %v575
      %v586 = vpop.f32.mrf.mxu0
      %v587 = vadd.f32 0.0, %v586
      %v588 = vpop.f32.mrf.mxu0
      %v589 = vadd.f32 0.0, %v588
      %590 = vdwg.mxu0
      %v593 = vunpack.c.l.b16 %v505
      %v594 = vunpack.c.l.b16 %v506
      %v595 = vpack.c.b16 %v594, %v593
      %v598 = vunpack.c.l.b16 %v279
      %v599 = vunpack.c.l.b16 %v280
      %v600 = vpack.c.b16 %v599, %v598
      %v603 = vsel %vm410, %v595, 0
      %605 = vmatpush.bf16.msra.mxu0 0
      %606 = vmatpush.bf16.msra.mxu0 0
      %607 = vmatpush.bf16.msra.mxu0 0
      %608 = vmatpush.bf16.msra.mxu0 0
      %609 = vmatpush.bf16.msra.mxu0 0
      %610 = vmatpush.bf16.msra.mxu0 0
      %611 = vmatpush.bf16.msra.mxu0 0
      %612 = vmatpush.bf16.msra.mxu0 %v600
      %613 = vmatmul.bf16.gmra.mxu0 %v603
      %v614 = vpop.f32.mrf.mxu0
      %v615 = vadd.f32 0.0, %v614
      %v616 = vpop.f32.mrf.mxu0
      %v617 = vadd.f32 0.0, %v616
      %618 = vdwg.mxu0
      %s619 = scalar_lea.vmem %s3, 64
      %v620 = vld [vmem:[%s619] sm:$0xff]
      %v621 = vld [vmem:[%s619 + $0x8] sm:$0xff]
      %v622 = vld [vmem:[%s619 + $0x10] sm:$0xff]
      %v623 = vld [vmem:[%s619 + $0x18] sm:$0xff]
      %v624 = vld [vmem:[%s619 + $0x20] sm:$0xff]
      %v625 = vld [vmem:[%s619 + $0x28] sm:$0xff]
      %v626 = vld [vmem:[%s619 + $0x30] sm:$0xff]
      %v627 = vld [vmem:[%s619 + $0x38] sm:$0xff]
      %628 = vrot.lane.b32.xlu0 %v293, 120
      %v629 = vpop.permute.xlu0 %628
      %630 = vrot.lane.b32.xlu0 %v298, 120
      %v631 = vpop.permute.xlu0 %630
      %v633 = vsel %vm299, %v629, 0
      %v636 = vsel %vm299, %v631, 0
      %638 = vmatpush.bf16.xpose.msra.mxu0 0
      %639 = vmatpush.bf16.xpose.msra.mxu0 0
      %640 = vmatpush.bf16.xpose.msra.mxu0 0
      %641 = vmatpush.bf16.xpose.msra.mxu0 0
      %642 = vmatpush.bf16.xpose.msra.mxu0 0
      %643 = vmatpush.bf16.xpose.msra.mxu0 0
      %644 = vmatpush.bf16.xpose.msra.mxu0 0
      %645 = vmatpush.bf16.xpose.msra.mxu0 %v636
      %646 = vmatmul.bf16.gmra.mxu0 %v633
      %v647 = vpop.f32.mrf.mxu0
      %v648 = vadd.f32 %v620, %v647
      %v649 = vpop.f32.mrf.mxu0
      %v650 = vadd.f32 %v621, %v649
      %651 = vdwg.mxu0
      %652 = vrot.lane.b32.xlu0 %v324, 120
      %v653 = vpop.permute.xlu0 %652
      %654 = vrot.lane.b32.xlu0 %v329, 120
      %v655 = vpop.permute.xlu0 %654
      %v657 = vsel %vm299, %v653, 0
      %v660 = vsel %vm299, %v655, 0
      %662 = vmatpush.bf16.xpose.msra.mxu0 0
      %663 = vmatpush.bf16.xpose.msra.mxu0 0
      %664 = vmatpush.bf16.xpose.msra.mxu0 0
      %665 = vmatpush.bf16.xpose.msra.mxu0 0
      %666 = vmatpush.bf16.xpose.msra.mxu0 0
      %667 = vmatpush.bf16.xpose.msra.mxu0 0
      %668 = vmatpush.bf16.xpose.msra.mxu0 0
      %669 = vmatpush.bf16.xpose.msra.mxu0 %v660
      %670 = vmatmul.bf16.gmra.mxu0 %v657
      %v671 = vpop.f32.mrf.mxu0
      %v672 = vadd.f32 %v622, %v671
      %v673 = vpop.f32.mrf.mxu0
      %v674 = vadd.f32 %v623, %v673
      %675 = vdwg.mxu0
      %676 = vrot.lane.b32.xlu0 %v354, 120
      %v677 = vpop.permute.xlu0 %676
      %678 = vrot.lane.b32.xlu0 %v359, 120
      %v679 = vpop.permute.xlu0 %678
      %v681 = vsel %vm299, %v677, 0
      %v684 = vsel %vm299, %v679, 0
      %686 = vmatpush.bf16.xpose.msra.mxu0 0
      %687 = vmatpush.bf16.xpose.msra.mxu0 0
      %688 = vmatpush.bf16.xpose.msra.mxu0 0
      %689 = vmatpush.bf16.xpose.msra.mxu0 0
      %690 = vmatpush.bf16.xpose.msra.mxu0 0
      %691 = vmatpush.bf16.xpose.msra.mxu0 0
      %692 = vmatpush.bf16.xpose.msra.mxu0 0
      %693 = vmatpush.bf16.xpose.msra.mxu0 %v684
      %694 = vmatmul.bf16.gmra.mxu0 %v681
      %v695 = vpop.f32.mrf.mxu0
      %v696 = vadd.f32 %v624, %v695
      %v697 = vpop.f32.mrf.mxu0
      %v698 = vadd.f32 %v625, %v697
      %699 = vdwg.mxu0
      %700 = vrot.lane.b32.xlu0 %v384, 120
      %v701 = vpop.permute.xlu0 %700
      %702 = vrot.lane.b32.xlu0 %v389, 120
      %v703 = vpop.permute.xlu0 %702
      %v705 = vsel %vm299, %v701, 0
      %v708 = vsel %vm299, %v703, 0
      %710 = vmatpush.bf16.xpose.msra.mxu0 0
      %711 = vmatpush.bf16.xpose.msra.mxu0 0
      %712 = vmatpush.bf16.xpose.msra.mxu0 0
      %713 = vmatpush.bf16.xpose.msra.mxu0 0
      %714 = vmatpush.bf16.xpose.msra.mxu0 0
      %715 = vmatpush.bf16.xpose.msra.mxu0 0
      %716 = vmatpush.bf16.xpose.msra.mxu0 0
      %717 = vmatpush.bf16.xpose.msra.mxu0 %v708
      %718 = vmatmul.bf16.gmra.mxu0 %v705
      %v719 = vpop.f32.mrf.mxu0
      %v720 = vadd.f32 %v626, %v719
      %v721 = vpop.f32.mrf.mxu0
      %v722 = vadd.f32 %v627, %v721
      %723 = vdwg.mxu0
      %v724 = vsel %vm410, %v648, -inf
      %725 = vmax.xlane.f32.xlu0 %v724
      %v726 = vpop.xlane.xlu0 %725
      %v727 = vsel %vm410, %v650, -inf
      %728 = vmax.xlane.f32.xlu0 %v727
      %v729 = vpop.xlane.xlu0 %728
      %v730 = vsel %vm410, %v672, -inf
      %731 = vmax.xlane.f32.xlu0 %v730
      %v732 = vpop.xlane.xlu0 %731
      %v733 = vsel %vm410, %v674, -inf
      %734 = vmax.xlane.f32.xlu0 %v733
      %v735 = vpop.xlane.xlu0 %734
      %v736 = vsel %vm410, %v696, -inf
      %737 = vmax.xlane.f32.xlu0 %v736
      %v738 = vpop.xlane.xlu0 %737
      %v739 = vsel %vm410, %v698, -inf
      %740 = vmax.xlane.f32.xlu0 %v739
      %v741 = vpop.xlane.xlu0 %740
      %v742 = vsel %vm410, %v720, -inf
      %743 = vmax.xlane.f32.xlu0 %v742
      %v744 = vpop.xlane.xlu0 %743
      %v745 = vsel %vm410, %v722, -inf
      %746 = vmax.xlane.f32.xlu0 %v745
      %v747 = vpop.xlane.xlu0 %746
      %v748 = vsub.f32 %v648, %v726
      %v749 = vsub.f32 %v650, %v729
      %v750 = vsub.f32 %v672, %v732
      %v751 = vsub.f32 %v674, %v735
      %v752 = vsub.f32 %v696, %v738
      %v753 = vsub.f32 %v698, %v741
      %v754 = vsub.f32 %v720, %v744
      %v755 = vsub.f32 %v722, %v747
      %v756 = vmul.f32 %v748, 1.442695
      %v757 = vpow.pop %v756
      %v758 = vmul.f32 %v749, 1.442695
      %v759 = vpow.pop %v758
      %v760 = vmul.f32 %v750, 1.442695
      %v761 = vpow.pop %v760
      %v762 = vmul.f32 %v751, 1.442695
      %v763 = vpow.pop %v762
      %v764 = vmul.f32 %v752, 1.442695
      %v765 = vpow.pop %v764
      %v766 = vmul.f32 %v753, 1.442695
      %v767 = vpow.pop %v766
      %v768 = vmul.f32 %v754, 1.442695
      %v769 = vpow.pop %v768
      %v770 = vmul.f32 %v755, 1.442695
      %v771 = vpow.pop %v770
      %v772 = vsel %vm410, %v757, 0.0
      %773 = vadd.xlane.f32.xlu0 %v772
      %v774 = vpop.xlane.xlu0 %773
      %v775 = vsel %vm410, %v759, 0.0
      %776 = vadd.xlane.f32.xlu0 %v775
      %v777 = vpop.xlane.xlu0 %776
      %v778 = vsel %vm410, %v761, 0.0
      %779 = vadd.xlane.f32.xlu0 %v778
      %v780 = vpop.xlane.xlu0 %779
      %v781 = vsel %vm410, %v763, 0.0
      %782 = vadd.xlane.f32.xlu0 %v781
      %v783 = vpop.xlane.xlu0 %782
      %v784 = vsel %vm410, %v765, 0.0
      %785 = vadd.xlane.f32.xlu0 %v784
      %v786 = vpop.xlane.xlu0 %785
      %v787 = vsel %vm410, %v767, 0.0
      %788 = vadd.xlane.f32.xlu0 %v787
      %v789 = vpop.xlane.xlu0 %788
      %v790 = vsel %vm410, %v769, 0.0
      %791 = vadd.xlane.f32.xlu0 %v790
      %v792 = vpop.xlane.xlu0 %791
      %v793 = vsel %vm410, %v771, 0.0
      %794 = vadd.xlane.f32.xlu0 %v793
      %v795 = vpop.xlane.xlu0 %794
      %v796 = vrcp.pop %v774
      %v797 = vrcp.pop %v777
      %v798 = vrcp.pop %v780
      %v799 = vrcp.pop %v783
      %v800 = vrcp.pop %v786
      %v801 = vrcp.pop %v789
      %v802 = vrcp.pop %v792
      %v803 = vrcp.pop %v795
      %v804 = vmul.f32 %v757, %v796
      %v805 = vmul.f32 %v759, %v797
      %v806 = vmul.f32 %v761, %v798
      %v807 = vmul.f32 %v763, %v799
      %v808 = vmul.f32 %v765, %v800
      %v809 = vmul.f32 %v767, %v801
      %v810 = vmul.f32 %v769, %v802
      %v811 = vmul.f32 %v771, %v803
      %v812 = vpack.c.bf16 %v804, %v804
      %v813 = vpack.c.bf16 %v805, %v805
      %v814 = vpack.c.bf16 %v806, %v806
      %v815 = vpack.c.bf16 %v807, %v807
      %v816 = vpack.c.bf16 %v808, %v808
      %v817 = vpack.c.bf16 %v809, %v809
      %v818 = vpack.c.bf16 %v810, %v810
      %v819 = vpack.c.bf16 %v811, %v811
      %v822 = vunpack.c.l.b16 %v812
      %v823 = vunpack.c.l.b16 %v813
      %v824 = vpack.c.b16 %v823, %v822
      %825 = vrot.lane.b32.xlu0 %v516, 120
      %v826 = vpop.permute.xlu0 %825
      %v829 = vsel %vm410, %v824, 0
      %831 = vmatpush.bf16.msra.mxu0 0
      %832 = vmatpush.bf16.msra.mxu0 0
      %833 = vmatpush.bf16.msra.mxu0 0
      %834 = vmatpush.bf16.msra.mxu0 0
      %835 = vmatpush.bf16.msra.mxu0 0
      %836 = vmatpush.bf16.msra.mxu0 0
      %837 = vmatpush.bf16.msra.mxu0 0
      %838 = vmatpush.bf16.msra.mxu0 %v826
      %839 = vmatmul.bf16.gmra.mxu0 %v829
      %v840 = vpop.f32.mrf.mxu0
      %v841 = vadd.f32 0.0, %v840
      %v842 = vpop.f32.mrf.mxu0
      %v843 = vadd.f32 0.0, %v842
      %844 = vdwg.mxu0
      %v847 = vunpack.c.l.b16 %v814
      %v848 = vunpack.c.l.b16 %v815
      %v849 = vpack.c.b16 %v848, %v847
      %850 = vrot.lane.b32.xlu0 %v544, 120
      %v851 = vpop.permute.xlu0 %850
      %v854 = vsel %vm410, %v849, 0
      %856 = vmatpush.bf16.msra.mxu0 0
      %857 = vmatpush.bf16.msra.mxu0 0
      %858 = vmatpush.bf16.msra.mxu0 0
      %859 = vmatpush.bf16.msra.mxu0 0
      %860 = vmatpush.bf16.msra.mxu0 0
      %861 = vmatpush.bf16.msra.mxu0 0
      %862 = vmatpush.bf16.msra.mxu0 0
      %863 = vmatpush.bf16.msra.mxu0 %v851
      %864 = vmatmul.bf16.gmra.mxu0 %v854
      %v865 = vpop.f32.mrf.mxu0
      %v866 = vadd.f32 0.0, %v865
      %v867 = vpop.f32.mrf.mxu0
      %v868 = vadd.f32 0.0, %v867
      %869 = vdwg.mxu0
      %v872 = vunpack.c.l.b16 %v816
      %v873 = vunpack.c.l.b16 %v817
      %v874 = vpack.c.b16 %v873, %v872
      %875 = vrot.lane.b32.xlu0 %v572, 120
      %v876 = vpop.permute.xlu0 %875
      %v879 = vsel %vm410, %v874, 0
      %881 = vmatpush.bf16.msra.mxu0 0
      %882 = vmatpush.bf16.msra.mxu0 0
      %883 = vmatpush.bf16.msra.mxu0 0
      %884 = vmatpush.bf16.msra.mxu0 0
      %885 = vmatpush.bf16.msra.mxu0 0
      %886 = vmatpush.bf16.msra.mxu0 0
      %887 = vmatpush.bf16.msra.mxu0 0
      %888 = vmatpush.bf16.msra.mxu0 %v876
      %889 = vmatmul.bf16.gmra.mxu0 %v879
      %v890 = vpop.f32.mrf.mxu0
      %v891 = vadd.f32 0.0, %v890
      %v892 = vpop.f32.mrf.mxu0
      %v893 = vadd.f32 0.0, %v892
      %894 = vdwg.mxu0
      %v897 = vunpack.c.l.b16 %v818
      %v898 = vunpack.c.l.b16 %v819
      %v899 = vpack.c.b16 %v898, %v897
      %900 = vrot.lane.b32.xlu0 %v600, 120
      %v901 = vpop.permute.xlu0 %900
      %v904 = vsel %vm410, %v899, 0
      %906 = vmatpush.bf16.msra.mxu0 0
      %907 = vmatpush.bf16.msra.mxu0 0
      %908 = vmatpush.bf16.msra.mxu0 0
      %909 = vmatpush.bf16.msra.mxu0 0
      %910 = vmatpush.bf16.msra.mxu0 0
      %911 = vmatpush.bf16.msra.mxu0 0
      %912 = vmatpush.bf16.msra.mxu0 0
      %913 = vmatpush.bf16.msra.mxu0 %v901
      %914 = vmatmul.bf16.gmra.mxu0 %v904
      %v915 = vpop.f32.mrf.mxu0
      %v916 = vadd.f32 0.0, %v915
      %v917 = vpop.f32.mrf.mxu0
      %v918 = vadd.f32 0.0, %v917
      %919 = vdwg.mxu0
      %928 = vrot.lane.b32.xlu0 %v841, 8
      %v929 = vpop.permute.xlu0 %928
      %930 = vrot.lane.b32.xlu0 %v843, 8
      %v931 = vpop.permute.xlu0 %930
      %932 = vrot.lane.b32.xlu0 %v866, 8
      %v933 = vpop.permute.xlu0 %932
      %934 = vrot.lane.b32.xlu0 %v868, 8
      %v935 = vpop.permute.xlu0 %934
      %936 = vrot.lane.b32.xlu0 %v891, 8
      %v937 = vpop.permute.xlu0 %936
      %938 = vrot.lane.b32.xlu0 %v893, 8
      %v939 = vpop.permute.xlu0 %938
      %940 = vrot.lane.b32.xlu0 %v916, 8
      %v941 = vpop.permute.xlu0 %940
      %942 = vrot.lane.b32.xlu0 %v918, 8
      %v943 = vpop.permute.xlu0 %942
      %v952 = vsel %vm299, %v531, %v929
      %v953 = vsel %vm299, %v533, %v931
      %v954 = vsel %vm299, %v559, %v933
      %v955 = vsel %vm299, %v561, %v935
      %v956 = vsel %vm299, %v587, %v937
      %v957 = vsel %vm299, %v589, %v939
      %v958 = vsel %vm299, %v615, %v941
      %v959 = vsel %vm299, %v617, %v943
      %v960 = vpack.c.bf16 %v952, %v952
      %v961 = vpack.c.bf16 %v953, %v953
      %v962 = vpack.c.bf16 %v954, %v954
      %v963 = vpack.c.bf16 %v955, %v955
      %v964 = vpack.c.bf16 %v956, %v956
      %v965 = vpack.c.bf16 %v957, %v957
      %v966 = vpack.c.bf16 %v958, %v958
      %v967 = vpack.c.bf16 %v959, %v959
      %vm968 = vcmask 125952
      %969 = vst.msk [vmem:[%s254] sm:$0xf] %vm968, %v960
      %970 = vst.msk [vmem:[%s254 + $0x4] sm:$0xf] %vm968, %v961
      %971 = vst.msk [vmem:[%s254 + $0x8] sm:$0xf] %vm968, %v962
      %972 = vst.msk [vmem:[%s254 + $0xc] sm:$0xf] %vm968, %v963
      %973 = vst.msk [vmem:[%s254 + $0x10] sm:$0xf] %vm968, %v964
      %974 = vst.msk [vmem:[%s254 + $0x14] sm:$0xf] %vm968, %v965
      %975 = vst.msk [vmem:[%s254 + $0x18] sm:$0xf] %vm968, %v966
      %976 = vst.msk [vmem:[%s254 + $0x1c] sm:$0xf] %vm968, %v967
      %s977 = smul.u32 4, %s15
      %p978 = scmp.lt.s32.totalorder %s977, 7
      %s979 = scalar_select %p978, %s977, 7
      %s980 = smul.addr %s979, 2
      %s981 = smul.addr %s980, 4
      %s982 = scalar_lea.vmem %s4, %s981
      // Predicated region
      $region37: #{model_forward.13} parent=35 // pred_check
        %p983 = pneg %p132
      $region38: #{model_forward.13} parent=35 // pred_check_branch
        %985 = sbr.rel (%p983) target = $region40
      $region39: #{model_forward.13} parent=35 // pred_region
        %s986 = smul.u32 4, %s15
      $region40: #{model_forward.13} parent=35 // pred_fallthru
        _
    $region36: #{model_forward.13} parent=5 // pred_fallthru
      _
    %p987 = scmp.le.s32.totalorder 2, %s10
    // Predicated region
    $region41: #{model_forward.13} parent=5 // pred_check
      %p988 = pneg %p987
    $region42: #{model_forward.13} parent=5 // pred_check_branch
      %990 = sbr.rel (%p988) target = $region44
    $region43: #{model_forward.13} parent=5 // pred_region
      %s991 = ssub.s32 %s10, 2
      // Predicated region
      $region45: #{model_forward.13} parent=43 // pred_check
        %p992 = pneg %p138
      $region46: #{model_forward.13} parent=43 // pred_check_branch
        %994 = sbr.rel (%p992) target = $region48
      $region47: #{model_forward.13} parent=43 // pred_region
        %s995 = smul.u32 4, %s16
        %p996 = scmp.lt.s32.totalorder %s995, 7
        %s997 = scalar_select %p996, %s995, 7
        %s998 = smul.addr %s997, 2
        %s999 = smul.addr %s998, 4
        %s1000 = scalar_lea.vmem %s4, %s999
      $region48: #{model_forward.13} parent=43 // pred_fallthru
        _
    $region44: #{model_forward.13} parent=5 // pred_fallthru
      _
  $region6: #{model_forward.13} parent=0 // loop_footer
    %s14 = sadd.s32 1, %s10
  $region7: #{model_forward.13} parent=0 // loop_footer_branch
    %9 = sbr.rel target = $region3
  $region8: #{model_forward.13} parent=0 // loop_exit
    _

// kernel: model_forward.15
$region0: #{model_forward.15}
  #allocation0 [shape = 'u32[]', space=smem, size = 0x4, offset = 0x4, fixed_abs, tag = 'smem constant byte address 0x4 - core index']
  #allocation1 [shape = 'u32[72,128]{1,0:T(1,128)}', space=vmem, size = 0x9000, scoped, tag = 'internal scratch']
  %s0 = inlined_call_operand.vmem [shape: bf16[128,128], index: 0, kind: input, shape index: {}]
  %s1 = inlined_call_operand.vmem [shape: bf16[128,32], index: 1, kind: input, shape index: {}]
  %s2 = inlined_call_operand.vmem [shape: f32[1,32], index: 2, kind: input, shape index: {}]
  %s3 = inlined_call_operand.vmem [shape: f32[128,32], index: 3, kind: input, shape index: {}]
  %s4 = inlined_call_operand.vmem [shape: f32[128,32], index: 4, kind: output, shape index: {}]
  %s5 = sld [smem:[#allocation0]]
  $region49: #{model_forward.15} parent=0
    _
  %s7 = ssub.s32 1, %s5
  %s8 = scalar_select 0, %s7, %s5
  loop: start=0, step=1, limit=4
  $region2: #{model_forward.15} parent=0 // loop_pre_header
    _
  $region3: #{model_forward.15} parent=0 // loop_header
    %s10 = sphi 0, %s14
    %p11 = scmp.ge.s32.totalorder %s10, 4
    %s20 = sphi 0, %s22
    %s23 = sphi 0, %s20
    %s24 = sphi 0, %s23
    %s40 = sphi 0, %s24
    %s44 = sphi 0, %s44
    %s46 = sphi 0, %s44
    %s47 = sphi 0, %s46
    %s61 = sphi 0, %s47
    %s65 = sphi 0, %s65
    %s67 = sphi 0, %s65
    %s68 = sphi 0, %s67
    %s82 = sphi 0, %s68
    %s88 = sphi 0, %s90
    %s91 = sphi 0, %s88
    %s92 = sphi 0, %s91
    %s108 = sphi 0, %s92
    %s114 = sphi 0, %s116
    %s117 = sphi 0, %s114
    %s118 = sphi 0, %s117
    %s134 = sphi 0, %s118
  $region4: #{model_forward.15} parent=0 // loop_header_branch
    %13 = sbr.rel (%p11) target = $region8
  $region5: #{model_forward.15} parent=0 // loop_body
    %s15 = ssub.s32 %s10, 1
    %s16 = ssub.s32 %s10, 2
    %s17 = sadd.s32 %s10, 1
    %s18 = ssub.s32 %s10, %s17
    %p19 = scmp.eq.s32.totalorder %s18, 0
    %s21 = sadd.s32 %s20, 1
    %s22 = scalar_select %p19, %s20, %s21
    %p25 = pneg %p19
    %p26 = scmp.eq.s32.totalorder %s10, 1
    %p27 = por %p25, %p26
    %p28 = scmp.ne.s32.totalorder %s20, %s23
    %p29 = scmp.eq.s32.totalorder %s10, 0
    %p30 = por %p28, %p29
    %p31 = scmp.ne.s32.totalorder %s20, %s23
    %p32 = scmp.eq.s32.totalorder %s15, 1
    %p33 = por %p31, %p32
    %p34 = scmp.ne.s32.totalorder %s23, %s24
    %p35 = scmp.eq.s32.totalorder %s15, 0
    %p36 = por %p34, %p35
    %p37 = scmp.ne.s32.totalorder %s23, %s24
    %p38 = scmp.eq.s32.totalorder %s16, 1
    %p39 = por %p37, %p38
    %p41 = scmp.ne.s32.totalorder %s24, %s40
    %p42 = scmp.eq.s32.totalorder %s16, 0
    %p43 = por %p41, %p42
    %s45 = sadd.s32 %s44, 1
    %p48 = scmp.eq.s32.totalorder %s10, 1
    %p49 = scmp.ne.s32.totalorder %s44, %s46
    %p50 = scmp.eq.s32.totalorder %s10, 0
    %p51 = por %p49, %p50
    %p52 = scmp.ne.s32.totalorder %s44, %s46
    %p53 = scmp.eq.s32.totalorder %s15, 1
    %p54 = por %p52, %p53
    %p55 = scmp.ne.s32.totalorder %s46, %s47
    %p56 = scmp.eq.s32.totalorder %s15, 0
    %p57 = por %p55, %p56
    %p58 = scmp.ne.s32.totalorder %s46, %s47
    %p59 = scmp.eq.s32.totalorder %s16, 1
    %p60 = por %p58, %p59
    %p62 = scmp.ne.s32.totalorder %s47, %s61
    %p63 = scmp.eq.s32.totalorder %s16, 0
    %p64 = por %p62, %p63
    %s66 = sadd.s32 %s65, 1
    %p69 = scmp.eq.s32.totalorder %s10, 1
    %p70 = scmp.ne.s32.totalorder %s65, %s67
    %p71 = scmp.eq.s32.totalorder %s10, 0
    %p72 = por %p70, %p71
    %p73 = scmp.ne.s32.totalorder %s65, %s67
    %p74 = scmp.eq.s32.totalorder %s15, 1
    %p75 = por %p73, %p74
    %p76 = scmp.ne.s32.totalorder %s67, %s68
    %p77 = scmp.eq.s32.totalorder %s15, 0
    %p78 = por %p76, %p77
    %p79 = scmp.ne.s32.totalorder %s67, %s68
    %p80 = scmp.eq.s32.totalorder %s16, 1
    %p81 = por %p79, %p80
    %p83 = scmp.ne.s32.totalorder %s68, %s82
    %p84 = scmp.eq.s32.totalorder %s16, 0
    %p85 = por %p83, %p84
    %s86 = ssub.s32 %s10, %s17
    %p87 = scmp.eq.s32.totalorder %s86, 0
    %s89 = sadd.s32 %s88, 1
    %s90 = scalar_select %p87, %s88, %s89
    %p93 = pneg %p87
    %p94 = scmp.eq.s32.totalorder %s10, 1
    %p95 = por %p93, %p94
    %p96 = scmp.ne.s32.totalorder %s88, %s91
    %p97 = scmp.eq.s32.totalorder %s10, 0
    %p98 = por %p96, %p97
    %p99 = scmp.ne.s32.totalorder %s88, %s91
    %p100 = scmp.eq.s32.totalorder %s15, 1
    %p101 = por %p99, %p100
    %p102 = scmp.ne.s32.totalorder %s91, %s92
    %p103 = scmp.eq.s32.totalorder %s15, 0
    %p104 = por %p102, %p103
    %p105 = scmp.ne.s32.totalorder %s91, %s92
    %p106 = scmp.eq.s32.totalorder %s16, 1
    %p107 = por %p105, %p106
    %p109 = scmp.ne.s32.totalorder %s92, %s108
    %p110 = scmp.eq.s32.totalorder %s16, 0
    %p111 = por %p109, %p110
    %s112 = ssub.s32 %s10, %s17
    %p113 = scmp.eq.s32.totalorder %s112, 0
    %s115 = sadd.s32 %s114, 1
    %s116 = scalar_select %p113, %s114, %s115
    %p119 = pneg %p113
    %p120 = scmp.eq.s32.totalorder %s10, 1
    %p121 = por %p119, %p120
    %p122 = scmp.ne.s32.totalorder %s114, %s117
    %p123 = scmp.eq.s32.totalorder %s10, 0
    %p124 = por %p122, %p123
    %p125 = scmp.ne.s32.totalorder %s114, %s117
    %p126 = scmp.eq.s32.totalorder %s15, 1
    %p127 = por %p125, %p126
    %p128 = scmp.ne.s32.totalorder %s117, %s118
    %p129 = scmp.eq.s32.totalorder %s15, 0
    %p130 = por %p128, %p129
    %p131 = scmp.ne.s32.totalorder %s117, %s118
    %p132 = scmp.eq.s32.totalorder %s16, 1
    %p133 = por %p131, %p132
    %p135 = scmp.ne.s32.totalorder %s118, %s134
    %p136 = scmp.eq.s32.totalorder %s16, 0
    %p137 = por %p135, %p136
    %p138 = scmp.le.s32.totalorder 1, %s10
    %p139 = scmp.lt.s32.totalorder %s10, 3
    %p140 = pnand %p138, %p139
    %p141 = pneg %p140
    // Predicated region
    $region9: #{model_forward.15} parent=5 // pred_check
      _
    $region10: #{model_forward.15} parent=5 // pred_check_branch
      %143 = sbr.rel (%p140) target = $region12
    $region11: #{model_forward.15} parent=5 // pred_region
      %s144 = ssub.s32 %s10, 1
      // Predicated region
      $region13: #{model_forward.15} parent=11 // pred_check
        %p145 = pneg %p57
      $region14: #{model_forward.15} parent=11 // pred_check_branch
        %147 = sbr.rel (%p145) target = $region16
      $region15: #{model_forward.15} parent=11 // pred_region
        _
      $region16: #{model_forward.15} parent=11 // pred_fallthru
        _
      // Predicated region
      $region17: #{model_forward.15} parent=11 // pred_check
        %p148 = pneg %p78
      $region18: #{model_forward.15} parent=11 // pred_check_branch
        %150 = sbr.rel (%p148) target = $region20
      $region19: #{model_forward.15} parent=11 // pred_region
        _
      $region20: #{model_forward.15} parent=11 // pred_fallthru
        _
    $region12: #{model_forward.15} parent=5 // pred_fallthru
      _
    %p151 = scmp.lt.s32.totalorder %s10, 2
    // Predicated region
    $region21: #{model_forward.15} parent=5 // pred_check
      %p152 = pneg %p151
    $region22: #{model_forward.15} parent=5 // pred_check_branch
      %154 = sbr.rel (%p152) target = $region24
    $region23: #{model_forward.15} parent=5 // pred_region
      // Predicated region
      $region25: #{model_forward.15} parent=23 // pred_check
        %p155 = pneg %p30
      $region26: #{model_forward.15} parent=23 // pred_check_branch
        %157 = sbr.rel (%p155) target = $region28
      $region27: #{model_forward.15} parent=23 // pred_region
        %s158 = smul.u32 8, %s10
        %p159 = scmp.lt.s32.totalorder %s158, 15
        %s160 = scalar_select %p159, %s158, 15
        %s161 = smul.addr %s160, 4
        %s162 = scalar_lea.vmem %s0, %s161
        %s163 = smul.u32 8, %s10
      $region28: #{model_forward.15} parent=23 // pred_fallthru
        _
      // Predicated region
      $region29: #{model_forward.15} parent=23 // pred_check
        %p164 = pneg %p98
      $region30: #{model_forward.15} parent=23 // pred_check_branch
        %166 = sbr.rel (%p164) target = $region32
      $region31: #{model_forward.15} parent=23 // pred_region
        %s167 = smul.u32 8, %s10
        %p168 = scmp.lt.s32.totalorder %s167, 15
        %s169 = scalar_select %p168, %s167, 15
        %s170 = smul.addr %s169, 8
        %s171 = scalar_lea.vmem %s3, %s170
        %s172 = smul.u32 8, %s10
      $region32: #{model_forward.15} parent=23 // pred_fallthru
        _
    $region24: #{model_forward.15} parent=5 // pred_fallthru
      _
    %p173 = scmp.le.s32.totalorder 1, %s10
    %p174 = scmp.lt.s32.totalorder %s10, 3
    %p175 = pnand %p173, %p174
    %p176 = pneg %p175
    // Predicated region
    $region33: #{model_forward.15} parent=5 // pred_check
      _
    $region34: #{model_forward.15} parent=5 // pred_check_branch
      %178 = sbr.rel (%p175) target = $region36
    $region35: #{model_forward.15} parent=5 // pred_region
      %s179 = ssub.s32 %s10, 1
      %s180 = smul.u32 8, %s15
      %p181 = scmp.lt.s32.totalorder %s180, 15
      %s182 = scalar_select %p181, %s180, 15
      %s183 = smul.addr %s182, 4
      %s184 = scalar_lea.vmem %s0, %s183
      %p185 = pneg %p36
      %p186 = pneg %p33
      %p187 = pneg %p57
      %p188 = pneg %p54
      %p189 = pneg %p78
      %p190 = pneg %p75
      %s191 = smul.u32 8, %s15
      %p192 = scmp.lt.s32.totalorder %s191, 15
      %s193 = scalar_select %p192, %s191, 15
      %s194 = smul.addr %s193, 8
      %s195 = scalar_lea.vmem %s3, %s194
      %p196 = pneg %p104
      %p197 = pneg %p101
      %p198 = pneg %p130
      %p199 = pneg %p127
      %s200 = smul.u32 8, %s15
      %p201 = scmp.lt.s32.totalorder %s200, 15
      %s202 = scalar_select %p201, %s200, 15
      %s203 = smul.addr %s202, 8
      %s204 = scalar_lea.vmem %s4, %s203
      %s205 = smul.u32 8, %s15
      %p206 = scmp.lt.s32.totalorder %s205, 15
      %s207 = scalar_select %p206, %s205, 15
      %s208 = smul.addr %s207, 4
      %s209 = scalar_lea.vmem %s0, %s208
      %s210 = smul.u32 8, %s15
      %s211 = smul.u32 8, %s15
      %p212 = scmp.lt.s32.totalorder %s211, 15
      %s213 = scalar_select %p212, %s211, 15
      %s214 = smul.addr %s213, 8
      %s215 = scalar_lea.vmem %s3, %s214
      %s216 = smul.u32 8, %s15
      %s217 = smul.u32 8, %s15
      %p218 = scmp.lt.s32.totalorder %s217, 15
      %s219 = scalar_select %p218, %s217, 15
      %s220 = smul.addr %s219, 8
      %s221 = scalar_lea.vmem %s4, %s220
      %s222 = smul.u32 8, %s15
      %v223 = vld [vmem:[%s209] sm:$0xf]
      %v224 = vld [vmem:[%s209 + $0x4] sm:$0xf]
      %v225 = vld [vmem:[%s209 + $0x8] sm:$0xf]
      %v226 = vld [vmem:[%s209 + $0xc] sm:$0xf]
      %v227 = vld [vmem:[%s209 + $0x10] sm:$0xf]
      %v228 = vld [vmem:[%s209 + $0x14] sm:$0xf]
      %v229 = vld [vmem:[%s209 + $0x18] sm:$0xf]
      %v230 = vld [vmem:[%s209 + $0x1c] sm:$0xf]
      %v231 = vunpack.c.l.bf16 %v223
      %v232 = vunpack.c.l.bf16 %v224
      %v233 = vunpack.c.l.bf16 %v225
      %v234 = vunpack.c.l.bf16 %v226
      %v235 = vunpack.c.l.bf16 %v227
      %v236 = vunpack.c.l.bf16 %v228
      %v237 = vunpack.c.l.bf16 %v229
      %v238 = vunpack.c.l.bf16 %v230
      %v239 = vmul.f32 %v231, 0.5
      %v240 = vmul.f32 %v232, 0.5
      %v241 = vmul.f32 %v233, 0.5
      %v242 = vmul.f32 %v234, 0.5
      %v243 = vmul.f32 %v235, 0.5
      %v244 = vmul.f32 %v236, 0.5
      %v245 = vmul.f32 %v237, 0.5
      %v246 = vmul.f32 %v238, 0.5
      %v247 = vmul.f32 %v231, 0.70710677
      %v248 = vmul.f32 %v232, 0.70710677
      %v249 = vmul.f32 %v233, 0.70710677
      %v250 = vmul.f32 %v234, 0.70710677
      %v251 = vmul.f32 %v235, 0.70710677
      %v252 = vmul.f32 %v236, 0.70710677
      %v253 = vmul.f32 %v237, 0.70710677
      %v254 = vmul.f32 %v238, 0.70710677
      %vm255 = vcmp.ge.f32.partialorder %v247, 0.0
      %vm256 = vcmp.ge.f32.partialorder %v248, 0.0
      %vm257 = vcmp.ge.f32.partialorder %v249, 0.0
      %vm258 = vcmp.ge.f32.partialorder %v250, 0.0
      %vm259 = vcmp.ge.f32.partialorder %v251, 0.0
      %vm260 = vcmp.ge.f32.partialorder %v252, 0.0
      %vm261 = vcmp.ge.f32.partialorder %v253, 0.0
      %vm262 = vcmp.ge.f32.partialorder %v254, 0.0
      %v263 = vsel %vm255, 1.0, -1.0
      %v264 = vsel %vm256, 1.0, -1.0
      %v265 = vsel %vm257, 1.0, -1.0
      %v266 = vsel %vm258, 1.0, -1.0
      %v267 = vsel %vm259, 1.0, -1.0
      %v268 = vsel %vm260, 1.0, -1.0
      %v269 = vsel %vm261, 1.0, -1.0
      %v270 = vsel %vm262, 1.0, -1.0
      %v271 = vand.u32 2147483647, %v247
      %v272 = vand.u32 2147483647, %v248
      %v273 = vand.u32 2147483647, %v249
      %v274 = vand.u32 2147483647, %v250
      %v275 = vand.u32 2147483647, %v251
      %v276 = vand.u32 2147483647, %v252
      %v277 = vand.u32 2147483647, %v253
      %v278 = vand.u32 2147483647, %v254
      %v279 = vmul.f32 %v271, 0.3275911
      %v280 = vmul.f32 %v272, 0.3275911
      %v281 = vmul.f32 %v273, 0.3275911
      %v282 = vmul.f32 %v274, 0.3275911
      %v283 = vmul.f32 %v275, 0.3275911
      %v284 = vmul.f32 %v276, 0.3275911
      %v285 = vmul.f32 %v277, 0.3275911
      %v286 = vmul.f32 %v278, 0.3275911
      %v287 = vadd.f32 %v279, 1.0
      %v288 = vadd.f32 %v280, 1.0
      %v289 = vadd.f32 %v281, 1.0
      %v290 = vadd.f32 %v282, 1.0
      %v291 = vadd.f32 %v283, 1.0
      %v292 = vadd.f32 %v284, 1.0
      %v293 = vadd.f32 %v285, 1.0
      %v294 = vadd.f32 %v286, 1.0
      %v295 = vrcp.pop %v287
      %v296 = vmul.f32 %v287, %v295
      %v297 = vsub.f32 1.0, %v296
      %v298 = vmul.f32 %v295, %v297
      %v299 = vadd.f32 %v295, %v298
      %vm300 = vweird.f32 %v287
      %vm301 = vweird.f32 %v295
      %vm302 = vmor %vm300, %vm301
      %v303 = vsel %vm302, %v295, %v299
      %v304 = vand.u32 2147483647, %v287
      %vm305 = vcmp.eq.f32.partialorder %v304, 8.507059e+37
      %v306 = vand.u32 %v287, 2147483648
      %v307 = vor.u32 1.1754944e-38, %v306
      %v308 = vsel %vm305, %v307, %v303
      %v309 = vmul.f32 1.0, %v308
      %v310 = vrcp.pop %v288
      %v311 = vmul.f32 %v288, %v310
      %v312 = vsub.f32 1.0, %v311
      %v313 = vmul.f32 %v310, %v312
      %v314 = vadd.f32 %v310, %v313
      %vm315 = vweird.f32 %v288
      %vm316 = vweird.f32 %v310
      %vm317 = vmor %vm315, %vm316
      %v318 = vsel %vm317, %v310, %v314
      %v319 = vand.u32 2147483647, %v288
      %vm320 = vcmp.eq.f32.partialorder %v319, 8.507059e+37
      %v321 = vand.u32 %v288, 2147483648
      %v322 = vor.u32 1.1754944e-38, %v321
      %v323 = vsel %vm320, %v322, %v318
      %v324 = vmul.f32 1.0, %v323
      %v325 = vrcp.pop %v289
      %v326 = vmul.f32 %v289, %v325
      %v327 = vsub.f32 1.0, %v326
      %v328 = vmul.f32 %v325, %v327
      %v329 = vadd.f32 %v325, %v328
      %vm330 = vweird.f32 %v289
      %vm331 = vweird.f32 %v325
      %vm332 = vmor %vm330, %vm331
      %v333 = vsel %vm332, %v325, %v329
      %v334 = vand.u32 2147483647, %v289
      %vm335 = vcmp.eq.f32.partialorder %v334, 8.507059e+37
      %v336 = vand.u32 %v289, 2147483648
      %v337 = vor.u32 1.1754944e-38, %v336
      %v338 = vsel %vm335, %v337, %v333
      %v339 = vmul.f32 1.0, %v338
      %v340 = vrcp.pop %v290
      %v341 = vmul.f32 %v290, %v340
      %v342 = vsub.f32 1.0, %v341
      %v343 = vmul.f32 %v340, %v342
      %v344 = vadd.f32 %v340, %v343
      %vm345 = vweird.f32 %v290
      %vm346 = vweird.f32 %v340
      %vm347 = vmor %vm345, %vm346
      %v348 = vsel %vm347, %v340, %v344
      %v349 = vand.u32 2147483647, %v290
      %vm350 = vcmp.eq.f32.partialorder %v349, 8.507059e+37
      %v351 = vand.u32 %v290, 2147483648
      %v352 = vor.u32 1.1754944e-38, %v351
      %v353 = vsel %vm350, %v352, %v348
      %v354 = vmul.f32 1.0, %v353
      %v355 = vrcp.pop %v291
      %v356 = vmul.f32 %v291, %v355
      %v357 = vsub.f32 1.0, %v356
      %v358 = vmul.f32 %v355, %v357
      %v359 = vadd.f32 %v355, %v358
      %vm360 = vweird.f32 %v291
      %vm361 = vweird.f32 %v355
      %vm362 = vmor %vm360, %vm361
      %v363 = vsel %vm362, %v355, %v359
      %v364 = vand.u32 2147483647, %v291
      %vm365 = vcmp.eq.f32.partialorder %v364, 8.507059e+37
      %v366 = vand.u32 %v291, 2147483648
      %v367 = vor.u32 1.1754944e-38, %v366
      %v368 = vsel %vm365, %v367, %v363
      %v369 = vmul.f32 1.0, %v368
      %v370 = vrcp.pop %v292
      %v371 = vmul.f32 %v292, %v370
      %v372 = vsub.f32 1.0, %v371
      %v373 = vmul.f32 %v370, %v372
      %v374 = vadd.f32 %v370, %v373
      %vm375 = vweird.f32 %v292
      %vm376 = vweird.f32 %v370
      %vm377 = vmor %vm375, %vm376
      %v378 = vsel %vm377, %v370, %v374
      %v379 = vand.u32 2147483647, %v292
      %vm380 = vcmp.eq.f32.partialorder %v379, 8.507059e+37
      %v381 = vand.u32 %v292, 2147483648
      %v382 = vor.u32 1.1754944e-38, %v381
      %v383 = vsel %vm380, %v382, %v378
      %v384 = vmul.f32 1.0, %v383
      %v385 = vrcp.pop %v293
      %v386 = vmul.f32 %v293, %v385
      %v387 = vsub.f32 1.0, %v386
      %v388 = vmul.f32 %v385, %v387
      %v389 = vadd.f32 %v385, %v388
      %vm390 = vweird.f32 %v293
      %vm391 = vweird.f32 %v385
      %vm392 = vmor %vm390, %vm391
      %v393 = vsel %vm392, %v385, %v389
      %v394 = vand.u32 2147483647, %v293
      %vm395 = vcmp.eq.f32.partialorder %v394, 8.507059e+37
      %v396 = vand.u32 %v293, 2147483648
      %v397 = vor.u32 1.1754944e-38, %v396
      %v398 = vsel %vm395, %v397, %v393
      %v399 = vmul.f32 1.0, %v398
      %v400 = vrcp.pop %v294
      %v401 = vmul.f32 %v294, %v400
      %v402 = vsub.f32 1.0, %v401
      %v403 = vmul.f32 %v400, %v402
      %v404 = vadd.f32 %v400, %v403
      %vm405 = vweird.f32 %v294
      %vm406 = vweird.f32 %v400
      %vm407 = vmor %vm405, %vm406
      %v408 = vsel %vm407, %v400, %v404
      %v409 = vand.u32 2147483647, %v294
      %vm410 = vcmp.eq.f32.partialorder %v409, 8.507059e+37
      %v411 = vand.u32 %v294, 2147483648
      %v412 = vor.u32 1.1754944e-38, %v411
      %v413 = vsel %vm410, %v412, %v408
      %v414 = vmul.f32 1.0, %v413
      %v415 = vmul.f32 %v309, 1.0614054
      %v416 = vmul.f32 %v324, 1.0614054
      %v417 = vmul.f32 %v339, 1.0614054
      %v418 = vmul.f32 %v354, 1.0614054
      %v419 = vmul.f32 %v369, 1.0614054
      %v420 = vmul.f32 %v384, 1.0614054
      %v421 = vmul.f32 %v399, 1.0614054
      %v422 = vmul.f32 %v414, 1.0614054
      %v423 = vadd.f32 %v415, -1.4531521
      %v424 = vadd.f32 %v416, -1.4531521
      %v425 = vadd.f32 %v417, -1.4531521
      %v426 = vadd.f32 %v418, -1.4531521
      %v427 = vadd.f32 %v419, -1.4531521
      %v428 = vadd.f32 %v420, -1.4531521
      %v429 = vadd.f32 %v421, -1.4531521
      %v430 = vadd.f32 %v422, -1.4531521
      %v431 = vmul.f32 %v423, %v309
      %v432 = vmul.f32 %v424, %v324
      %v433 = vmul.f32 %v425, %v339
      %v434 = vmul.f32 %v426, %v354
      %v435 = vmul.f32 %v427, %v369
      %v436 = vmul.f32 %v428, %v384
      %v437 = vmul.f32 %v429, %v399
      %v438 = vmul.f32 %v430, %v414
      %v439 = vadd.f32 %v431, 1.4214138
      %v440 = vadd.f32 %v432, 1.4214138
      %v441 = vadd.f32 %v433, 1.4214138
      %v442 = vadd.f32 %v434, 1.4214138
      %v443 = vadd.f32 %v435, 1.4214138
      %v444 = vadd.f32 %v436, 1.4214138
      %v445 = vadd.f32 %v437, 1.4214138
      %v446 = vadd.f32 %v438, 1.4214138
      %v447 = vmul.f32 %v439, %v309
      %v448 = vmul.f32 %v440, %v324
      %v449 = vmul.f32 %v441, %v339
      %v450 = vmul.f32 %v442, %v354
      %v451 = vmul.f32 %v443, %v369
      %v452 = vmul.f32 %v444, %v384
      %v453 = vmul.f32 %v445, %v399
      %v454 = vmul.f32 %v446, %v414
      %v455 = vadd.f32 %v447, -0.28449672
      %v456 = vadd.f32 %v448, -0.28449672
      %v457 = vadd.f32 %v449, -0.28449672
      %v458 = vadd.f32 %v450, -0.28449672
      %v459 = vadd.f32 %v451, -0.28449672
      %v460 = vadd.f32 %v452, -0.28449672
      %v461 = vadd.f32 %v453, -0.28449672
      %v462 = vadd.f32 %v454, -0.28449672
      %v463 = vmul.f32 %v455, %v309
      %v464 = vmul.f32 %v456, %v324
      %v465 = vmul.f32 %v457, %v339
      %v466 = vmul.f32 %v458, %v354
      %v467 = vmul.f32 %v459, %v369
      %v468 = vmul.f32 %v460, %v384
      %v469 = vmul.f32 %v461, %v399
      %v470 = vmul.f32 %v462, %v414
      %v471 = vadd.f32 %v463, 0.2548296
      %v472 = vadd.f32 %v464, 0.2548296
      %v473 = vadd.f32 %v465, 0.2548296
      %v474 = vadd.f32 %v466, 0.2548296
      %v475 = vadd.f32 %v467, 0.2548296
      %v476 = vadd.f32 %v468, 0.2548296
      %v477 = vadd.f32 %v469, 0.2548296
      %v478 = vadd.f32 %v470, 0.2548296
      %v479 = vmul.f32 %v471, %v309
      %v480 = vmul.f32 %v472, %v324
      %v481 = vmul.f32 %v473, %v339
      %v482 = vmul.f32 %v474, %v354
      %v483 = vmul.f32 %v475, %v369
      %v484 = vmul.f32 %v476, %v384
      %v485 = vmul.f32 %v477, %v399
      %v486 = vmul.f32 %v478, %v414
      %v487 = vsub.f32 0.0, %v271
      %v488 = vsub.f32 0.0, %v272
      %v489 = vsub.f32 0.0, %v273
      %v490 = vsub.f32 0.0, %v274
      %v491 = vsub.f32 0.0, %v275
      %v492 = vsub.f32 0.0, %v276
      %v493 = vsub.f32 0.0, %v277
      %v494 = vsub.f32 0.0, %v278
      %v495 = vmul.f32 %v487, %v271
      %v496 = vmul.f32 %v488, %v272
      %v497 = vmul.f32 %v489, %v273
      %v498 = vmul.f32 %v490, %v274
      %v499 = vmul.f32 %v491, %v275
      %v500 = vmul.f32 %v492, %v276
      %v501 = vmul.f32 %v493, %v277
      %v502 = vmul.f32 %v494, %v278
      %v503 = vmul.f32 %v495, 1.442695
      %v504 = vpow.pop %v503
      %v505 = vmul.f32 %v496, 1.442695
      %v506 = vpow.pop %v505
      %v507 = vmul.f32 %v497, 1.442695
      %v508 = vpow.pop %v507
      %v509 = vmul.f32 %v498, 1.442695
      %v510 = vpow.pop %v509
      %v511 = vmul.f32 %v499, 1.442695
      %v512 = vpow.pop %v511
      %v513 = vmul.f32 %v500, 1.442695
      %v514 = vpow.pop %v513
      %v515 = vmul.f32 %v501, 1.442695
      %v516 = vpow.pop %v515
      %v517 = vmul.f32 %v502, 1.442695
      %v518 = vpow.pop %v517
      %v519 = vmul.f32 %v479, %v504
      %v520 = vmul.f32 %v480, %v506
      %v521 = vmul.f32 %v481, %v508
      %v522 = vmul.f32 %v482, %v510
      %v523 = vmul.f32 %v483, %v512
      %v524 = vmul.f32 %v484, %v514
      %v525 = vmul.f32 %v485, %v516
      %v526 = vmul.f32 %v486, %v518
      %v527 = vsub.f32 1.0, %v519
      %v528 = vsub.f32 1.0, %v520
      %v529 = vsub.f32 1.0, %v521
      %v530 = vsub.f32 1.0, %v522
      %v531 = vsub.f32 1.0, %v523
      %v532 = vsub.f32 1.0, %v524
      %v533 = vsub.f32 1.0, %v525
      %v534 = vsub.f32 1.0, %v526
      %v535 = vmul.f32 %v263, %v527
      %v536 = vmul.f32 %v264, %v528
      %v537 = vmul.f32 %v265, %v529
      %v538 = vmul.f32 %v266, %v530
      %v539 = vmul.f32 %v267, %v531
      %v540 = vmul.f32 %v268, %v532
      %v541 = vmul.f32 %v269, %v533
      %v542 = vmul.f32 %v270, %v534
      %v543 = vadd.f32 %v535, 1.0
      %v544 = vadd.f32 %v536, 1.0
      %v545 = vadd.f32 %v537, 1.0
      %v546 = vadd.f32 %v538, 1.0
      %v547 = vadd.f32 %v539, 1.0
      %v548 = vadd.f32 %v540, 1.0
      %v549 = vadd.f32 %v541, 1.0
      %v550 = vadd.f32 %v542, 1.0
      %v551 = vmul.f32 %v239, %v543
      %v552 = vmul.f32 %v240, %v544
      %v553 = vmul.f32 %v241, %v545
      %v554 = vmul.f32 %v242, %v546
      %v555 = vmul.f32 %v243, %v547
      %v556 = vmul.f32 %v244, %v548
      %v557 = vmul.f32 %v245, %v549
      %v558 = vmul.f32 %v246, %v550
      %v559 = vpack.c.bf16 %v552, %v551
      %v560 = vpack.c.bf16 %v554, %v553
      %v561 = vpack.c.bf16 %v556, %v555
      %v562 = vpack.c.bf16 %v558, %v557
      %v563 = vld [vmem:[%s1] sm:$0xf]
      %v564 = vld [vmem:[%s1 + $0x4] sm:$0xf]
      %v565 = vld [vmem:[%s1 + $0x8] sm:$0xf]
      %v566 = vld [vmem:[%s1 + $0xc] sm:$0xf]
      %v567 = vld [vmem:[%s1 + $0x10] sm:$0xf]
      %v568 = vld [vmem:[%s1 + $0x14] sm:$0xf]
      %v569 = vld [vmem:[%s1 + $0x18] sm:$0xf]
      %v570 = vld [vmem:[%s1 + $0x1c] sm:$0xf]
      %v571 = vld [vmem:[%s1 + $0x20] sm:$0xf]
      %v572 = vld [vmem:[%s1 + $0x24] sm:$0xf]
      %v573 = vld [vmem:[%s1 + $0x28] sm:$0xf]
      %v574 = vld [vmem:[%s1 + $0x2c] sm:$0xf]
      %v575 = vld [vmem:[%s1 + $0x30] sm:$0xf]
      %v576 = vld [vmem:[%s1 + $0x34] sm:$0xf]
      %v577 = vld [vmem:[%s1 + $0x38] sm:$0xf]
      %v578 = vld [vmem:[%s1 + $0x3c] sm:$0xf]
      %v595 = vunpack.c.l.b16 %v563
      %v596 = vunpack.c.l.b16 %v564
      %v597 = vunpack.c.l.b16 %v565
      %v598 = vunpack.c.l.b16 %v566
      %v599 = vunpack.c.l.b16 %v567
      %v600 = vunpack.c.l.b16 %v568
      %v601 = vunpack.c.l.b16 %v569
      %v602 = vunpack.c.l.b16 %v570
      %v603 = vunpack.c.l.b16 %v571
      %v604 = vunpack.c.l.b16 %v572
      %v605 = vunpack.c.l.b16 %v573
      %v606 = vunpack.c.l.b16 %v574
      %v607 = vunpack.c.l.b16 %v575
      %v608 = vunpack.c.l.b16 %v576
      %v609 = vunpack.c.l.b16 %v577
      %v610 = vunpack.c.l.b16 %v578
      %v611 = vpack.c.b16 %v596, %v595
      %v612 = vpack.c.b16 %v598, %v597
      %v613 = vpack.c.b16 %v600, %v599
      %v614 = vpack.c.b16 %v602, %v601
      %v615 = vpack.c.b16 %v604, %v603
      %v616 = vpack.c.b16 %v606, %v605
      %v617 = vpack.c.b16 %v608, %v607
      %v618 = vpack.c.b16 %v610, %v609
      %627 = vmatpush.bf16.msra.mxu0 %v618
      %628 = vmatpush.bf16.msra.mxu0 %v617
      %629 = vmatpush.bf16.msra.mxu0 %v616
      %630 = vmatpush.bf16.msra.mxu0 %v615
      %631 = vmatpush.bf16.msra.mxu0 %v614
      %632 = vmatpush.bf16.msra.mxu0 %v613
      %633 = vmatpush.bf16.msra.mxu0 %v612
      %634 = vmatpush.bf16.msra.mxu0 %v611
      %635 = vmatmul.bf16.gmra.mxu0 %v559
      %v636 = vpop.f32.mrf.mxu0
      %v637 = vadd.f32 0.0, %v636
      %v638 = vpop.f32.mrf.mxu0
      %v639 = vadd.f32 0.0, %v638
      %640 = vmatmul.bf16.gmra.mxu0 %v560
      %v641 = vpop.f32.mrf.mxu0
      %v642 = vadd.f32 0.0, %v641
      %v643 = vpop.f32.mrf.mxu0
      %v644 = vadd.f32 0.0, %v643
      %645 = vmatmul.bf16.gmra.mxu0 %v561
      %v646 = vpop.f32.mrf.mxu0
      %v647 = vadd.f32 0.0, %v646
      %v648 = vpop.f32.mrf.mxu0
      %v649 = vadd.f32 0.0, %v648
      %650 = vmatmul.bf16.gmra.mxu0 %v562
      %v651 = vpop.f32.mrf.mxu0
      %v652 = vadd.f32 0.0, %v651
      %v653 = vpop.f32.mrf.mxu0
      %v654 = vadd.f32 0.0, %v653
      %655 = vdwg.mxu0
      %v656 = vld [vmem:[%s215] sm:$0xff]
      %v657 = vld [vmem:[%s215 + $0x8] sm:$0xff]
      %v658 = vld [vmem:[%s215 + $0x10] sm:$0xff]
      %v659 = vld [vmem:[%s215 + $0x18] sm:$0xff]
      %v660 = vld [vmem:[%s215 + $0x20] sm:$0xff]
      %v661 = vld [vmem:[%s215 + $0x28] sm:$0xff]
      %v662 = vld [vmem:[%s215 + $0x30] sm:$0xff]
      %v663 = vld [vmem:[%s215 + $0x38] sm:$0xff]
      %v664 = vadd.f32 %v656, %v637
      %v665 = vadd.f32 %v657, %v639
      %v666 = vadd.f32 %v658, %v642
      %v667 = vadd.f32 %v659, %v644
      %v668 = vadd.f32 %v660, %v647
      %v669 = vadd.f32 %v661, %v649
      %v670 = vadd.f32 %v662, %v652
      %v671 = vadd.f32 %v663, %v654
      %v672 = vld [vmem:[%s2] sm:$0x1]
      %v674 = vperm.slane %v672, 0
      %v676 = vadd.f32 %v664, %v674
      %v677 = vadd.f32 %v665, %v674
      %v678 = vadd.f32 %v666, %v674
      %v679 = vadd.f32 %v667, %v674
      %v680 = vadd.f32 %v668, %v674
      %v681 = vadd.f32 %v669, %v674
      %v682 = vadd.f32 %v670, %v674
      %v683 = vadd.f32 %v671, %v674
      %vm684 = vcmask 261120
      %685 = vst.msk [vmem:[%s221] sm:$0xff] %vm684, %v676
      %686 = vst.msk [vmem:[%s221 + $0x8] sm:$0xff] %vm684, %v677
      %687 = vst.msk [vmem:[%s221 + $0x10] sm:$0xff] %vm684, %v678
      %688 = vst.msk [vmem:[%s221 + $0x18] sm:$0xff] %vm684, %v679
      %689 = vst.msk [vmem:[%s221 + $0x20] sm:$0xff] %vm684, %v680
      %690 = vst.msk [vmem:[%s221 + $0x28] sm:$0xff] %vm684, %v681
      %691 = vst.msk [vmem:[%s221 + $0x30] sm:$0xff] %vm684, %v682
      %692 = vst.msk [vmem:[%s221 + $0x38] sm:$0xff] %vm684, %v683
      %s693 = smul.u32 8, %s15
      %p694 = scmp.lt.s32.totalorder %s693, 15
      %s695 = scalar_select %p694, %s693, 15
      %s696 = smul.addr %s695, 8
      %s697 = scalar_lea.vmem %s4, %s696
      // Predicated region
      $region37: #{model_forward.15} parent=35 // pred_check
        %p698 = pneg %p127
      $region38: #{model_forward.15} parent=35 // pred_check_branch
        %700 = sbr.rel (%p698) target = $region40
      $region39: #{model_forward.15} parent=35 // pred_region
        %s701 = smul.u32 8, %s15
      $region40: #{model_forward.15} parent=35 // pred_fallthru
        _
    $region36: #{model_forward.15} parent=5 // pred_fallthru
      _
    %p702 = scmp.le.s32.totalorder 2, %s10
    // Predicated region
    $region41: #{model_forward.15} parent=5 // pred_check
      %p703 = pneg %p702
    $region42: #{model_forward.15} parent=5 // pred_check_branch
      %705 = sbr.rel (%p703) target = $region44
    $region43: #{model_forward.15} parent=5 // pred_region
      %s706 = ssub.s32 %s10, 2
      // Predicated region
      $region45: #{model_forward.15} parent=43 // pred_check
        %p707 = pneg %p133
      $region46: #{model_forward.15} parent=43 // pred_check_branch
        %709 = sbr.rel (%p707) target = $region48
      $region47: #{model_forward.15} parent=43 // pred_region
        %s710 = smul.u32 8, %s16
        %p711 = scmp.lt.s32.totalorder %s710, 15
        %s712 = scalar_select %p711, %s710, 15
        %s713 = smul.addr %s712, 8
        %s714 = scalar_lea.vmem %s4, %s713
      $region48: #{model_forward.15} parent=43 // pred_fallthru
        _
    $region44: #{model_forward.15} parent=5 // pred_fallthru
      _
  $region6: #{model_forward.15} parent=0 // loop_footer
    %s14 = sadd.s32 1, %s10
  $region7: #{model_forward.15} parent=0 // loop_footer_branch
    %9 = sbr.rel target = $region3
  $region8: #{model_forward.15} parent=0 // loop_exit
    _

// kernel: model_forward.14
$region0: #{model_forward.14}
  #allocation0 [shape = 'u32[]', space=smem, size = 0x4, offset = 0x4, fixed_abs, tag = 'smem constant byte address 0x4 - core index']
  #allocation1 [shape = 'u32[72,128]{1,0:T(1,128)}', space=vmem, size = 0x9000, scoped, tag = 'internal scratch']
  %s0 = inlined_call_operand.vmem [shape: bf16[128,32], index: 0, kind: input, shape index: {}]
  %s1 = inlined_call_operand.vmem [shape: bf16[32,32], index: 1, kind: input, shape index: {}]
  %s2 = inlined_call_operand.vmem [shape: f32[1,32], index: 2, kind: input, shape index: {}]
  %s3 = inlined_call_operand.vmem [shape: f32[128,32], index: 3, kind: input, shape index: {}]
  %s4 = inlined_call_operand.vmem [shape: f32[1,32], index: 4, kind: input, shape index: {}]
  %s5 = inlined_call_operand.vmem [shape: f32[1,32], index: 5, kind: input, shape index: {}]
  %s6 = inlined_call_operand.vmem [shape: bf16[32,128], index: 6, kind: input, shape index: {}]
  %s7 = inlined_call_operand.vmem [shape: f32[1,128], index: 7, kind: input, shape index: {}]
  %s8 = inlined_call_operand.vmem [shape: f32[128,32], index: 8, kind: output, shape index: {0}]
  %s9 = inlined_call_operand.vmem [shape: bf16[128,128], index: 9, kind: output, shape index: {1}]
  %10 = xla_tuple %s8, %s9
  %s11 = sld [smem:[#allocation0]]
  $region73: #{model_forward.14} parent=0
    _
  %s13 = ssub.s32 1, %s11
  %s14 = scalar_select 0, %s13, %s11
  loop: start=0, step=1, limit=4
  $region2: #{model_forward.14} parent=0 // loop_pre_header
    _
  $region3: #{model_forward.14} parent=0 // loop_header
    %s16 = sphi 0, %s20
    %p17 = scmp.ge.s32.totalorder %s16, 4
    %s26 = sphi 0, %s28
    %s29 = sphi 0, %s26
    %s30 = sphi 0, %s29
    %s46 = sphi 0, %s30
    %s50 = sphi 0, %s50
    %s52 = sphi 0, %s50
    %s53 = sphi 0, %s52
    %s67 = sphi 0, %s53
    %s71 = sphi 0, %s71
    %s73 = sphi 0, %s71
    %s74 = sphi 0, %s73
    %s88 = sphi 0, %s74
    %s94 = sphi 0, %s96
    %s97 = sphi 0, %s94
    %s98 = sphi 0, %s97
    %s114 = sphi 0, %s98
    %s118 = sphi 0, %s118
    %s120 = sphi 0, %s118
    %s121 = sphi 0, %s120
    %s135 = sphi 0, %s121
    %s139 = sphi 0, %s139
    %s141 = sphi 0, %s139
    %s142 = sphi 0, %s141
    %s156 = sphi 0, %s142
    %s160 = sphi 0, %s160
    %s162 = sphi 0, %s160
    %s163 = sphi 0, %s162
    %s177 = sphi 0, %s163
    %s181 = sphi 0, %s181
    %s183 = sphi 0, %s181
    %s184 = sphi 0, %s183
    %s198 = sphi 0, %s184
    %s204 = sphi 0, %s206
    %s207 = sphi 0, %s204
    %s208 = sphi 0, %s207
    %s224 = sphi 0, %s208
    %s230 = sphi 0, %s232
    %s233 = sphi 0, %s230
    %s234 = sphi 0, %s233
    %s250 = sphi 0, %s234
  $region4: #{model_forward.14} parent=0 // loop_header_branch
    %19 = sbr.rel (%p17) target = $region8
  $region5: #{model_forward.14} parent=0 // loop_body
    %s21 = ssub.s32 %s16, 1
    %s22 = ssub.s32 %s16, 2
    %s23 = sadd.s32 %s16, 1
    %s24 = ssub.s32 %s16, %s23
    %p25 = scmp.eq.s32.totalorder %s24, 0
    %s27 = sadd.s32 %s26, 1
    %s28 = scalar_select %p25, %s26, %s27
    %p31 = pneg %p25
    %p32 = scmp.eq.s32.totalorder %s16, 1
    %p33 = por %p31, %p32
    %p34 = scmp.ne.s32.totalorder %s26, %s29
    %p35 = scmp.eq.s32.totalorder %s16, 0
    %p36 = por %p34, %p35
    %p37 = scmp.ne.s32.totalorder %s26, %s29
    %p38 = scmp.eq.s32.totalorder %s21, 1
    %p39 = por %p37, %p38
    %p40 = scmp.ne.s32.totalorder %s29, %s30
    %p41 = scmp.eq.s32.totalorder %s21, 0
    %p42 = por %p40, %p41
    %p43 = scmp.ne.s32.totalorder %s29, %s30
    %p44 = scmp.eq.s32.totalorder %s22, 1
    %p45 = por %p43, %p44
    %p47 = scmp.ne.s32.totalorder %s30, %s46
    %p48 = scmp.eq.s32.totalorder %s22, 0
    %p49 = por %p47, %p48
    %s51 = sadd.s32 %s50, 1
    %p54 = scmp.eq.s32.totalorder %s16, 1
    %p55 = scmp.ne.s32.totalorder %s50, %s52
    %p56 = scmp.eq.s32.totalorder %s16, 0
    %p57 = por %p55, %p56
    %p58 = scmp.ne.s32.totalorder %s50, %s52
    %p59 = scmp.eq.s32.totalorder %s21, 1
    %p60 = por %p58, %p59
    %p61 = scmp.ne.s32.totalorder %s52, %s53
    %p62 = scmp.eq.s32.totalorder %s21, 0
    %p63 = por %p61, %p62
    %p64 = scmp.ne.s32.totalorder %s52, %s53
    %p65 = scmp.eq.s32.totalorder %s22, 1
    %p66 = por %p64, %p65
    %p68 = scmp.ne.s32.totalorder %s53, %s67
    %p69 = scmp.eq.s32.totalorder %s22, 0
    %p70 = por %p68, %p69
    %s72 = sadd.s32 %s71, 1
    %p75 = scmp.eq.s32.totalorder %s16, 1
    %p76 = scmp.ne.s32.totalorder %s71, %s73
    %p77 = scmp.eq.s32.totalorder %s16, 0
    %p78 = por %p76, %p77
    %p79 = scmp.ne.s32.totalorder %s71, %s73
    %p80 = scmp.eq.s32.totalorder %s21, 1
    %p81 = por %p79, %p80
    %p82 = scmp.ne.s32.totalorder %s73, %s74
    %p83 = scmp.eq.s32.totalorder %s21, 0
    %p84 = por %p82, %p83
    %p85 = scmp.ne.s32.totalorder %s73, %s74
    %p86 = scmp.eq.s32.totalorder %s22, 1
    %p87 = por %p85, %p86
    %p89 = scmp.ne.s32.totalorder %s74, %s88
    %p90 = scmp.eq.s32.totalorder %s22, 0
    %p91 = por %p89, %p90
    %s92 = ssub.s32 %s16, %s23
    %p93 = scmp.eq.s32.totalorder %s92, 0
    %s95 = sadd.s32 %s94, 1
    %s96 = scalar_select %p93, %s94, %s95
    %p99 = pneg %p93
    %p100 = scmp.eq.s32.totalorder %s16, 1
    %p101 = por %p99, %p100
    %p102 = scmp.ne.s32.totalorder %s94, %s97
    %p103 = scmp.eq.s32.totalorder %s16, 0
    %p104 = por %p102, %p103
    %p105 = scmp.ne.s32.totalorder %s94, %s97
    %p106 = scmp.eq.s32.totalorder %s21, 1
    %p107 = por %p105, %p106
    %p108 = scmp.ne.s32.totalorder %s97, %s98
    %p109 = scmp.eq.s32.totalorder %s21, 0
    %p110 = por %p108, %p109
    %p111 = scmp.ne.s32.totalorder %s97, %s98
    %p112 = scmp.eq.s32.totalorder %s22, 1
    %p113 = por %p111, %p112
    %p115 = scmp.ne.s32.totalorder %s98, %s114
    %p116 = scmp.eq.s32.totalorder %s22, 0
    %p117 = por %p115, %p116
    %s119 = sadd.s32 %s118, 1
    %p122 = scmp.eq.s32.totalorder %s16, 1
    %p123 = scmp.ne.s32.totalorder %s118, %s120
    %p124 = scmp.eq.s32.totalorder %s16, 0
    %p125 = por %p123, %p124
    %p126 = scmp.ne.s32.totalorder %s118, %s120
    %p127 = scmp.eq.s32.totalorder %s21, 1
    %p128 = por %p126, %p127
    %p129 = scmp.ne.s32.totalorder %s120, %s121
    %p130 = scmp.eq.s32.totalorder %s21, 0
    %p131 = por %p129, %p130
    %p132 = scmp.ne.s32.totalorder %s120, %s121
    %p133 = scmp.eq.s32.totalorder %s22, 1
    %p134 = por %p132, %p133
    %p136 = scmp.ne.s32.totalorder %s121, %s135
    %p137 = scmp.eq.s32.totalorder %s22, 0
    %p138 = por %p136, %p137
    %s140 = sadd.s32 %s139, 1
    %p143 = scmp.eq.s32.totalorder %s16, 1
    %p144 = scmp.ne.s32.totalorder %s139, %s141
    %p145 = scmp.eq.s32.totalorder %s16, 0
    %p146 = por %p144, %p145
    %p147 = scmp.ne.s32.totalorder %s139, %s141
    %p148 = scmp.eq.s32.totalorder %s21, 1
    %p149 = por %p147, %p148
    %p150 = scmp.ne.s32.totalorder %s141, %s142
    %p151 = scmp.eq.s32.totalorder %s21, 0
    %p152 = por %p150, %p151
    %p153 = scmp.ne.s32.totalorder %s141, %s142
    %p154 = scmp.eq.s32.totalorder %s22, 1
    %p155 = por %p153, %p154
    %p157 = scmp.ne.s32.totalorder %s142, %s156
    %p158 = scmp.eq.s32.totalorder %s22, 0
    %p159 = por %p157, %p158
    %s161 = sadd.s32 %s160, 1
    %p164 = scmp.eq.s32.totalorder %s16, 1
    %p165 = scmp.ne.s32.totalorder %s160, %s162
    %p166 = scmp.eq.s32.totalorder %s16, 0
    %p167 = por %p165, %p166
    %p168 = scmp.ne.s32.totalorder %s160, %s162
    %p169 = scmp.eq.s32.totalorder %s21, 1
    %p170 = por %p168, %p169
    %p171 = scmp.ne.s32.totalorder %s162, %s163
    %p172 = scmp.eq.s32.totalorder %s21, 0
    %p173 = por %p171, %p172
    %p174 = scmp.ne.s32.totalorder %s162, %s163
    %p175 = scmp.eq.s32.totalorder %s22, 1
    %p176 = por %p174, %p175
    %p178 = scmp.ne.s32.totalorder %s163, %s177
    %p179 = scmp.eq.s32.totalorder %s22, 0
    %p180 = por %p178, %p179
    %s182 = sadd.s32 %s181, 1
    %p185 = scmp.eq.s32.totalorder %s16, 1
    %p186 = scmp.ne.s32.totalorder %s181, %s183
    %p187 = scmp.eq.s32.totalorder %s16, 0
    %p188 = por %p186, %p187
    %p189 = scmp.ne.s32.totalorder %s181, %s183
    %p190 = scmp.eq.s32.totalorder %s21, 1
    %p191 = por %p189, %p190
    %p192 = scmp.ne.s32.totalorder %s183, %s184
    %p193 = scmp.eq.s32.totalorder %s21, 0
    %p194 = por %p192, %p193
    %p195 = scmp.ne.s32.totalorder %s183, %s184
    %p196 = scmp.eq.s32.totalorder %s22, 1
    %p197 = por %p195, %p196
    %p199 = scmp.ne.s32.totalorder %s184, %s198
    %p200 = scmp.eq.s32.totalorder %s22, 0
    %p201 = por %p199, %p200
    %s202 = ssub.s32 %s16, %s23
    %p203 = scmp.eq.s32.totalorder %s202, 0
    %s205 = sadd.s32 %s204, 1
    %s206 = scalar_select %p203, %s204, %s205
    %p209 = pneg %p203
    %p210 = scmp.eq.s32.totalorder %s16, 1
    %p211 = por %p209, %p210
    %p212 = scmp.ne.s32.totalorder %s204, %s207
    %p213 = scmp.eq.s32.totalorder %s16, 0
    %p214 = por %p212, %p213
    %p215 = scmp.ne.s32.totalorder %s204, %s207
    %p216 = scmp.eq.s32.totalorder %s21, 1
    %p217 = por %p215, %p216
    %p218 = scmp.ne.s32.totalorder %s207, %s208
    %p219 = scmp.eq.s32.totalorder %s21, 0
    %p220 = por %p218, %p219
    %p221 = scmp.ne.s32.totalorder %s207, %s208
    %p222 = scmp.eq.s32.totalorder %s22, 1
    %p223 = por %p221, %p222
    %p225 = scmp.ne.s32.totalorder %s208, %s224
    %p226 = scmp.eq.s32.totalorder %s22, 0
    %p227 = por %p225, %p226
    %s228 = ssub.s32 %s16, %s23
    %p229 = scmp.eq.s32.totalorder %s228, 0
    %s231 = sadd.s32 %s230, 1
    %s232 = scalar_select %p229, %s230, %s231
    %p235 = pneg %p229
    %p236 = scmp.eq.s32.totalorder %s16, 1
    %p237 = por %p235, %p236
    %p238 = scmp.ne.s32.totalorder %s230, %s233
    %p239 = scmp.eq.s32.totalorder %s16, 0
    %p240 = por %p238, %p239
    %p241 = scmp.ne.s32.totalorder %s230, %s233
    %p242 = scmp.eq.s32.totalorder %s21, 1
    %p243 = por %p241, %p242
    %p244 = scmp.ne.s32.totalorder %s233, %s234
    %p245 = scmp.eq.s32.totalorder %s21, 0
    %p246 = por %p244, %p245
    %p247 = scmp.ne.s32.totalorder %s233, %s234
    %p248 = scmp.eq.s32.totalorder %s22, 1
    %p249 = por %p247, %p248
    %p251 = scmp.ne.s32.totalorder %s234, %s250
    %p252 = scmp.eq.s32.totalorder %s22, 0
    %p253 = por %p251, %p252
    %p254 = scmp.le.s32.totalorder 1, %s16
    %p255 = scmp.lt.s32.totalorder %s16, 3
    %p256 = pnand %p254, %p255
    %p257 = pneg %p256
    // Predicated region
    $region9: #{model_forward.14} parent=5 // pred_check
      _
    $region10: #{model_forward.14} parent=5 // pred_check_branch
      %259 = sbr.rel (%p256) target = $region12
    $region11: #{model_forward.14} parent=5 // pred_region
      %s260 = ssub.s32 %s16, 1
      // Predicated region
      $region13: #{model_forward.14} parent=11 // pred_check
        %p261 = pneg %p63
      $region14: #{model_forward.14} parent=11 // pred_check_branch
        %263 = sbr.rel (%p261) target = $region16
      $region15: #{model_forward.14} parent=11 // pred_region
        _
      $region16: #{model_forward.14} parent=11 // pred_fallthru
        _
      // Predicated region
      $region17: #{model_forward.14} parent=11 // pred_check
        %p264 = pneg %p84
      $region18: #{model_forward.14} parent=11 // pred_check_branch
        %266 = sbr.rel (%p264) target = $region20
      $region19: #{model_forward.14} parent=11 // pred_region
        _
      $region20: #{model_forward.14} parent=11 // pred_fallthru
        _
      // Predicated region
      $region21: #{model_forward.14} parent=11 // pred_check
        %p267 = pneg %p131
      $region22: #{model_forward.14} parent=11 // pred_check_branch
        %269 = sbr.rel (%p267) target = $region24
      $region23: #{model_forward.14} parent=11 // pred_region
        _
      $region24: #{model_forward.14} parent=11 // pred_fallthru
        _
      // Predicated region
      $region25: #{model_forward.14} parent=11 // pred_check
        %p270 = pneg %p152
      $region26: #{model_forward.14} parent=11 // pred_check_branch
        %272 = sbr.rel (%p270) target = $region28
      $region27: #{model_forward.14} parent=11 // pred_region
        _
      $region28: #{model_forward.14} parent=11 // pred_fallthru
        _
      // Predicated region
      $region29: #{model_forward.14} parent=11 // pred_check
        %p273 = pneg %p173
      $region30: #{model_forward.14} parent=11 // pred_check_branch
        %275 = sbr.rel (%p273) target = $region32
      $region31: #{model_forward.14} parent=11 // pred_region
        _
      $region32: #{model_forward.14} parent=11 // pred_fallthru
        _
      // Predicated region
      $region33: #{model_forward.14} parent=11 // pred_check
        %p276 = pneg %p194
      $region34: #{model_forward.14} parent=11 // pred_check_branch
        %278 = sbr.rel (%p276) target = $region36
      $region35: #{model_forward.14} parent=11 // pred_region
        _
      $region36: #{model_forward.14} parent=11 // pred_fallthru
        _
    $region12: #{model_forward.14} parent=5 // pred_fallthru
      _
    %p279 = scmp.lt.s32.totalorder %s16, 2
    // Predicated region
    $region37: #{model_forward.14} parent=5 // pred_check
      %p280 = pneg %p279
    $region38: #{model_forward.14} parent=5 // pred_check_branch
      %282 = sbr.rel (%p280) target = $region40
    $region39: #{model_forward.14} parent=5 // pred_region
      // Predicated region
      $region41: #{model_forward.14} parent=39 // pred_check
        %p283 = pneg %p36
      $region42: #{model_forward.14} parent=39 // pred_check_branch
        %285 = sbr.rel (%p283) target = $region44
      $region43: #{model_forward.14} parent=39 // pred_region
        %s286 = smul.u32 8, %s16
        %p287 = scmp.lt.s32.totalorder %s286, 15
        %s288 = scalar_select %p287, %s286, 15
        %s289 = smul.addr %s288, 4
        %s290 = scalar_lea.vmem %s0, %s289
        %s291 = smul.u32 8, %s16
      $region44: #{model_forward.14} parent=39 // pred_fallthru
        _
      // Predicated region
      $region45: #{model_forward.14} parent=39 // pred_check
        %p292 = pneg %p104
      $region46: #{model_forward.14} parent=39 // pred_check_branch
        %294 = sbr.rel (%p292) target = $region48
      $region47: #{model_forward.14} parent=39 // pred_region
        %s295 = smul.u32 8, %s16
        %p296 = scmp.lt.s32.totalorder %s295, 15
        %s297 = scalar_select %p296, %s295, 15
        %s298 = smul.addr %s297, 8
        %s299 = scalar_lea.vmem %s3, %s298
        %s300 = smul.u32 8, %s16
      $region48: #{model_forward.14} parent=39 // pred_fallthru
        _
    $region40: #{model_forward.14} parent=5 // pred_fallthru
      _
    %p301 = scmp.le.s32.totalorder 1, %s16
    %p302 = scmp.lt.s32.totalorder %s16, 3
    %p303 = pnand %p301, %p302
    %p304 = pneg %p303
    // Predicated region
    $region49: #{model_forward.14} parent=5 // pred_check
      _
    $region50: #{model_forward.14} parent=5 // pred_check_branch
      %306 = sbr.rel (%p303) target = $region52
    $region51: #{model_forward.14} parent=5 // pred_region
      %s307 = ssub.s32 %s16, 1
      %s308 = smul.u32 8, %s21
      %p309 = scmp.lt.s32.totalorder %s308, 15
      %s310 = scalar_select %p309, %s308, 15
      %s311 = smul.addr %s310, 4
      %s312 = scalar_lea.vmem %s0, %s311
      %p313 = pneg %p42
      %p314 = pneg %p39
      %p315 = pneg %p63
      %p316 = pneg %p60
      %p317 = pneg %p84
      %p318 = pneg %p81
      %s319 = smul.u32 8, %s21
      %p320 = scmp.lt.s32.totalorder %s319, 15
      %s321 = scalar_select %p320, %s319, 15
      %s322 = smul.addr %s321, 8
      %s323 = scalar_lea.vmem %s3, %s322
      %p324 = pneg %p110
      %p325 = pneg %p107
      %p326 = pneg %p131
      %p327 = pneg %p128
      %p328 = pneg %p152
      %p329 = pneg %p149
      %p330 = pneg %p173
      %p331 = pneg %p170
      %p332 = pneg %p194
      %p333 = pneg %p191
      %p334 = pneg %p220
      %p335 = pneg %p217
      %s336 = smul.u32 8, %s21
      %p337 = scmp.lt.s32.totalorder %s336, 15
      %s338 = scalar_select %p337, %s336, 15
      %s339 = smul.addr %s338, 8
      %s340 = scalar_lea.vmem %s8, %s339
      %p341 = pneg %p246
      %p342 = pneg %p243
      %s343 = smul.u32 8, %s21
      %p344 = scmp.lt.s32.totalorder %s343, 15
      %s345 = scalar_select %p344, %s343, 15
      %s346 = smul.addr %s345, 4
      %s347 = scalar_lea.vmem %s9, %s346
      %s348 = smul.u32 8, %s21
      %p349 = scmp.lt.s32.totalorder %s348, 15
      %s350 = scalar_select %p349, %s348, 15
      %s351 = smul.addr %s350, 4
      %s352 = scalar_lea.vmem %s0, %s351
      %s353 = smul.u32 8, %s21
      %s354 = smul.u32 8, %s21
      %p355 = scmp.lt.s32.totalorder %s354, 15
      %s356 = scalar_select %p355, %s354, 15
      %s357 = smul.addr %s356, 8
      %s358 = scalar_lea.vmem %s3, %s357
      %s359 = smul.u32 8, %s21
      %s360 = smul.u32 8, %s21
      %p361 = scmp.lt.s32.totalorder %s360, 15
      %s362 = scalar_select %p361, %s360, 15
      %s363 = smul.addr %s362, 8
      %s364 = scalar_lea.vmem %s8, %s363
      %s365 = smul.u32 8, %s21
      %s366 = smul.u32 8, %s21
      %p367 = scmp.lt.s32.totalorder %s366, 15
      %s368 = scalar_select %p367, %s366, 15
      %s369 = smul.addr %s368, 4
      %s370 = scalar_lea.vmem %s9, %s369
      %s371 = smul.u32 8, %s21
      %v373 = vld [vmem:[%s352] sm:$0xf]
      %v374 = vld [vmem:[%s352 + $0x4] sm:$0xf]
      %v375 = vld [vmem:[%s352 + $0x8] sm:$0xf]
      %v376 = vld [vmem:[%s352 + $0xc] sm:$0xf]
      %v377 = vld [vmem:[%s352 + $0x10] sm:$0xf]
      %v378 = vld [vmem:[%s352 + $0x14] sm:$0xf]
      %v379 = vld [vmem:[%s352 + $0x18] sm:$0xf]
      %v380 = vld [vmem:[%s352 + $0x1c] sm:$0xf]
      %v381 = vld [vmem:[%s1] sm:$0xf]
      %v382 = vld [vmem:[%s1 + $0x4] sm:$0xf]
      %v383 = vld [vmem:[%s1 + $0x8] sm:$0xf]
      %v384 = vld [vmem:[%s1 + $0xc] sm:$0xf]
      %v385 = vld [vmem:[%s2] sm:$0x1]
      %v387 = vperm.slane %v385, 0
      %v397 = vunpack.c.l.b16 %v373
      %v398 = vunpack.c.l.b16 %v374
      %v399 = vunpack.c.l.b16 %v375
      %v400 = vunpack.c.l.b16 %v376
      %v401 = vunpack.c.l.b16 %v377
      %v402 = vunpack.c.l.b16 %v378
      %v403 = vunpack.c.l.b16 %v379
      %v404 = vunpack.c.l.b16 %v380
      %v405 = vpack.c.b16 %v398, %v397
      %v406 = vpack.c.b16 %v400, %v399
      %v407 = vpack.c.b16 %v402, %v401
      %v408 = vpack.c.b16 %v404, %v403
      %v413 = vunpack.c.l.b16 %v381
      %v414 = vunpack.c.l.b16 %v382
      %v415 = vunpack.c.l.b16 %v383
      %v416 = vunpack.c.l.b16 %v384
      %v417 = vpack.c.b16 %v414, %v413
      %v418 = vpack.c.b16 %v416, %v415
      %vm421 = vcmask 261120
      %v423 = vsel %vm421, %v405, 0
      %v426 = vsel %vm421, %v406, 0
      %v429 = vsel %vm421, %v407, 0
      %v432 = vsel %vm421, %v408, 0
      %434 = vmatpush.bf16.msra.mxu0 0
      %435 = vmatpush.bf16.msra.mxu0 0
      %436 = vmatpush.bf16.msra.mxu0 0
      %437 = vmatpush.bf16.msra.mxu0 0
      %438 = vmatpush.bf16.msra.mxu0 0
      %439 = vmatpush.bf16.msra.mxu0 0
      %440 = vmatpush.bf16.msra.mxu0 %v418
      %441 = vmatpush.bf16.msra.mxu0 %v417
      %442 = vmatmul.bf16.gmra.mxu0 %v423
      %v443 = vpop.f32.mrf.mxu0
      %v444 = vadd.f32 %v387, %v443
      %v445 = vpop.f32.mrf.mxu0
      %v446 = vadd.f32 %v387, %v445
      %447 = vmatmul.bf16.gmra.mxu0 %v426
      %v448 = vpop.f32.mrf.mxu0
      %v449 = vadd.f32 %v387, %v448
      %v450 = vpop.f32.mrf.mxu0
      %v451 = vadd.f32 %v387, %v450
      %452 = vmatmul.bf16.gmra.mxu0 %v429
      %v453 = vpop.f32.mrf.mxu0
      %v454 = vadd.f32 %v387, %v453
      %v455 = vpop.f32.mrf.mxu0
      %v456 = vadd.f32 %v387, %v455
      %457 = vmatmul.bf16.gmra.mxu0 %v432
      %v458 = vpop.f32.mrf.mxu0
      %v459 = vadd.f32 %v387, %v458
      %v460 = vpop.f32.mrf.mxu0
      %v461 = vadd.f32 %v387, %v460
      %462 = vdwg.mxu0
      %v463 = vld [vmem:[%s358] sm:$0xff]
      %v464 = vld [vmem:[%s358 + $0x8] sm:$0xff]
      %v465 = vld [vmem:[%s358 + $0x10] sm:$0xff]
      %v466 = vld [vmem:[%s358 + $0x18] sm:$0xff]
      %v467 = vld [vmem:[%s358 + $0x20] sm:$0xff]
      %v468 = vld [vmem:[%s358 + $0x28] sm:$0xff]
      %v469 = vld [vmem:[%s358 + $0x30] sm:$0xff]
      %v470 = vld [vmem:[%s358 + $0x38] sm:$0xff]
      %v471 = vadd.f32 %v444, %v463
      %v472 = vadd.f32 %v446, %v464
      %v473 = vadd.f32 %v449, %v465
      %v474 = vadd.f32 %v451, %v466
      %v475 = vadd.f32 %v454, %v467
      %v476 = vadd.f32 %v456, %v468
      %v477 = vadd.f32 %v459, %v469
      %v478 = vadd.f32 %v461, %v470
      %479 = vst.msk [vmem:[%s364] sm:$0xff] %vm421, %v471
      %480 = vst.msk [vmem:[%s364 + $0x8] sm:$0xff] %vm421, %v472
      %481 = vst.msk [vmem:[%s364 + $0x10] sm:$0xff] %vm421, %v473
      %482 = vst.msk [vmem:[%s364 + $0x18] sm:$0xff] %vm421, %v474
      %483 = vst.msk [vmem:[%s364 + $0x20] sm:$0xff] %vm421, %v475
      %484 = vst.msk [vmem:[%s364 + $0x28] sm:$0xff] %vm421, %v476
      %485 = vst.msk [vmem:[%s364 + $0x30] sm:$0xff] %vm421, %v477
      %486 = vst.msk [vmem:[%s364 + $0x38] sm:$0xff] %vm421, %v478
      %v487 = vsel %vm421, %v471, 0.0
      %488 = vadd.xlane.f32.xlu0 %v487
      %v489 = vpop.xlane.xlu0 %488
      %v490 = vsel %vm421, %v472, 0.0
      %491 = vadd.xlane.f32.xlu0 %v490
      %v492 = vpop.xlane.xlu0 %491
      %v493 = vsel %vm421, %v473, 0.0
      %494 = vadd.xlane.f32.xlu0 %v493
      %v495 = vpop.xlane.xlu0 %494
      %v496 = vsel %vm421, %v474, 0.0
      %497 = vadd.xlane.f32.xlu0 %v496
      %v498 = vpop.xlane.xlu0 %497
      %v499 = vsel %vm421, %v475, 0.0
      %500 = vadd.xlane.f32.xlu0 %v499
      %v501 = vpop.xlane.xlu0 %500
      %v502 = vsel %vm421, %v476, 0.0
      %503 = vadd.xlane.f32.xlu0 %v502
      %v504 = vpop.xlane.xlu0 %503
      %v505 = vsel %vm421, %v477, 0.0
      %506 = vadd.xlane.f32.xlu0 %v505
      %v507 = vpop.xlane.xlu0 %506
      %v508 = vsel %vm421, %v478, 0.0
      %509 = vadd.xlane.f32.xlu0 %v508
      %v510 = vpop.xlane.xlu0 %509
      %v511 = vrcp.pop 32.0
      %v512 = vmul.f32 32.0, %v511
      %v513 = vsub.f32 1.0, %v512
      %v514 = vmul.f32 %v511, %v513
      %v515 = vadd.f32 %v511, %v514
      %vm516 = vweird.f32 %v511
      %v517 = vsel %vm516, %v511, %v515
      %v518 = vmul.f32 %v489, %v517
      %v519 = vmul.f32 %v492, %v517
      %v520 = vmul.f32 %v495, %v517
      %v521 = vmul.f32 %v498, %v517
      %v522 = vmul.f32 %v501, %v517
      %v523 = vmul.f32 %v504, %v517
      %v524 = vmul.f32 %v507, %v517
      %v525 = vmul.f32 %v510, %v517
      %v526 = vsub.f32 %v471, %v518
      %v527 = vsub.f32 %v472, %v519
      %v528 = vsub.f32 %v473, %v520
      %v529 = vsub.f32 %v474, %v521
      %v530 = vsub.f32 %v475, %v522
      %v531 = vsub.f32 %v476, %v523
      %v532 = vsub.f32 %v477, %v524
      %v533 = vsub.f32 %v478, %v525
      %v534 = vmul.f32 %v526, %v526
      %v535 = vmul.f32 %v527, %v527
      %v536 = vmul.f32 %v528, %v528
      %v537 = vmul.f32 %v529, %v529
      %v538 = vmul.f32 %v530, %v530
      %v539 = vmul.f32 %v531, %v531
      %v540 = vmul.f32 %v532, %v532
      %v541 = vmul.f32 %v533, %v533
      %v542 = vsel %vm421, %v534, 0.0
      %543 = vadd.xlane.f32.xlu0 %v542
      %v544 = vpop.xlane.xlu0 %543
      %v545 = vsel %vm421, %v535, 0.0
      %546 = vadd.xlane.f32.xlu0 %v545
      %v547 = vpop.xlane.xlu0 %546
      %v548 = vsel %vm421, %v536, 0.0
      %549 = vadd.xlane.f32.xlu0 %v548
      %v550 = vpop.xlane.xlu0 %549
      %v551 = vsel %vm421, %v537, 0.0
      %552 = vadd.xlane.f32.xlu0 %v551
      %v553 = vpop.xlane.xlu0 %552
      %v554 = vsel %vm421, %v538, 0.0
      %555 = vadd.xlane.f32.xlu0 %v554
      %v556 = vpop.xlane.xlu0 %555
      %v557 = vsel %vm421, %v539, 0.0
      %558 = vadd.xlane.f32.xlu0 %v557
      %v559 = vpop.xlane.xlu0 %558
      %v560 = vsel %vm421, %v540, 0.0
      %561 = vadd.xlane.f32.xlu0 %v560
      %v562 = vpop.xlane.xlu0 %561
      %v563 = vsel %vm421, %v541, 0.0
      %564 = vadd.xlane.f32.xlu0 %v563
      %v565 = vpop.xlane.xlu0 %564
      %v566 = vmul.f32 %v544, %v517
      %v567 = vmul.f32 %v547, %v517
      %v568 = vmul.f32 %v550, %v517
      %v569 = vmul.f32 %v553, %v517
      %v570 = vmul.f32 %v556, %v517
      %v571 = vmul.f32 %v559, %v517
      %v572 = vmul.f32 %v562, %v517
      %v573 = vmul.f32 %v565, %v517
      %v574 = vadd.f32 %v566, 1e-05
      %v575 = vadd.f32 %v567, 1e-05
      %v576 = vadd.f32 %v568, 1e-05
      %v577 = vadd.f32 %v569, 1e-05
      %v578 = vadd.f32 %v570, 1e-05
      %v579 = vadd.f32 %v571, 1e-05
      %v580 = vadd.f32 %v572, 1e-05
      %v581 = vadd.f32 %v573, 1e-05
      %v582 = vrsqrt.pop %v574
      %v583 = vmul.f32 %v582, %v574
      %v584 = vmul.f32 %v583, %v582
      %v585 = vmul.f32 0.5, %v584
      %v586 = vsub.f32 1.5, %v585
      %v587 = vmul.f32 %v582, %v586
      %vm588 = vweird.f32 %v574
      %vm589 = vweird.f32 %v582
      %vm590 = vmor %vm588, %vm589
      %v591 = vsel %vm590, %v582, %v587
      %v592 = vrsqrt.pop %v575
      %v593 = vmul.f32 %v592, %v575
      %v594 = vmul.f32 %v593, %v592
      %v595 = vmul.f32 0.5, %v594
      %v596 = vsub.f32 1.5, %v595
      %v597 = vmul.f32 %v592, %v596
      %vm598 = vweird.f32 %v575
      %vm599 = vweird.f32 %v592
      %vm600 = vmor %vm598, %vm599
      %v601 = vsel %vm600, %v592, %v597
      %v602 = vrsqrt.pop %v576
      %v603 = vmul.f32 %v602, %v576
      %v604 = vmul.f32 %v603, %v602
      %v605 = vmul.f32 0.5, %v604
      %v606 = vsub.f32 1.5, %v605
      %v607 = vmul.f32 %v602, %v606
      %vm608 = vweird.f32 %v576
      %vm609 = vweird.f32 %v602
      %vm610 = vmor %vm608, %vm609
      %v611 = vsel %vm610, %v602, %v607
      %v612 = vrsqrt.pop %v577
      %v613 = vmul.f32 %v612, %v577
      %v614 = vmul.f32 %v613, %v612
      %v615 = vmul.f32 0.5, %v614
      %v616 = vsub.f32 1.5, %v615
      %v617 = vmul.f32 %v612, %v616
      %vm618 = vweird.f32 %v577
      %vm619 = vweird.f32 %v612
      %vm620 = vmor %vm618, %vm619
      %v621 = vsel %vm620, %v612, %v617
      %v622 = vrsqrt.pop %v578
      %v623 = vmul.f32 %v622, %v578
      %v624 = vmul.f32 %v623, %v622
      %v625 = vmul.f32 0.5, %v624
      %v626 = vsub.f32 1.5, %v625
      %v627 = vmul.f32 %v622, %v626
      %vm628 = vweird.f32 %v578
      %vm629 = vweird.f32 %v622
      %vm630 = vmor %vm628, %vm629
      %v631 = vsel %vm630, %v622, %v627
      %v632 = vrsqrt.pop %v579
      %v633 = vmul.f32 %v632, %v579
      %v634 = vmul.f32 %v633, %v632
      %v635 = vmul.f32 0.5, %v634
      %v636 = vsub.f32 1.5, %v635
      %v637 = vmul.f32 %v632, %v636
      %vm638 = vweird.f32 %v579
      %vm639 = vweird.f32 %v632
      %vm640 = vmor %vm638, %vm639
      %v641 = vsel %vm640, %v632, %v637
      %v642 = vrsqrt.pop %v580
      %v643 = vmul.f32 %v642, %v580
      %v644 = vmul.f32 %v643, %v642
      %v645 = vmul.f32 0.5, %v644
      %v646 = vsub.f32 1.5, %v645
      %v647 = vmul.f32 %v642, %v646
      %vm648 = vweird.f32 %v580
      %vm649 = vweird.f32 %v642
      %vm650 = vmor %vm648, %vm649
      %v651 = vsel %vm650, %v642, %v647
      %v652 = vrsqrt.pop %v581
      %v653 = vmul.f32 %v652, %v581
      %v654 = vmul.f32 %v653, %v652
      %v655 = vmul.f32 0.5, %v654
      %v656 = vsub.f32 1.5, %v655
      %v657 = vmul.f32 %v652, %v656
      %vm658 = vweird.f32 %v581
      %vm659 = vweird.f32 %v652
      %vm660 = vmor %vm658, %vm659
      %v661 = vsel %vm660, %v652, %v657
      %v662 = vmul.f32 %v526, %v591
      %v663 = vmul.f32 %v527, %v601
      %v664 = vmul.f32 %v528, %v611
      %v665 = vmul.f32 %v529, %v621
      %v666 = vmul.f32 %v530, %v631
      %v667 = vmul.f32 %v531, %v641
      %v668 = vmul.f32 %v532, %v651
      %v669 = vmul.f32 %v533, %v661
      %v670 = vld [vmem:[%s4] sm:$0x1]
      %v672 = vperm.slane %v670, 0
      %v674 = vmul.f32 %v662, %v672
      %v675 = vmul.f32 %v663, %v672
      %v676 = vmul.f32 %v664, %v672
      %v677 = vmul.f32 %v665, %v672
      %v678 = vmul.f32 %v666, %v672
      %v679 = vmul.f32 %v667, %v672
      %v680 = vmul.f32 %v668, %v672
      %v681 = vmul.f32 %v669, %v672
      %v682 = vld [vmem:[%s5] sm:$0x1]
      %v684 = vperm.slane %v682, 0
      %v686 = vadd.f32 %v674, %v684
      %v687 = vadd.f32 %v675, %v684
      %v688 = vadd.f32 %v676, %v684
      %v689 = vadd.f32 %v677, %v684
      %v690 = vadd.f32 %v678, %v684
      %v691 = vadd.f32 %v679, %v684
      %v692 = vadd.f32 %v680, %v684
      %v693 = vadd.f32 %v681, %v684
      %v694 = vpack.c.bf16 %v687, %v686
      %v695 = vpack.c.bf16 %v689, %v688
      %v696 = vpack.c.bf16 %v691, %v690
      %v697 = vpack.c.bf16 %v693, %v692
      %v698 = vld [vmem:[%s6] sm:$0xf]
      %v699 = vld [vmem:[%s6 + $0x4] sm:$0xf]
      %v700 = vld [vmem:[%s6 + $0x8] sm:$0xf]
      %v701 = vld [vmem:[%s6 + $0xc] sm:$0xf]
      %v702 = vld [vmem:[%s7] sm:$0x1]
      %v704 = vperm.slane %v702, 0
      %v710 = vunpack.c.l.b16 %v698
      %v711 = vunpack.c.l.b16 %v699
      %v712 = vunpack.c.l.b16 %v700
      %v713 = vunpack.c.l.b16 %v701
      %v714 = vpack.c.b16 %v711, %v710
      %v715 = vpack.c.b16 %v713, %v712
      %v719 = vsel %vm421, %v694, 0
      %v722 = vsel %vm421, %v695, 0
      %v725 = vsel %vm421, %v696, 0
      %v728 = vsel %vm421, %v697, 0
      %730 = vmatpush.bf16.msra.mxu0 0
      %731 = vmatpush.bf16.msra.mxu0 0
      %732 = vmatpush.bf16.msra.mxu0 0
      %733 = vmatpush.bf16.msra.mxu0 0
      %734 = vmatpush.bf16.msra.mxu0 0
      %735 = vmatpush.bf16.msra.mxu0 0
      %736 = vmatpush.bf16.msra.mxu0 %v715
      %737 = vmatpush.bf16.msra.mxu0 %v714
      %738 = vmatmul.bf16.gmra.mxu0 %v719
      %v739 = vpop.f32.mrf.mxu0
      %v740 = vadd.f32 %v704, %v739
      %v741 = vpop.f32.mrf.mxu0
      %v742 = vadd.f32 %v704, %v741
      %743 = vmatmul.bf16.gmra.mxu0 %v722
      %v744 = vpop.f32.mrf.mxu0
      %v745 = vadd.f32 %v704, %v744
      %v746 = vpop.f32.mrf.mxu0
      %v747 = vadd.f32 %v704, %v746
      %748 = vmatmul.bf16.gmra.mxu0 %v725
      %v749 = vpop.f32.mrf.mxu0
      %v750 = vadd.f32 %v704, %v749
      %v751 = vpop.f32.mrf.mxu0
      %v752 = vadd.f32 %v704, %v751
      %753 = vmatmul.bf16.gmra.mxu0 %v728
      %v754 = vpop.f32.mrf.mxu0
      %v755 = vadd.f32 %v704, %v754
      %v756 = vpop.f32.mrf.mxu0
      %v757 = vadd.f32 %v704, %v756
      %758 = vdwg.mxu0
      %v759 = vpack.c.bf16 %v740, %v740
      %v760 = vpack.c.bf16 %v742, %v742
      %v761 = vpack.c.bf16 %v745, %v745
      %v762 = vpack.c.bf16 %v747, %v747
      %v763 = vpack.c.bf16 %v750, %v750
      %v764 = vpack.c.bf16 %v752, %v752
      %v765 = vpack.c.bf16 %v755, %v755
      %v766 = vpack.c.bf16 %v757, %v757
      %767 = vst [vmem:[%s370] sm:$0xf] %v759
      %768 = vst [vmem:[%s370 + $0x4] sm:$0xf] %v760
      %769 = vst [vmem:[%s370 + $0x8] sm:$0xf] %v761
      %770 = vst [vmem:[%s370 + $0xc] sm:$0xf] %v762
      %771 = vst [vmem:[%s370 + $0x10] sm:$0xf] %v763
      %772 = vst [vmem:[%s370 + $0x14] sm:$0xf] %v764
      %773 = vst [vmem:[%s370 + $0x18] sm:$0xf] %v765
      %774 = vst [vmem:[%s370 + $0x1c] sm:$0xf] %v766
      %s775 = smul.u32 8, %s21
      %p776 = scmp.lt.s32.totalorder %s775, 15
      %s777 = scalar_select %p776, %s775, 15
      %s778 = smul.addr %s777, 8
      %s779 = scalar_lea.vmem %s8, %s778
      %s780 = smul.u32 8, %s21
      %p781 = scmp.lt.s32.totalorder %s780, 15
      %s782 = scalar_select %p781, %s780, 15
      %s783 = smul.addr %s782, 4
      %s784 = scalar_lea.vmem %s9, %s783
      // Predicated region
      $region53: #{model_forward.14} parent=51 // pred_check
        %p785 = pneg %p217
      $region54: #{model_forward.14} parent=51 // pred_check_branch
        %787 = sbr.rel (%p785) target = $region56
      $region55: #{model_forward.14} parent=51 // pred_region
        %s788 = smul.u32 8, %s21
      $region56: #{model_forward.14} parent=51 // pred_fallthru
        _
      // Predicated region
      $region57: #{model_forward.14} parent=51 // pred_check
        %p789 = pneg %p243
      $region58: #{model_forward.14} parent=51 // pred_check_branch
        %791 = sbr.rel (%p789) target = $region60
      $region59: #{model_forward.14} parent=51 // pred_region
        %s792 = smul.u32 8, %s21
      $region60: #{model_forward.14} parent=51 // pred_fallthru
        _
    $region52: #{model_forward.14} parent=5 // pred_fallthru
      _
    %p793 = scmp.le.s32.totalorder 2, %s16
    // Predicated region
    $region61: #{model_forward.14} parent=5 // pred_check
      %p794 = pneg %p793
    $region62: #{model_forward.14} parent=5 // pred_check_branch
      %796 = sbr.rel (%p794) target = $region64
    $region63: #{model_forward.14} parent=5 // pred_region
      %s797 = ssub.s32 %s16, 2
      // Predicated region
      $region65: #{model_forward.14} parent=63 // pred_check
        %p798 = pneg %p223
      $region66: #{model_forward.14} parent=63 // pred_check_branch
        %800 = sbr.rel (%p798) target = $region68
      $region67: #{model_forward.14} parent=63 // pred_region
        %s801 = smul.u32 8, %s22
        %p802 = scmp.lt.s32.totalorder %s801, 15
        %s803 = scalar_select %p802, %s801, 15
        %s804 = smul.addr %s803, 8
        %s805 = scalar_lea.vmem %s8, %s804
      $region68: #{model_forward.14} parent=63 // pred_fallthru
        _
      // Predicated region
      $region69: #{model_forward.14} parent=63 // pred_check
        %p806 = pneg %p249
      $region70: #{model_forward.14} parent=63 // pred_check_branch
        %808 = sbr.rel (%p806) target = $region72
      $region71: #{model_forward.14} parent=63 // pred_region
        %s809 = smul.u32 8, %s22
        %p810 = scmp.lt.s32.totalorder %s809, 15
        %s811 = scalar_select %p810, %s809, 15
        %s812 = smul.addr %s811, 4
        %s813 = scalar_lea.vmem %s9, %s812
      $region72: #{model_forward.14} parent=63 // pred_fallthru
        _
    $region64: #{model_forward.14} parent=5 // pred_fallthru
      _
  $region6: #{model_forward.14} parent=0 // loop_footer
    %s20 = sadd.s32 1, %s16
  $region7: #{model_forward.14} parent=0 // loop_footer_branch
    %15 = sbr.rel target = $region3
  $region8: #{model_forward.14} parent=0 // loop_exit
    _

// kernel: model_forward.16
$region0: #{model_forward.16}
  #allocation0 [shape = 'u32[]', space=smem, size = 0x4, offset = 0x4, fixed_abs, tag = 'smem constant byte address 0x4 - core index']
  #allocation1 [shape = 'u32[72,128]{1,0:T(1,128)}', space=vmem, size = 0x9000, scoped, tag = 'internal scratch']
  %s0 = inlined_call_operand.vmem [shape: f32[128,32], index: 0, kind: input, shape index: {}]
  %s1 = inlined_call_operand.vmem [shape: f32[1,32], index: 1, kind: input, shape index: {}]
  %s2 = inlined_call_operand.vmem [shape: f32[1,32], index: 2, kind: input, shape index: {}]
  %s3 = inlined_call_operand.vmem [shape: bf16[32,96], index: 3, kind: input, shape index: {}]
  %s4 = inlined_call_operand.vmem [shape: f32[1,96], index: 4, kind: input, shape index: {}]
  %s5 = inlined_call_operand.vmem [shape: bf16[128,96], index: 5, kind: output, shape index: {}]
  %s6 = sld [smem:[#allocation0]]
  $region53: #{model_forward.16} parent=0
    _
  %s8 = ssub.s32 1, %s6
  %s9 = scalar_select 0, %s8, %s6
  loop: start=0, step=1, limit=4
  $region2: #{model_forward.16} parent=0 // loop_pre_header
    _
  $region3: #{model_forward.16} parent=0 // loop_header
    %s11 = sphi 0, %s15
    %p12 = scmp.ge.s32.totalorder %s11, 4
    %s21 = sphi 0, %s23
    %s24 = sphi 0, %s21
    %s25 = sphi 0, %s24
    %s41 = sphi 0, %s25
    %s45 = sphi 0, %s45
    %s47 = sphi 0, %s45
    %s48 = sphi 0, %s47
    %s62 = sphi 0, %s48
    %s66 = sphi 0, %s66
    %s68 = sphi 0, %s66
    %s69 = sphi 0, %s68
    %s83 = sphi 0, %s69
    %s87 = sphi 0, %s87
    %s89 = sphi 0, %s87
    %s90 = sphi 0, %s89
    %s104 = sphi 0, %s90
    %s108 = sphi 0, %s108
    %s110 = sphi 0, %s108
    %s111 = sphi 0, %s110
    %s125 = sphi 0, %s111
    %s131 = sphi 0, %s133
    %s134 = sphi 0, %s131
    %s135 = sphi 0, %s134
    %s151 = sphi 0, %s135
  $region4: #{model_forward.16} parent=0 // loop_header_branch
    %14 = sbr.rel (%p12) target = $region8
  $region5: #{model_forward.16} parent=0 // loop_body
    %s16 = ssub.s32 %s11, 1
    %s17 = ssub.s32 %s11, 2
    %s18 = sadd.s32 %s11, 1
    %s19 = ssub.s32 %s11, %s18
    %p20 = scmp.eq.s32.totalorder %s19, 0
    %s22 = sadd.s32 %s21, 1
    %s23 = scalar_select %p20, %s21, %s22
    %p26 = pneg %p20
    %p27 = scmp.eq.s32.totalorder %s11, 1
    %p28 = por %p26, %p27
    %p29 = scmp.ne.s32.totalorder %s21, %s24
    %p30 = scmp.eq.s32.totalorder %s11, 0
    %p31 = por %p29, %p30
    %p32 = scmp.ne.s32.totalorder %s21, %s24
    %p33 = scmp.eq.s32.totalorder %s16, 1
    %p34 = por %p32, %p33
    %p35 = scmp.ne.s32.totalorder %s24, %s25
    %p36 = scmp.eq.s32.totalorder %s16, 0
    %p37 = por %p35, %p36
    %p38 = scmp.ne.s32.totalorder %s24, %s25
    %p39 = scmp.eq.s32.totalorder %s17, 1
    %p40 = por %p38, %p39
    %p42 = scmp.ne.s32.totalorder %s25, %s41
    %p43 = scmp.eq.s32.totalorder %s17, 0
    %p44 = por %p42, %p43
    %s46 = sadd.s32 %s45, 1
    %p49 = scmp.eq.s32.totalorder %s11, 1
    %p50 = scmp.ne.s32.totalorder %s45, %s47
    %p51 = scmp.eq.s32.totalorder %s11, 0
    %p52 = por %p50, %p51
    %p53 = scmp.ne.s32.totalorder %s45, %s47
    %p54 = scmp.eq.s32.totalorder %s16, 1
    %p55 = por %p53, %p54
    %p56 = scmp.ne.s32.totalorder %s47, %s48
    %p57 = scmp.eq.s32.totalorder %s16, 0
    %p58 = por %p56, %p57
    %p59 = scmp.ne.s32.totalorder %s47, %s48
    %p60 = scmp.eq.s32.totalorder %s17, 1
    %p61 = por %p59, %p60
    %p63 = scmp.ne.s32.totalorder %s48, %s62
    %p64 = scmp.eq.s32.totalorder %s17, 0
    %p65 = por %p63, %p64
    %s67 = sadd.s32 %s66, 1
    %p70 = scmp.eq.s32.totalorder %s11, 1
    %p71 = scmp.ne.s32.totalorder %s66, %s68
    %p72 = scmp.eq.s32.totalorder %s11, 0
    %p73 = por %p71, %p72
    %p74 = scmp.ne.s32.totalorder %s66, %s68
    %p75 = scmp.eq.s32.totalorder %s16, 1
    %p76 = por %p74, %p75
    %p77 = scmp.ne.s32.totalorder %s68, %s69
    %p78 = scmp.eq.s32.totalorder %s16, 0
    %p79 = por %p77, %p78
    %p80 = scmp.ne.s32.totalorder %s68, %s69
    %p81 = scmp.eq.s32.totalorder %s17, 1
    %p82 = por %p80, %p81
    %p84 = scmp.ne.s32.totalorder %s69, %s83
    %p85 = scmp.eq.s32.totalorder %s17, 0
    %p86 = por %p84, %p85
    %s88 = sadd.s32 %s87, 1
    %p91 = scmp.eq.s32.totalorder %s11, 1
    %p92 = scmp.ne.s32.totalorder %s87, %s89
    %p93 = scmp.eq.s32.totalorder %s11, 0
    %p94 = por %p92, %p93
    %p95 = scmp.ne.s32.totalorder %s87, %s89
    %p96 = scmp.eq.s32.totalorder %s16, 1
    %p97 = por %p95, %p96
    %p98 = scmp.ne.s32.totalorder %s89, %s90
    %p99 = scmp.eq.s32.totalorder %s16, 0
    %p100 = por %p98, %p99
    %p101 = scmp.ne.s32.totalorder %s89, %s90
    %p102 = scmp.eq.s32.totalorder %s17, 1
    %p103 = por %p101, %p102
    %p105 = scmp.ne.s32.totalorder %s90, %s104
    %p106 = scmp.eq.s32.totalorder %s17, 0
    %p107 = por %p105, %p106
    %s109 = sadd.s32 %s108, 1
    %p112 = scmp.eq.s32.totalorder %s11, 1
    %p113 = scmp.ne.s32.totalorder %s108, %s110
    %p114 = scmp.eq.s32.totalorder %s11, 0
    %p115 = por %p113, %p114
    %p116 = scmp.ne.s32.totalorder %s108, %s110
    %p117 = scmp.eq.s32.totalorder %s16, 1
    %p118 = por %p116, %p117
    %p119 = scmp.ne.s32.totalorder %s110, %s111
    %p120 = scmp.eq.s32.totalorder %s16, 0
    %p121 = por %p119, %p120
    %p122 = scmp.ne.s32.totalorder %s110, %s111
    %p123 = scmp.eq.s32.totalorder %s17, 1
    %p124 = por %p122, %p123
    %p126 = scmp.ne.s32.totalorder %s111, %s125
    %p127 = scmp.eq.s32.totalorder %s17, 0
    %p128 = por %p126, %p127
    %s129 = ssub.s32 %s11, %s18
    %p130 = scmp.eq.s32.totalorder %s129, 0
    %s132 = sadd.s32 %s131, 1
    %s133 = scalar_select %p130, %s131, %s132
    %p136 = pneg %p130
    %p137 = scmp.eq.s32.totalorder %s11, 1
    %p138 = por %p136, %p137
    %p139 = scmp.ne.s32.totalorder %s131, %s134
    %p140 = scmp.eq.s32.totalorder %s11, 0
    %p141 = por %p139, %p140
    %p142 = scmp.ne.s32.totalorder %s131, %s134
    %p143 = scmp.eq.s32.totalorder %s16, 1
    %p144 = por %p142, %p143
    %p145 = scmp.ne.s32.totalorder %s134, %s135
    %p146 = scmp.eq.s32.totalorder %s16, 0
    %p147 = por %p145, %p146
    %p148 = scmp.ne.s32.totalorder %s134, %s135
    %p149 = scmp.eq.s32.totalorder %s17, 1
    %p150 = por %p148, %p149
    %p152 = scmp.ne.s32.totalorder %s135, %s151
    %p153 = scmp.eq.s32.totalorder %s17, 0
    %p154 = por %p152, %p153
    %p155 = scmp.le.s32.totalorder 1, %s11
    %p156 = scmp.lt.s32.totalorder %s11, 3
    %p157 = pnand %p155, %p156
    %p158 = pneg %p157
    // Predicated region
    $region9: #{model_forward.16} parent=5 // pred_check
      _
    $region10: #{model_forward.16} parent=5 // pred_check_branch
      %160 = sbr.rel (%p157) target = $region12
    $region11: #{model_forward.16} parent=5 // pred_region
      %s161 = ssub.s32 %s11, 1
      // Predicated region
      $region13: #{model_forward.16} parent=11 // pred_check
        %p162 = pneg %p58
      $region14: #{model_forward.16} parent=11 // pred_check_branch
        %164 = sbr.rel (%p162) target = $region16
      $region15: #{model_forward.16} parent=11 // pred_region
        _
      $region16: #{model_forward.16} parent=11 // pred_fallthru
        _
      // Predicated region
      $region17: #{model_forward.16} parent=11 // pred_check
        %p165 = pneg %p79
      $region18: #{model_forward.16} parent=11 // pred_check_branch
        %167 = sbr.rel (%p165) target = $region20
      $region19: #{model_forward.16} parent=11 // pred_region
        _
      $region20: #{model_forward.16} parent=11 // pred_fallthru
        _
      // Predicated region
      $region21: #{model_forward.16} parent=11 // pred_check
        %p168 = pneg %p100
      $region22: #{model_forward.16} parent=11 // pred_check_branch
        %170 = sbr.rel (%p168) target = $region24
      $region23: #{model_forward.16} parent=11 // pred_region
        _
      $region24: #{model_forward.16} parent=11 // pred_fallthru
        _
      // Predicated region
      $region25: #{model_forward.16} parent=11 // pred_check
        %p171 = pneg %p121
      $region26: #{model_forward.16} parent=11 // pred_check_branch
        %173 = sbr.rel (%p171) target = $region28
      $region27: #{model_forward.16} parent=11 // pred_region
        _
      $region28: #{model_forward.16} parent=11 // pred_fallthru
        _
    $region12: #{model_forward.16} parent=5 // pred_fallthru
      _
    %p174 = scmp.lt.s32.totalorder %s11, 2
    // Predicated region
    $region29: #{model_forward.16} parent=5 // pred_check
      %p175 = pneg %p174
    $region30: #{model_forward.16} parent=5 // pred_check_branch
      %177 = sbr.rel (%p175) target = $region32
    $region31: #{model_forward.16} parent=5 // pred_region
      // Predicated region
      $region33: #{model_forward.16} parent=31 // pred_check
        %p178 = pneg %p31
      $region34: #{model_forward.16} parent=31 // pred_check_branch
        %180 = sbr.rel (%p178) target = $region36
      $region35: #{model_forward.16} parent=31 // pred_region
        %s181 = smul.u32 8, %s11
        %p182 = scmp.lt.s32.totalorder %s181, 15
        %s183 = scalar_select %p182, %s181, 15
        %s184 = smul.addr %s183, 8
        %s185 = scalar_lea.vmem %s0, %s184
        %s186 = smul.u32 8, %s11
      $region36: #{model_forward.16} parent=31 // pred_fallthru
        _
    $region32: #{model_forward.16} parent=5 // pred_fallthru
      _
    %p187 = scmp.le.s32.totalorder 1, %s11
    %p188 = scmp.lt.s32.totalorder %s11, 3
    %p189 = pnand %p187, %p188
    %p190 = pneg %p189
    // Predicated region
    $region37: #{model_forward.16} parent=5 // pred_check
      _
    $region38: #{model_forward.16} parent=5 // pred_check_branch
      %192 = sbr.rel (%p189) target = $region40
    $region39: #{model_forward.16} parent=5 // pred_region
      %s193 = ssub.s32 %s11, 1
      %s194 = smul.u32 8, %s16
      %p195 = scmp.lt.s32.totalorder %s194, 15
      %s196 = scalar_select %p195, %s194, 15
      %s197 = smul.addr %s196, 8
      %s198 = scalar_lea.vmem %s0, %s197
      %p199 = pneg %p37
      %p200 = pneg %p34
      %p201 = pneg %p58
      %p202 = pneg %p55
      %p203 = pneg %p79
      %p204 = pneg %p76
      %p205 = pneg %p100
      %p206 = pneg %p97
      %p207 = pneg %p121
      %p208 = pneg %p118
      %p209 = pneg %p147
      %p210 = pneg %p144
      %s211 = smul.u32 8, %s16
      %p212 = scmp.lt.s32.totalorder %s211, 15
      %s213 = scalar_select %p212, %s211, 15
      %s214 = smul.addr %s213, 4
      %s215 = scalar_lea.vmem %s5, %s214
      %s216 = smul.u32 8, %s16
      %p217 = scmp.lt.s32.totalorder %s216, 15
      %s218 = scalar_select %p217, %s216, 15
      %s219 = smul.addr %s218, 8
      %s220 = scalar_lea.vmem %s0, %s219
      %s221 = smul.u32 8, %s16
      %s222 = smul.u32 8, %s16
      %p223 = scmp.lt.s32.totalorder %s222, 15
      %s224 = scalar_select %p223, %s222, 15
      %s225 = smul.addr %s224, 4
      %s226 = scalar_lea.vmem %s5, %s225
      %s227 = smul.u32 8, %s16
      %v229 = vld [vmem:[%s220] sm:$0xff]
      %v230 = vld [vmem:[%s220 + $0x8] sm:$0xff]
      %v231 = vld [vmem:[%s220 + $0x10] sm:$0xff]
      %v232 = vld [vmem:[%s220 + $0x18] sm:$0xff]
      %v233 = vld [vmem:[%s220 + $0x20] sm:$0xff]
      %v234 = vld [vmem:[%s220 + $0x28] sm:$0xff]
      %v235 = vld [vmem:[%s220 + $0x30] sm:$0xff]
      %v236 = vld [vmem:[%s220 + $0x38] sm:$0xff]
      %vm237 = vcmask 261120
      %v238 = vsel %vm237, %v229, 0.0
      %239 = vadd.xlane.f32.xlu0 %v238
      %v240 = vpop.xlane.xlu0 %239
      %v241 = vsel %vm237, %v230, 0.0
      %242 = vadd.xlane.f32.xlu0 %v241
      %v243 = vpop.xlane.xlu0 %242
      %v244 = vsel %vm237, %v231, 0.0
      %245 = vadd.xlane.f32.xlu0 %v244
      %v246 = vpop.xlane.xlu0 %245
      %v247 = vsel %vm237, %v232, 0.0
      %248 = vadd.xlane.f32.xlu0 %v247
      %v249 = vpop.xlane.xlu0 %248
      %v250 = vsel %vm237, %v233, 0.0
      %251 = vadd.xlane.f32.xlu0 %v250
      %v252 = vpop.xlane.xlu0 %251
      %v253 = vsel %vm237, %v234, 0.0
      %254 = vadd.xlane.f32.xlu0 %v253
      %v255 = vpop.xlane.xlu0 %254
      %v256 = vsel %vm237, %v235, 0.0
      %257 = vadd.xlane.f32.xlu0 %v256
      %v258 = vpop.xlane.xlu0 %257
      %v259 = vsel %vm237, %v236, 0.0
      %260 = vadd.xlane.f32.xlu0 %v259
      %v261 = vpop.xlane.xlu0 %260
      %v262 = vrcp.pop 32.0
      %v263 = vmul.f32 32.0, %v262
      %v264 = vsub.f32 1.0, %v263
      %v265 = vmul.f32 %v262, %v264
      %v266 = vadd.f32 %v262, %v265
      %vm267 = vweird.f32 %v262
      %v268 = vsel %vm267, %v262, %v266
      %v269 = vmul.f32 %v240, %v268
      %v270 = vmul.f32 %v243, %v268
      %v271 = vmul.f32 %v246, %v268
      %v272 = vmul.f32 %v249, %v268
      %v273 = vmul.f32 %v252, %v268
      %v274 = vmul.f32 %v255, %v268
      %v275 = vmul.f32 %v258, %v268
      %v276 = vmul.f32 %v261, %v268
      %v277 = vsub.f32 %v229, %v269
      %v278 = vsub.f32 %v230, %v270
      %v279 = vsub.f32 %v231, %v271
      %v280 = vsub.f32 %v232, %v272
      %v281 = vsub.f32 %v233, %v273
      %v282 = vsub.f32 %v234, %v274
      %v283 = vsub.f32 %v235, %v275
      %v284 = vsub.f32 %v236, %v276
      %v285 = vmul.f32 %v277, %v277
      %v286 = vmul.f32 %v278, %v278
      %v287 = vmul.f32 %v279, %v279
      %v288 = vmul.f32 %v280, %v280
      %v289 = vmul.f32 %v281, %v281
      %v290 = vmul.f32 %v282, %v282
      %v291 = vmul.f32 %v283, %v283
      %v292 = vmul.f32 %v284, %v284
      %v293 = vsel %vm237, %v285, 0.0
      %294 = vadd.xlane.f32.xlu0 %v293
      %v295 = vpop.xlane.xlu0 %294
      %v296 = vsel %vm237, %v286, 0.0
      %297 = vadd.xlane.f32.xlu0 %v296
      %v298 = vpop.xlane.xlu0 %297
      %v299 = vsel %vm237, %v287, 0.0
      %300 = vadd.xlane.f32.xlu0 %v299
      %v301 = vpop.xlane.xlu0 %300
      %v302 = vsel %vm237, %v288, 0.0
      %303 = vadd.xlane.f32.xlu0 %v302
      %v304 = vpop.xlane.xlu0 %303
      %v305 = vsel %vm237, %v289, 0.0
      %306 = vadd.xlane.f32.xlu0 %v305
      %v307 = vpop.xlane.xlu0 %306
      %v308 = vsel %vm237, %v290, 0.0
      %309 = vadd.xlane.f32.xlu0 %v308
      %v310 = vpop.xlane.xlu0 %309
      %v311 = vsel %vm237, %v291, 0.0
      %312 = vadd.xlane.f32.xlu0 %v311
      %v313 = vpop.xlane.xlu0 %312
      %v314 = vsel %vm237, %v292, 0.0
      %315 = vadd.xlane.f32.xlu0 %v314
      %v316 = vpop.xlane.xlu0 %315
      %v317 = vmul.f32 %v295, %v268
      %v318 = vmul.f32 %v298, %v268
      %v319 = vmul.f32 %v301, %v268
      %v320 = vmul.f32 %v304, %v268
      %v321 = vmul.f32 %v307, %v268
      %v322 = vmul.f32 %v310, %v268
      %v323 = vmul.f32 %v313, %v268
      %v324 = vmul.f32 %v316, %v268
      %v325 = vadd.f32 %v317, 1e-05
      %v326 = vadd.f32 %v318, 1e-05
      %v327 = vadd.f32 %v319, 1e-05
      %v328 = vadd.f32 %v320, 1e-05
      %v329 = vadd.f32 %v321, 1e-05
      %v330 = vadd.f32 %v322, 1e-05
      %v331 = vadd.f32 %v323, 1e-05
      %v332 = vadd.f32 %v324, 1e-05
      %v333 = vrsqrt.pop %v325
      %v334 = vmul.f32 %v333, %v325
      %v335 = vmul.f32 %v334, %v333
      %v336 = vmul.f32 0.5, %v335
      %v337 = vsub.f32 1.5, %v336
      %v338 = vmul.f32 %v333, %v337
      %vm339 = vweird.f32 %v325
      %vm340 = vweird.f32 %v333
      %vm341 = vmor %vm339, %vm340
      %v342 = vsel %vm341, %v333, %v338
      %v343 = vrsqrt.pop %v326
      %v344 = vmul.f32 %v343, %v326
      %v345 = vmul.f32 %v344, %v343
      %v346 = vmul.f32 0.5, %v345
      %v347 = vsub.f32 1.5, %v346
      %v348 = vmul.f32 %v343, %v347
      %vm349 = vweird.f32 %v326
      %vm350 = vweird.f32 %v343
      %vm351 = vmor %vm349, %vm350
      %v352 = vsel %vm351, %v343, %v348
      %v353 = vrsqrt.pop %v327
      %v354 = vmul.f32 %v353, %v327
      %v355 = vmul.f32 %v354, %v353
      %v356 = vmul.f32 0.5, %v355
      %v357 = vsub.f32 1.5, %v356
      %v358 = vmul.f32 %v353, %v357
      %vm359 = vweird.f32 %v327
      %vm360 = vweird.f32 %v353
      %vm361 = vmor %vm359, %vm360
      %v362 = vsel %vm361, %v353, %v358
      %v363 = vrsqrt.pop %v328
      %v364 = vmul.f32 %v363, %v328
      %v365 = vmul.f32 %v364, %v363
      %v366 = vmul.f32 0.5, %v365
      %v367 = vsub.f32 1.5, %v366
      %v368 = vmul.f32 %v363, %v367
      %vm369 = vweird.f32 %v328
      %vm370 = vweird.f32 %v363
      %vm371 = vmor %vm369, %vm370
      %v372 = vsel %vm371, %v363, %v368
      %v373 = vrsqrt.pop %v329
      %v374 = vmul.f32 %v373, %v329
      %v375 = vmul.f32 %v374, %v373
      %v376 = vmul.f32 0.5, %v375
      %v377 = vsub.f32 1.5, %v376
      %v378 = vmul.f32 %v373, %v377
      %vm379 = vweird.f32 %v329
      %vm380 = vweird.f32 %v373
      %vm381 = vmor %vm379, %vm380
      %v382 = vsel %vm381, %v373, %v378
      %v383 = vrsqrt.pop %v330
      %v384 = vmul.f32 %v383, %v330
      %v385 = vmul.f32 %v384, %v383
      %v386 = vmul.f32 0.5, %v385
      %v387 = vsub.f32 1.5, %v386
      %v388 = vmul.f32 %v383, %v387
      %vm389 = vweird.f32 %v330
      %vm390 = vweird.f32 %v383
      %vm391 = vmor %vm389, %vm390
      %v392 = vsel %vm391, %v383, %v388
      %v393 = vrsqrt.pop %v331
      %v394 = vmul.f32 %v393, %v331
      %v395 = vmul.f32 %v394, %v393
      %v396 = vmul.f32 0.5, %v395
      %v397 = vsub.f32 1.5, %v396
      %v398 = vmul.f32 %v393, %v397
      %vm399 = vweird.f32 %v331
      %vm400 = vweird.f32 %v393
      %vm401 = vmor %vm399, %vm400
      %v402 = vsel %vm401, %v393, %v398
      %v403 = vrsqrt.pop %v332
      %v404 = vmul.f32 %v403, %v332
      %v405 = vmul.f32 %v404, %v403
      %v406 = vmul.f32 0.5, %v405
      %v407 = vsub.f32 1.5, %v406
      %v408 = vmul.f32 %v403, %v407
      %vm409 = vweird.f32 %v332
      %vm410 = vweird.f32 %v403
      %vm411 = vmor %vm409, %vm410
      %v412 = vsel %vm411, %v403, %v408
      %v413 = vmul.f32 %v277, %v342
      %v414 = vmul.f32 %v278, %v352
      %v415 = vmul.f32 %v279, %v362
      %v416 = vmul.f32 %v280, %v372
      %v417 = vmul.f32 %v281, %v382
      %v418 = vmul.f32 %v282, %v392
      %v419 = vmul.f32 %v283, %v402
      %v420 = vmul.f32 %v284, %v412
      %v421 = vld [vmem:[%s1] sm:$0x1]
      %v423 = vperm.slane %v421, 0
      %v425 = vmul.f32 %v413, %v423
      %v426 = vmul.f32 %v414, %v423
      %v427 = vmul.f32 %v415, %v423
      %v428 = vmul.f32 %v416, %v423
      %v429 = vmul.f32 %v417, %v423
      %v430 = vmul.f32 %v418, %v423
      %v431 = vmul.f32 %v419, %v423
      %v432 = vmul.f32 %v420, %v423
      %v433 = vld [vmem:[%s2] sm:$0x1]
      %v435 = vperm.slane %v433, 0
      %v437 = vadd.f32 %v425, %v435
      %v438 = vadd.f32 %v426, %v435
      %v439 = vadd.f32 %v427, %v435
      %v440 = vadd.f32 %v428, %v435
      %v441 = vadd.f32 %v429, %v435
      %v442 = vadd.f32 %v430, %v435
      %v443 = vadd.f32 %v431, %v435
      %v444 = vadd.f32 %v432, %v435
      %v445 = vpack.c.bf16 %v438, %v437
      %v446 = vpack.c.bf16 %v440, %v439
      %v447 = vpack.c.bf16 %v442, %v441
      %v448 = vpack.c.bf16 %v444, %v443
      %v449 = vld [vmem:[%s3] sm:$0xf]
      %v450 = vld [vmem:[%s3 + $0x4] sm:$0xf]
      %v451 = vld [vmem:[%s3 + $0x8] sm:$0xf]
      %v452 = vld [vmem:[%s3 + $0xc] sm:$0xf]
      %v453 = vld [vmem:[%s4] sm:$0x1]
      %v455 = vperm.slane %v453, 0
      %v461 = vunpack.c.l.b16 %v449
      %v462 = vunpack.c.l.b16 %v450
      %v463 = vunpack.c.l.b16 %v451
      %v464 = vunpack.c.l.b16 %v452
      %v465 = vpack.c.b16 %v462, %v461
      %v466 = vpack.c.b16 %v464, %v463
      %v470 = vsel %vm237, %v445, 0
      %v473 = vsel %vm237, %v446, 0
      %v476 = vsel %vm237, %v447, 0
      %v479 = vsel %vm237, %v448, 0
      %481 = vmatpush.bf16.msra.mxu0 0
      %482 = vmatpush.bf16.msra.mxu0 0
      %483 = vmatpush.bf16.msra.mxu0 0
      %484 = vmatpush.bf16.msra.mxu0 0
      %485 = vmatpush.bf16.msra.mxu0 0
      %486 = vmatpush.bf16.msra.mxu0 0
      %487 = vmatpush.bf16.msra.mxu0 %v466
      %488 = vmatpush.bf16.msra.mxu0 %v465
      %489 = vmatmul.bf16.gmra.mxu0 %v470
      %v490 = vpop.f32.mrf.mxu0
      %v491 = vadd.f32 %v455, %v490
      %v492 = vpop.f32.mrf.mxu0
      %v493 = vadd.f32 %v455, %v492
      %494 = vmatmul.bf16.gmra.mxu0 %v473
      %v495 = vpop.f32.mrf.mxu0
      %v496 = vadd.f32 %v455, %v495
      %v497 = vpop.f32.mrf.mxu0
      %v498 = vadd.f32 %v455, %v497
      %499 = vmatmul.bf16.gmra.mxu0 %v476
      %v500 = vpop.f32.mrf.mxu0
      %v501 = vadd.f32 %v455, %v500
      %v502 = vpop.f32.mrf.mxu0
      %v503 = vadd.f32 %v455, %v502
      %504 = vmatmul.bf16.gmra.mxu0 %v479
      %v505 = vpop.f32.mrf.mxu0
      %v506 = vadd.f32 %v455, %v505
      %v507 = vpop.f32.mrf.mxu0
      %v508 = vadd.f32 %v455, %v507
      %509 = vdwg.mxu0
      %v510 = vpack.c.bf16 %v491, %v491
      %v511 = vpack.c.bf16 %v493, %v493
      %v512 = vpack.c.bf16 %v496, %v496
      %v513 = vpack.c.bf16 %v498, %v498
      %v514 = vpack.c.bf16 %v501, %v501
      %v515 = vpack.c.bf16 %v503, %v503
      %v516 = vpack.c.bf16 %v506, %v506
      %v517 = vpack.c.bf16 %v508, %v508
      %vm518 = vcmask 781312
      %519 = vst.msk [vmem:[%s226] sm:$0xf] %vm518, %v510
      %520 = vst.msk [vmem:[%s226 + $0x4] sm:$0xf] %vm518, %v511
      %521 = vst.msk [vmem:[%s226 + $0x8] sm:$0xf] %vm518, %v512
      %522 = vst.msk [vmem:[%s226 + $0xc] sm:$0xf] %vm518, %v513
      %523 = vst.msk [vmem:[%s226 + $0x10] sm:$0xf] %vm518, %v514
      %524 = vst.msk [vmem:[%s226 + $0x14] sm:$0xf] %vm518, %v515
      %525 = vst.msk [vmem:[%s226 + $0x18] sm:$0xf] %vm518, %v516
      %526 = vst.msk [vmem:[%s226 + $0x1c] sm:$0xf] %vm518, %v517
      %s527 = smul.u32 8, %s16
      %p528 = scmp.lt.s32.totalorder %s527, 15
      %s529 = scalar_select %p528, %s527, 15
      %s530 = smul.addr %s529, 4
      %s531 = scalar_lea.vmem %s5, %s530
      // Predicated region
      $region41: #{model_forward.16} parent=39 // pred_check
        %p532 = pneg %p144
      $region42: #{model_forward.16} parent=39 // pred_check_branch
        %534 = sbr.rel (%p532) target = $region44
      $region43: #{model_forward.16} parent=39 // pred_region
        %s535 = smul.u32 8, %s16
      $region44: #{model_forward.16} parent=39 // pred_fallthru
        _
    $region40: #{model_forward.16} parent=5 // pred_fallthru
      _
    %p536 = scmp.le.s32.totalorder 2, %s11
    // Predicated region
    $region45: #{model_forward.16} parent=5 // pred_check
      %p537 = pneg %p536
    $region46: #{model_forward.16} parent=5 // pred_check_branch
      %539 = sbr.rel (%p537) target = $region48
    $region47: #{model_forward.16} parent=5 // pred_region
      %s540 = ssub.s32 %s11, 2
      // Predicated region
      $region49: #{model_forward.16} parent=47 // pred_check
        %p541 = pneg %p150
      $region50: #{model_forward.16} parent=47 // pred_check_branch
        %543 = sbr.rel (%p541) target = $region52
      $region51: #{model_forward.16} parent=47 // pred_region
        %s544 = smul.u32 8, %s17
        %p545 = scmp.lt.s32.totalorder %s544, 15
        %s546 = scalar_select %p545, %s544, 15
        %s547 = smul.addr %s546, 4
        %s548 = scalar_lea.vmem %s5, %s547
      $region52: #{model_forward.16} parent=47 // pred_fallthru
        _
    $region48: #{model_forward.16} parent=5 // pred_fallthru
      _
  $region6: #{model_forward.16} parent=0 // loop_footer
    %s15 = sadd.s32 1, %s11
  $region7: #{model_forward.16} parent=0 // loop_footer_branch
    %10 = sbr.rel target = $region3
  $region8: #{model_forward.16} parent=0 // loop_exit
    _

// kernel: model_forward.21
$region0: #{model_forward.21}
  #allocation0 [shape = 'u32[]', space=smem, size = 0x4, offset = 0x4, fixed_abs, tag = 'smem constant byte address 0x4 - core index']
  #allocation1 [shape = 'u32[72,128]{1,0:T(1,128)}', space=vmem, size = 0x9000, scoped, tag = 'internal scratch']
  %s0 = inlined_call_operand.vmem [shape: f32[128,32], index: 0, kind: input, shape index: {}]
  %s1 = inlined_call_operand.vmem [shape: f32[1,32], index: 1, kind: input, shape index: {}]
  %s2 = inlined_call_operand.vmem [shape: f32[1,32], index: 2, kind: input, shape index: {}]
  %s3 = inlined_call_operand.hbm [shape: f32[128,32], index: 3, kind: output, shape index: {}]
  %s4 = sld [smem:[#allocation0]]
  $region45: #{model_forward.21} parent=0
    _
  %s6 = ssub.s32 1, %s4
  %s7 = scalar_select 0, %s6, %s4
  $region1: #{model_forward.21} parent=0
    #allocation2 [shape = 'u8[65536]{0}', space=vmem, size = 0x10000, scoped, tag = 'output window, operand 0']
    #allocation3 [shape = 's32[2]{0}', space=sflag, size = 0x8, scoped, tag = 'scoped memory for model_forward.21']
    %8 = vsyncpa [#allocation3], 0
    %s9 = scalar_lea.sflag [#allocation3], 1
    %10 = vsyncpa %s9, 0
    loop: start=0, step=1, limit=4
    $region2: #{model_forward.21} parent=1 // loop_pre_header
      _
    $region3: #{model_forward.21} parent=1 // loop_header
      %s12 = sphi 0, %s16
      %p13 = scmp.ge.s32.totalorder %s12, 4
      %s22 = sphi 0, %s24
      %s25 = sphi 0, %s22
      %s26 = sphi 0, %s25
      %s42 = sphi 0, %s26
      %s46 = sphi 0, %s46
      %s48 = sphi 0, %s46
      %s49 = sphi 0, %s48
      %s63 = sphi 0, %s49
      %s67 = sphi 0, %s67
      %s69 = sphi 0, %s67
      %s70 = sphi 0, %s69
      %s84 = sphi 0, %s70
      %s90 = sphi 0, %s92
      %s93 = sphi 0, %s90
      %s94 = sphi 0, %s93
      %s110 = sphi 0, %s94
    $region4: #{model_forward.21} parent=1 // loop_header_branch
      %15 = sbr.rel (%p13) target = $region8
    $region5: #{model_forward.21} parent=1 // loop_body
      %s17 = ssub.s32 %s12, 1
      %s18 = ssub.s32 %s12, 2
      %s19 = sadd.s32 %s12, 1
      %s20 = ssub.s32 %s12, %s19
      %p21 = scmp.eq.s32.totalorder %s20, 0
      %s23 = sadd.s32 %s22, 1
      %s24 = scalar_select %p21, %s22, %s23
      %p27 = pneg %p21
      %p28 = scmp.eq.s32.totalorder %s12, 1
      %p29 = por %p27, %p28
      %p30 = scmp.ne.s32.totalorder %s22, %s25
      %p31 = scmp.eq.s32.totalorder %s12, 0
      %p32 = por %p30, %p31
      %p33 = scmp.ne.s32.totalorder %s22, %s25
      %p34 = scmp.eq.s32.totalorder %s17, 1
      %p35 = por %p33, %p34
      %p36 = scmp.ne.s32.totalorder %s25, %s26
      %p37 = scmp.eq.s32.totalorder %s17, 0
      %p38 = por %p36, %p37
      %p39 = scmp.ne.s32.totalorder %s25, %s26
      %p40 = scmp.eq.s32.totalorder %s18, 1
      %p41 = por %p39, %p40
      %p43 = scmp.ne.s32.totalorder %s26, %s42
      %p44 = scmp.eq.s32.totalorder %s18, 0
      %p45 = por %p43, %p44
      %s47 = sadd.s32 %s46, 1
      %p50 = scmp.eq.s32.totalorder %s12, 1
      %p51 = scmp.ne.s32.totalorder %s46, %s48
      %p52 = scmp.eq.s32.totalorder %s12, 0
      %p53 = por %p51, %p52
      %p54 = scmp.ne.s32.totalorder %s46, %s48
      %p55 = scmp.eq.s32.totalorder %s17, 1
      %p56 = por %p54, %p55
      %p57 = scmp.ne.s32.totalorder %s48, %s49
      %p58 = scmp.eq.s32.totalorder %s17, 0
      %p59 = por %p57, %p58
      %p60 = scmp.ne.s32.totalorder %s48, %s49
      %p61 = scmp.eq.s32.totalorder %s18, 1
      %p62 = por %p60, %p61
      %p64 = scmp.ne.s32.totalorder %s49, %s63
      %p65 = scmp.eq.s32.totalorder %s18, 0
      %p66 = por %p64, %p65
      %s68 = sadd.s32 %s67, 1
      %p71 = scmp.eq.s32.totalorder %s12, 1
      %p72 = scmp.ne.s32.totalorder %s67, %s69
      %p73 = scmp.eq.s32.totalorder %s12, 0
      %p74 = por %p72, %p73
      %p75 = scmp.ne.s32.totalorder %s67, %s69
      %p76 = scmp.eq.s32.totalorder %s17, 1
      %p77 = por %p75, %p76
      %p78 = scmp.ne.s32.totalorder %s69, %s70
      %p79 = scmp.eq.s32.totalorder %s17, 0
      %p80 = por %p78, %p79
      %p81 = scmp.ne.s32.totalorder %s69, %s70
      %p82 = scmp.eq.s32.totalorder %s18, 1
      %p83 = por %p81, %p82
      %p85 = scmp.ne.s32.totalorder %s70, %s84
      %p86 = scmp.eq.s32.totalorder %s18, 0
      %p87 = por %p85, %p86
      %s88 = ssub.s32 %s12, %s19
      %p89 = scmp.eq.s32.totalorder %s88, 0
      %s91 = sadd.s32 %s90, 1
      %s92 = scalar_select %p89, %s90, %s91
      %p95 = pneg %p89
      %p96 = scmp.eq.s32.totalorder %s12, 1
      %p97 = por %p95, %p96
      %p98 = scmp.ne.s32.totalorder %s90, %s93
      %p99 = scmp.eq.s32.totalorder %s12, 0
      %p100 = por %p98, %p99
      %p101 = scmp.ne.s32.totalorder %s90, %s93
      %p102 = scmp.eq.s32.totalorder %s17, 1
      %p103 = por %p101, %p102
      %p104 = scmp.ne.s32.totalorder %s93, %s94
      %p105 = scmp.eq.s32.totalorder %s17, 0
      %p106 = por %p104, %p105
      %p107 = scmp.ne.s32.totalorder %s93, %s94
      %p108 = scmp.eq.s32.totalorder %s18, 1
      %p109 = por %p107, %p108
      %p111 = scmp.ne.s32.totalorder %s94, %s110
      %p112 = scmp.eq.s32.totalorder %s18, 0
      %p113 = por %p111, %p112
      %p114 = scmp.le.s32.totalorder 1, %s12
      %p115 = scmp.lt.s32.totalorder %s12, 3
      %p116 = pnand %p114, %p115
      %p117 = pneg %p116
      // Predicated region
      $region9: #{model_forward.21} parent=5 // pred_check
        _
      $region10: #{model_forward.21} parent=5 // pred_check_branch
        %119 = sbr.rel (%p116) target = $region12
      $region11: #{model_forward.21} parent=5 // pred_region
        %s120 = ssub.s32 %s12, 1
        // Predicated region
        $region13: #{model_forward.21} parent=11 // pred_check
          %p121 = pneg %p59
        $region14: #{model_forward.21} parent=11 // pred_check_branch
          %123 = sbr.rel (%p121) target = $region16
        $region15: #{model_forward.21} parent=11 // pred_region
          _
        $region16: #{model_forward.21} parent=11 // pred_fallthru
          _
        // Predicated region
        $region17: #{model_forward.21} parent=11 // pred_check
          %p124 = pneg %p80
        $region18: #{model_forward.21} parent=11 // pred_check_branch
          %126 = sbr.rel (%p124) target = $region20
        $region19: #{model_forward.21} parent=11 // pred_region
          _
        $region20: #{model_forward.21} parent=11 // pred_fallthru
          _
      $region12: #{model_forward.21} parent=5 // pred_fallthru
        _
      %p127 = scmp.lt.s32.totalorder %s12, 2
      // Predicated region
      $region21: #{model_forward.21} parent=5 // pred_check
        %p128 = pneg %p127
      $region22: #{model_forward.21} parent=5 // pred_check_branch
        %130 = sbr.rel (%p128) target = $region24
      $region23: #{model_forward.21} parent=5 // pred_region
        // Predicated region
        $region25: #{model_forward.21} parent=23 // pred_check
          %p131 = pneg %p32
        $region26: #{model_forward.21} parent=23 // pred_check_branch
          %133 = sbr.rel (%p131) target = $region28
        $region27: #{model_forward.21} parent=23 // pred_region
          %s134 = smul.u32 8, %s12
          %p135 = scmp.lt.s32.totalorder %s134, 15
          %s136 = scalar_select %p135, %s134, 15
          %s137 = smul.addr %s136, 8
          %s138 = scalar_lea.vmem %s0, %s137
          %s139 = smul.u32 8, %s12
        $region28: #{model_forward.21} parent=23 // pred_fallthru
          _
      $region24: #{model_forward.21} parent=5 // pred_fallthru
        _
      %p140 = scmp.le.s32.totalorder 1, %s12
      %p141 = scmp.lt.s32.totalorder %s12, 3
      %p142 = pnand %p140, %p141
      %p143 = pneg %p142
      // Predicated region
      $region29: #{model_forward.21} parent=5 // pred_check
        _
      $region30: #{model_forward.21} parent=5 // pred_check_branch
        %145 = sbr.rel (%p142) target = $region32
      $region31: #{model_forward.21} parent=5 // pred_region
        %s146 = ssub.s32 %s12, 1
        %s147 = smul.u32 8, %s17
        %p148 = scmp.lt.s32.totalorder %s147, 15
        %s149 = scalar_select %p148, %s147, 15
        %s150 = smul.addr %s149, 8
        %s151 = scalar_lea.vmem %s0, %s150
        %p152 = pneg %p38
        %p153 = pneg %p35
        %p154 = pneg %p59
        %p155 = pneg %p56
        %p156 = pneg %p80
        %p157 = pneg %p77
        %p158 = pneg %p106
        %p159 = pneg %p103
        %s160 = sand.u32 %s93, 1
        %s161 = scalar_lea.sflag [#allocation3], %s160
        %s162 = sand.u32 %s93, 1
        %s163 = smul.addr %s162, 64
        %s164 = scalar_lea.vmem [#allocation2], %s163
        %s165 = smul.u32 8, %s17
        %p166 = scmp.lt.s32.totalorder %s165, 15
        %s167 = scalar_select %p166, %s165, 15
        %s168 = smul.addr %s167, 8
        %s169 = scalar_lea.vmem %s0, %s168
        %s170 = smul.u32 8, %s17
        %s171 = smul.u32 8, %s17
        %v172 = vld [vmem:[%s169] sm:$0xff]
        %v173 = vld [vmem:[%s169 + $0x8] sm:$0xff]
        %v174 = vld [vmem:[%s169 + $0x10] sm:$0xff]
        %v175 = vld [vmem:[%s169 + $0x18] sm:$0xff]
        %v176 = vld [vmem:[%s169 + $0x20] sm:$0xff]
        %v177 = vld [vmem:[%s169 + $0x28] sm:$0xff]
        %v178 = vld [vmem:[%s169 + $0x30] sm:$0xff]
        %v179 = vld [vmem:[%s169 + $0x38] sm:$0xff]
        %vm180 = vcmask 261120
        %v181 = vsel %vm180, %v172, 0.0
        %182 = vadd.xlane.f32.xlu0 %v181
        %v183 = vpop.xlane.xlu0 %182
        %v184 = vsel %vm180, %v173, 0.0
        %185 = vadd.xlane.f32.xlu0 %v184
        %v186 = vpop.xlane.xlu0 %185
        %v187 = vsel %vm180, %v174, 0.0
        %188 = vadd.xlane.f32.xlu0 %v187
        %v189 = vpop.xlane.xlu0 %188
        %v190 = vsel %vm180, %v175, 0.0
        %191 = vadd.xlane.f32.xlu0 %v190
        %v192 = vpop.xlane.xlu0 %191
        %v193 = vsel %vm180, %v176, 0.0
        %194 = vadd.xlane.f32.xlu0 %v193
        %v195 = vpop.xlane.xlu0 %194
        %v196 = vsel %vm180, %v177, 0.0
        %197 = vadd.xlane.f32.xlu0 %v196
        %v198 = vpop.xlane.xlu0 %197
        %v199 = vsel %vm180, %v178, 0.0
        %200 = vadd.xlane.f32.xlu0 %v199
        %v201 = vpop.xlane.xlu0 %200
        %v202 = vsel %vm180, %v179, 0.0
        %203 = vadd.xlane.f32.xlu0 %v202
        %v204 = vpop.xlane.xlu0 %203
        %v205 = vrcp.pop 32.0
        %v206 = vmul.f32 32.0, %v205
        %v207 = vsub.f32 1.0, %v206
        %v208 = vmul.f32 %v205, %v207
        %v209 = vadd.f32 %v205, %v208
        %vm210 = vweird.f32 %v205
        %v211 = vsel %vm210, %v205, %v209
        %v212 = vmul.f32 %v183, %v211
        %v213 = vmul.f32 %v186, %v211
        %v214 = vmul.f32 %v189, %v211
        %v215 = vmul.f32 %v192, %v211
        %v216 = vmul.f32 %v195, %v211
        %v217 = vmul.f32 %v198, %v211
        %v218 = vmul.f32 %v201, %v211
        %v219 = vmul.f32 %v204, %v211
        %v220 = vsub.f32 %v172, %v212
        %v221 = vsub.f32 %v173, %v213
        %v222 = vsub.f32 %v174, %v214
        %v223 = vsub.f32 %v175, %v215
        %v224 = vsub.f32 %v176, %v216
        %v225 = vsub.f32 %v177, %v217
        %v226 = vsub.f32 %v178, %v218
        %v227 = vsub.f32 %v179, %v219
        %v228 = vmul.f32 %v220, %v220
        %v229 = vmul.f32 %v221, %v221
        %v230 = vmul.f32 %v222, %v222
        %v231 = vmul.f32 %v223, %v223
        %v232 = vmul.f32 %v224, %v224
        %v233 = vmul.f32 %v225, %v225
        %v234 = vmul.f32 %v226, %v226
        %v235 = vmul.f32 %v227, %v227
        %v236 = vsel %vm180, %v228, 0.0
        %237 = vadd.xlane.f32.xlu0 %v236
        %v238 = vpop.xlane.xlu0 %237
        %v239 = vsel %vm180, %v229, 0.0
        %240 = vadd.xlane.f32.xlu0 %v239
        %v241 = vpop.xlane.xlu0 %240
        %v242 = vsel %vm180, %v230, 0.0
        %243 = vadd.xlane.f32.xlu0 %v242
        %v244 = vpop.xlane.xlu0 %243
        %v245 = vsel %vm180, %v231, 0.0
        %246 = vadd.xlane.f32.xlu0 %v245
        %v247 = vpop.xlane.xlu0 %246
        %v248 = vsel %vm180, %v232, 0.0
        %249 = vadd.xlane.f32.xlu0 %v248
        %v250 = vpop.xlane.xlu0 %249
        %v251 = vsel %vm180, %v233, 0.0
        %252 = vadd.xlane.f32.xlu0 %v251
        %v253 = vpop.xlane.xlu0 %252
        %v254 = vsel %vm180, %v234, 0.0
        %255 = vadd.xlane.f32.xlu0 %v254
        %v256 = vpop.xlane.xlu0 %255
        %v257 = vsel %vm180, %v235, 0.0
        %258 = vadd.xlane.f32.xlu0 %v257
        %v259 = vpop.xlane.xlu0 %258
        %v260 = vmul.f32 %v238, %v211
        %v261 = vmul.f32 %v241, %v211
        %v262 = vmul.f32 %v244, %v211
        %v263 = vmul.f32 %v247, %v211
        %v264 = vmul.f32 %v250, %v211
        %v265 = vmul.f32 %v253, %v211
        %v266 = vmul.f32 %v256, %v211
        %v267 = vmul.f32 %v259, %v211
        %v268 = vadd.f32 %v260, 1e-05
        %v269 = vadd.f32 %v261, 1e-05
        %v270 = vadd.f32 %v262, 1e-05
        %v271 = vadd.f32 %v263, 1e-05
        %v272 = vadd.f32 %v264, 1e-05
        %v273 = vadd.f32 %v265, 1e-05
        %v274 = vadd.f32 %v266, 1e-05
        %v275 = vadd.f32 %v267, 1e-05
        %v276 = vrsqrt.pop %v268
        %v277 = vmul.f32 %v276, %v268
        %v278 = vmul.f32 %v277, %v276
        %v279 = vmul.f32 0.5, %v278
        %v280 = vsub.f32 1.5, %v279
        %v281 = vmul.f32 %v276, %v280
        %vm282 = vweird.f32 %v268
        %vm283 = vweird.f32 %v276
        %vm284 = vmor %vm282, %vm283
        %v285 = vsel %vm284, %v276, %v281
        %v286 = vrsqrt.pop %v269
        %v287 = vmul.f32 %v286, %v269
        %v288 = vmul.f32 %v287, %v286
        %v289 = vmul.f32 0.5, %v288
        %v290 = vsub.f32 1.5, %v289
        %v291 = vmul.f32 %v286, %v290
        %vm292 = vweird.f32 %v269
        %vm293 = vweird.f32 %v286
        %vm294 = vmor %vm292, %vm293
        %v295 = vsel %vm294, %v286, %v291
        %v296 = vrsqrt.pop %v270
        %v297 = vmul.f32 %v296, %v270
        %v298 = vmul.f32 %v297, %v296
        %v299 = vmul.f32 0.5, %v298
        %v300 = vsub.f32 1.5, %v299
        %v301 = vmul.f32 %v296, %v300
        %vm302 = vweird.f32 %v270
        %vm303 = vweird.f32 %v296
        %vm304 = vmor %vm302, %vm303
        %v305 = vsel %vm304, %v296, %v301
        %v306 = vrsqrt.pop %v271
        %v307 = vmul.f32 %v306, %v271
        %v308 = vmul.f32 %v307, %v306
        %v309 = vmul.f32 0.5, %v308
        %v310 = vsub.f32 1.5, %v309
        %v311 = vmul.f32 %v306, %v310
        %vm312 = vweird.f32 %v271
        %vm313 = vweird.f32 %v306
        %vm314 = vmor %vm312, %vm313
        %v315 = vsel %vm314, %v306, %v311
        %v316 = vrsqrt.pop %v272
        %v317 = vmul.f32 %v316, %v272
        %v318 = vmul.f32 %v317, %v316
        %v319 = vmul.f32 0.5, %v318
        %v320 = vsub.f32 1.5, %v319
        %v321 = vmul.f32 %v316, %v320
        %vm322 = vweird.f32 %v272
        %vm323 = vweird.f32 %v316
        %vm324 = vmor %vm322, %vm323
        %v325 = vsel %vm324, %v316, %v321
        %v326 = vrsqrt.pop %v273
        %v327 = vmul.f32 %v326, %v273
        %v328 = vmul.f32 %v327, %v326
        %v329 = vmul.f32 0.5, %v328
        %v330 = vsub.f32 1.5, %v329
        %v331 = vmul.f32 %v326, %v330
        %vm332 = vweird.f32 %v273
        %vm333 = vweird.f32 %v326
        %vm334 = vmor %vm332, %vm333
        %v335 = vsel %vm334, %v326, %v331
        %v336 = vrsqrt.pop %v274
        %v337 = vmul.f32 %v336, %v274
        %v338 = vmul.f32 %v337, %v336
        %v339 = vmul.f32 0.5, %v338
        %v340 = vsub.f32 1.5, %v339
        %v341 = vmul.f32 %v336, %v340
        %vm342 = vweird.f32 %v274
        %vm343 = vweird.f32 %v336
        %vm344 = vmor %vm342, %vm343
        %v345 = vsel %vm344, %v336, %v341
        %v346 = vrsqrt.pop %v275
        %v347 = vmul.f32 %v346, %v275
        %v348 = vmul.f32 %v347, %v346
        %v349 = vmul.f32 0.5, %v348
        %v350 = vsub.f32 1.5, %v349
        %v351 = vmul.f32 %v346, %v350
        %vm352 = vweird.f32 %v275
        %vm353 = vweird.f32 %v346
        %vm354 = vmor %vm352, %vm353
        %v355 = vsel %vm354, %v346, %v351
        %v356 = vmul.f32 %v220, %v285
        %v357 = vmul.f32 %v221, %v295
        %v358 = vmul.f32 %v222, %v305
        %v359 = vmul.f32 %v223, %v315
        %v360 = vmul.f32 %v224, %v325
        %v361 = vmul.f32 %v225, %v335
        %v362 = vmul.f32 %v226, %v345
        %v363 = vmul.f32 %v227, %v355
        %v364 = vld [vmem:[%s1] sm:$0x1]
        %v366 = vperm.slane %v364, 0
        %v368 = vmul.f32 %v356, %v366
        %v369 = vmul.f32 %v357, %v366
        %v370 = vmul.f32 %v358, %v366
        %v371 = vmul.f32 %v359, %v366
        %v372 = vmul.f32 %v360, %v366
        %v373 = vmul.f32 %v361, %v366
        %v374 = vmul.f32 %v362, %v366
        %v375 = vmul.f32 %v363, %v366
        %v376 = vld [vmem:[%s2] sm:$0x1]
        %v378 = vperm.slane %v376, 0
        %v380 = vadd.f32 %v368, %v378
        %v381 = vadd.f32 %v369, %v378
        %v382 = vadd.f32 %v370, %v378
        %v383 = vadd.f32 %v371, %v378
        %v384 = vadd.f32 %v372, %v378
        %v385 = vadd.f32 %v373, %v378
        %v386 = vadd.f32 %v374, %v378
        %v387 = vadd.f32 %v375, %v378
        %388 = vst.msk [vmem:[%s164] sm:$0xff] %vm180, %v380
        %389 = vst.msk [vmem:[%s164 + $0x8] sm:$0xff] %vm180, %v381
        %390 = vst.msk [vmem:[%s164 + $0x10] sm:$0xff] %vm180, %v382
        %391 = vst.msk [vmem:[%s164 + $0x18] sm:$0xff] %vm180, %v383
        %392 = vst.msk [vmem:[%s164 + $0x20] sm:$0xff] %vm180, %v384
        %393 = vst.msk [vmem:[%s164 + $0x28] sm:$0xff] %vm180, %v385
        %394 = vst.msk [vmem:[%s164 + $0x30] sm:$0xff] %vm180, %v386
        %395 = vst.msk [vmem:[%s164 + $0x38] sm:$0xff] %vm180, %v387
        %s396 = sand.u32 %s93, 1
        %s397 = scalar_lea.sflag [#allocation3], %s396
        %s398 = sand.u32 %s93, 1
        %s399 = smul.addr %s398, 64
        %s400 = scalar_lea.vmem [#allocation2], %s399
        // Predicated region
        $region33: #{model_forward.21} parent=31 // pred_check
          %p401 = pneg %p103
        $region34: #{model_forward.21} parent=31 // pred_check_branch
          %403 = sbr.rel (%p401) target = $region36
        $region35: #{model_forward.21} parent=31 // pred_region
          %s404 = smul.u32 8, %s17
          %406 = vsyncadd %s397, 0
          %s407 = smul.addr %s404, 8
          %s408 = scalar_lea.hbm %s3, %s407
          %s409 = sshll.u32 %s400, 4
          %s410 = int_to_ptr.vmem [resolvable:$true] %s409
          %s411 = sshll.u32 %s408, 4
          %s412 = int_to_ptr.hbm [resolvable:$true] %s411
          %417 = dma.vmem_to_hbm [thread:$0]  %s410, 1024, %s412, %s397, 128, 128, 8
        $region36: #{model_forward.21} parent=31 // pred_fallthru
          _
      $region32: #{model_forward.21} parent=5 // pred_fallthru
        _
      %p418 = scmp.le.s32.totalorder 2, %s12
      // Predicated region
      $region37: #{model_forward.21} parent=5 // pred_check
        %p419 = pneg %p418
      $region38: #{model_forward.21} parent=5 // pred_check_branch
        %421 = sbr.rel (%p419) target = $region40
      $region39: #{model_forward.21} parent=5 // pred_region
        %s422 = ssub.s32 %s12, 2
        // Predicated region
        $region41: #{model_forward.21} parent=39 // pred_check
          %p423 = pneg %p109
        $region42: #{model_forward.21} parent=39 // pred_check_branch
          %425 = sbr.rel (%p423) target = $region44
        $region43: #{model_forward.21} parent=39 // pred_region
          %s426 = sand.u32 %s94, 1
          %s427 = scalar_lea.sflag [#allocation3], %s426
          %s428 = sand.u32 %s94, 1
          %s429 = smul.addr %s428, 64
          %s430 = scalar_lea.vmem [#allocation2], %s429
          %432 = dma.done %s427, 1024
        $region44: #{model_forward.21} parent=39 // pred_fallthru
          _
      $region40: #{model_forward.21} parent=5 // pred_fallthru
        _
    $region6: #{model_forward.21} parent=1 // loop_footer
      %s16 = sadd.s32 1, %s12
    $region7: #{model_forward.21} parent=1 // loop_footer_branch
      %11 = sbr.rel target = $region3
    $region8: #{model_forward.21} parent=1 // loop_exit
      _
    %433 = vsyncpa [#allocation3], 1
    %s434 = scalar_lea.sflag [#allocation3], 1
    %435 = vsyncpa %s434, 1

</llo_original>
